<compile_context>
chip_gen: v6e
topology: v6e:2x2x1
jax: 0.10.0
libtpu: 0.0.40
codegen_flags: <defaults>
</compile_context>

<pallas_src>
import functools

import jax
import jax.numpy as jnp
from jax.experimental import pallas as pl
from jax.experimental.pallas import tpu as pltpu


def _darnn_kernel(
    x_ref,                      # (T, bb, n)  f32 input sequence (seq-major)
    uex_ref,                    # (bb, n, T)  f32 Ue(x), precomputed in wrapper
    h0_ref, c0_ref,             # (bb, m)     f32 initial hidden / cell
    we_ref,                     # (2m, T)     bf16 We weight (acts on [h ; c])
    web_ref,                    # (1, T)      f32  We bias
    vew_ref, veb_ref,           # (1, T) f32, (1, 1) f32
    wg_ref,                     # (n+m, 4m)   bf16 fused gate weight ([x_tilde ; h])
    bg_ref,                     # (1, 4m)     f32  fused gate bias (b_ih + b_hh)
    udw_ref,                    # (T*m, T*m)  bf16 block-diagonal Ud
    udb_ref,                    # (1, T*m)    f32  tiled Ud bias
    vdw_ref,                    # (T*m, T)    bf16 block-diagonal vd
    vdb_ref,                    # (1, 1)      f32
    outw_ref,                   # (m, od)     bf16
    outb_ref,                   # (1, od)     f32
    logits_ref,                 # out: (bb, od) f32
    beta_ref,                   # out: (bb, T)  f32
    hseq_ref,                   # scratch: (bb, T*m) f32 — h_t at lanes [t*m,(t+1)*m)
):
    T, Bb, n = x_ref.shape
    m = outw_ref.shape[0]
    f32, bf16 = jnp.float32, jnp.bfloat16

    # Load the loop-invariant operands once (everything is a few vregs).
    ue_x = uex_ref[...]                                     # (bb, n, T)
    we_w, we_b = we_ref[...], web_ref[...]
    ve_w, ve_b = vew_ref[...], veb_ref[...]
    w_g, b_g = wg_ref[...], bg_ref[...]

    h = h0_ref[...]                                         # (bb, m) f32
    c = c0_ref[...]                                         # (bb, m) f32

    # ---------------- fully-unrolled timestep loop (hot path) ----------------
    for t in range(T):
        # ---- input attention ----
        # We([h;c]) as ONE fused MXU matmul (lane-concat h|c = one vreg).
        hc = jnp.concatenate([h, c], axis=1).astype(bf16)   # (bb, 2m)
        we_hc = jnp.dot(hc, we_w, preferred_element_type=f32) + we_b   # (bb, T)
        # e = ve(tanh(We(hc) + Ue(x))); Ue(x) hoisted, T-contraction is a
        # single-vreg lane reduce.
        arg = jnp.tanh(we_hc[:, None, :] + ue_x)            # (bb, n, T)
        e = jnp.sum(arg * ve_w, axis=-1) + ve_b              # (bb, n)
        e = e - jnp.max(e, axis=-1, keepdims=True)           # softmax over n
        pe = jnp.exp(e)
        alpha = pe / jnp.sum(pe, axis=-1, keepdims=True)     # (bb, n)
        x_tilde = alpha * x_ref[t]                           # (bb, n)

        # ---- LSTM cell: ONE K-fused gate matmul on [x_tilde | h] ----
        xh = jnp.concatenate([x_tilde, h], axis=1).astype(bf16)        # (bb, n+m)
        gates = jnp.dot(xh, w_g, preferred_element_type=f32) + b_g     # (bb, 4m)
        # Nonlinearities on the full 128-lane vreg, then slice i/f/g/o.
        sig = jax.nn.sigmoid(gates)
        tnh = jnp.tanh(gates)
        i_g = sig[:, 0 * m:1 * m]                            # PyTorch order i,f,g,o
        f_g = sig[:, 1 * m:2 * m]
        g_g = tnh[:, 2 * m:3 * m]
        o_g = sig[:, 3 * m:4 * m]
        c = f_g * c + i_g * g_g
        h = o_g * jnp.tanh(c)
        # Static lane-slice store of h_t into the (bb, T*m) scratch.
        hseq_ref[:, t * m:(t + 1) * m] = h

    # ---------------- temporal attention + output (batched epilogue) ---------
    h_wide = hseq_ref[...]                                    # (bb, T*m)
    # z[:, t*m:(t+1)*m] = tanh(h_t @ Ud + Ud_b)  via block-diagonal Ud_big.
    z = jnp.tanh(jnp.dot(h_wide.astype(bf16), udw_ref[...],
                         preferred_element_type=f32) + udb_ref[...])   # (bb, T*m)
    # l[:, t] = z_t @ vd_w + vd_b  via block-diagonal vd_big (lands in (bb,T)).
    l = jnp.dot(z.astype(bf16), vdw_ref[...],
                preferred_element_type=f32) + vdb_ref[...]             # (bb, T)

    l = l - jnp.max(l, axis=-1, keepdims=True)                # softmax over T
    p = jnp.exp(l)
    beta = p / jnp.sum(p, axis=-1, keepdims=True)             # (bb, T)

    # c_vec = sum_t beta[:, t] * h_t  (unrolled fma; no cross-lane reduction)
    c_vec = jnp.zeros((Bb, m), f32)
    for t in range(T):
        c_vec = c_vec + beta[:, t:t + 1] * h_wide[:, t * m:(t + 1) * m]

    logits_ref[...] = (jnp.dot(c_vec.astype(bf16), outw_ref[...],
                               preferred_element_type=f32) + outb_ref[...])
    beta_ref[...] = beta


@functools.partial(jax.jit, static_argnames=("batch_block",))
def darnn_forward(x, hidden_state, params, *, batch_block=None):
    """x: (T, B, n) f32; hidden_state = (h0, c0), each (1, B, m)."""
    T, B, n = x.shape
    m = params["Ud_wT"].shape[0]
    od = params["out_wT"].shape[1]
    f32, bf16 = jnp.float32, jnp.bfloat16

    # Batch block for the "parallel" grid axis (multi-TensorCore occupancy).
    if batch_block is None or B % batch_block != 0:
        batch_block = B
    bb = batch_block

    x = x.astype(f32)
    h0 = hidden_state[0].reshape(B, m).astype(f32)
    c0 = hidden_state[1].reshape(B, m).astype(f32)

    # Hoisted loop-invariant Ue(x): one small XLA matmul outside the kernel.
    x_bnt = jnp.transpose(x, (1, 2, 0))                       # (B, n, T)
    ue_x = (jnp.einsum("bnt,ts->bns", x_bnt, params["Ue_wT"])
            + params["Ue_b"]).astype(f32)                     # (B, n, T)

    # Weight packing (all matmul weights pre-cast to bf16).
    we_w = params["We_wT"].astype(bf16)                                   # (2m, T)
    w_gates = jnp.concatenate([params["w_ihT"], params["w_hhT"]],
                              axis=0).astype(bf16)                        # (n+m, 4m)
    ud_big = jnp.kron(jnp.eye(T, dtype=f32), params["Ud_wT"]).astype(bf16)      # (T*m, T*m)
    ud_b_big = jnp.tile(params["Ud_b"], T).reshape(1, T * m).astype(f32)        # (1, T*m)
    vd_big = jnp.kron(jnp.eye(T, dtype=f32),
                      params["vd_w"].reshape(m, 1)).astype(bf16)                # (T*m, T)

    args = (
        x, ue_x, h0, c0,
        we_w, params["We_b"].reshape(1, T).astype(f32),
        params["ve_w"].reshape(1, T).astype(f32),
        params["ve_b"].reshape(1, 1).astype(f32),
        w_gates, params["b_lstm"].reshape(1, 4 * m).astype(f32),
        ud_big, ud_b_big,
        vd_big, params["vd_b"].reshape(1, 1).astype(f32),
        params["out_wT"].astype(bf16), params["out_b"].reshape(1, od).astype(f32),
    )

    def _full(shape):
        return pl.BlockSpec(shape, lambda i: (0,) * len(shape))

    in_specs = [
        pl.BlockSpec((T, bb, n), lambda i: (0, i, 0)),        # x
        pl.BlockSpec((bb, n, T), lambda i: (i, 0, 0)),        # Ue(x)
        pl.BlockSpec((bb, m), lambda i: (i, 0)),              # h0
        pl.BlockSpec((bb, m), lambda i: (i, 0)),              # c0
        _full((2 * m, T)), _full((1, T)),                     # We
        _full((1, T)), _full((1, 1)),                         # ve
        _full((n + m, 4 * m)), _full((1, 4 * m)),             # fused LSTM gates
        _full((T * m, T * m)), _full((1, T * m)),             # Ud_big
        _full((T * m, T)), _full((1, 1)),                     # vd_big
        _full((m, od)), _full((1, od)),                       # out
    ]
    out_specs = [
        pl.BlockSpec((bb, od), lambda i: (i, 0)),
        pl.BlockSpec((bb, T), lambda i: (i, 0)),
    ]

    grid_spec = pltpu.PrefetchScalarGridSpec(
        num_scalar_prefetch=0,
        grid=(B // bb,),
        in_specs=in_specs,
        out_specs=out_specs,
        scratch_shapes=[pltpu.VMEM((bb, T * m), f32)],
    )

    logits, beta = pl.pallas_call(
        _darnn_kernel,
        out_shape=[
            jax.ShapeDtypeStruct((B, od), f32),
            jax.ShapeDtypeStruct((B, T), f32),
        ],
        grid_spec=grid_spec,
        compiler_params=pltpu.CompilerParams(
            dimension_semantics=("parallel",)),
    )(*args)
    return logits, beta


# --------------------------- pure-JAX reference -----------------------------
def darnn_reference(x, hidden_state, params):
    T, B, n = x.shape
    m = params["Ud_wT"].shape[0]
    xp = jnp.transpose(x, (1, 2, 0))
    h = hidden_state[0].reshape(B, m)
    c = hidden_state[1].reshape(B, m)
    hs = []
    for t in range(T):
        hc = jnp.concatenate([h, c], axis=1)
        we_hc = hc @ params["We_wT"] + params["We_b"]
        ue_x = jnp.einsum("bnt,ts->bns", xp, params["Ue_wT"]) + params["Ue_b"]
        e = (jnp.sum(jnp.tanh(we_hc[:, None, :] + ue_x) * params["ve_w"],
                     axis=-1) + params["ve_b"])
        alpha = jax.nn.softmax(e, axis=1)
        x_tilde = alpha * xp[:, :, t]
        gates = x_tilde @ params["w_ihT"] + h @ params["w_hhT"] + params["b_lstm"]
        i_g = jax.nn.sigmoid(gates[:, :m])
        f_g = jax.nn.sigmoid(gates[:, m:2 * m])
        g_g = jnp.tanh(gates[:, 2 * m:3 * m])
        o_g = jax.nn.sigmoid(gates[:, 3 * m:])
        c = f_g * c + i_g * g_g
        h = o_g * jnp.tanh(c)
        hs.append(h)
    hseq = jnp.stack(hs, axis=0)                              # (T, B, m)
    hbt = jnp.transpose(hseq, (1, 0, 2))                      # (B, T, m)
    z = jnp.tanh(hbt @ params["Ud_wT"] + params["Ud_b"])
    l = jnp.sum(z * params["vd_w"], axis=-1) + params["vd_b"]
    beta = jax.nn.softmax(l, axis=1)                          # (B, T)
    cvec = jnp.einsum("bt,btm->bm", beta, hbt)
    logits = cvec @ params["out_wT"] + params["out_b"]
    return logits, beta


def init_params(key, T, n, m, od):
    ks = jax.random.split(key, 15)

    def u(k, shape, fan_in):
        b = 1.0 / jnp.sqrt(jnp.float32(fan_in))
        return jax.random.uniform(k, shape, jnp.float32, -b, b)

    return dict(
        We_wT=u(ks[0], (2 * m, T), 2 * m), We_b=u(ks[1], (T,), 2 * m),
        Ue_wT=u(ks[2], (T, T), T),         Ue_b=u(ks[3], (T,), T),
        ve_w=u(ks[4], (T,), T),            ve_b=u(ks[5], (), T),
        w_ihT=u(ks[6], (n, 4 * m), m),     w_hhT=u(ks[7], (m, 4 * m), m),
        b_lstm=u(ks[8], (4 * m,), m),      # b_ih + b_hh combined
        Ud_wT=u(ks[9], (m, m), m),         Ud_b=u(ks[10], (m,), m),
        vd_w=u(ks[11], (m,), m),           vd_b=u(ks[12], (), m),
        out_wT=u(ks[13], (m, od), m),      out_b=u(ks[14], (od,), m),
    )


if __name__ == "__main__":
    # DaRnnModel(seq_length=8, input_dim=4, output_dim=3, hidden_size=32, dropout_p=0.0)
    T, B, n, m, od = 8, 2, 4, 32, 3
    key = jax.random.PRNGKey(0)
    kx, kh, kc, kp, kx2, kh2, kc2 = jax.random.split(key, 7)

    params = init_params(kp, T, n, m, od)
    x = jax.random.normal(kx, (T, B, n), jnp.float32)
    h0 = 0.1 * jax.random.normal(kh, (1, B, m), jnp.float32)
    c0 = 0.1 * jax.random.normal(kc, (1, B, m), jnp.float32)

    logits, beta = darnn_forward(x, (h0, c0), params)
    jax.block_until_ready((logits, beta))

    ref_logits, ref_beta = darnn_reference(x, (h0, c0), params)
    assert logits.shape == (B, od) and beta.shape == (B, T)
    # beta rows must be a softmax (precision-insensitive structural check).
    assert jnp.max(jnp.abs(jnp.sum(beta, axis=1) - 1.0)) < 1e-3
    # Kernel matmuls run with explicit bf16 inputs / f32 accumulation (same as
    # default TPU MXU behaviour); allow bf16-level tolerance vs the f32-param
    # XLA reference.  Structural bugs would be orders of magnitude larger.
    assert jnp.allclose(logits, ref_logits, atol=2e-2, rtol=2e-2)
    assert jnp.allclose(beta, ref_beta, atol=2e-2, rtol=2e-2)

    # Larger batch sharded over the "parallel" grid axis (two blocks of 8):
    # exercises the multi-TensorCore path (v7x) while keeping shapes tiny.
    B2, bb2 = 16, 8
    x2 = jax.random.normal(kx2, (T, B2, n), jnp.float32)
    h02 = 0.1 * jax.random.normal(kh2, (1, B2, m), jnp.float32)
    c02 = 0.1 * jax.random.normal(kc2, (1, B2, m), jnp.float32)
    logits2, beta2 = darnn_forward(x2, (h02, c02), params, batch_block=bb2)
    jax.block_until_ready((logits2, beta2))
    ref_logits2, ref_beta2 = darnn_reference(x2, (h02, c02), params)
    assert jnp.allclose(logits2, ref_logits2, atol=2e-2, rtol=2e-2)
    assert jnp.allclose(beta2, ref_beta2, atol=2e-2, rtol=2e-2)

    print("KERNEL_OK")
</pallas_src>

<mosaic_0001>
module attributes {stable_mosaic.version = 11 : i64} {
  func.func @_darnn_kernel(%arg0: i32, %arg1: memref<8x2x4xf32, #tpu.memory_space<vmem>>, %arg2: memref<2x4x8xf32, #tpu.memory_space<vmem>>, %arg3: memref<2x32xf32, #tpu.memory_space<vmem>>, %arg4: memref<2x32xf32, #tpu.memory_space<vmem>>, %arg5: memref<64x8xbf16, #tpu.memory_space<vmem>>, %arg6: memref<1x8xf32, #tpu.memory_space<vmem>>, %arg7: memref<1x8xf32, #tpu.memory_space<vmem>>, %arg8: memref<1x1xf32, #tpu.memory_space<vmem>>, %arg9: memref<36x128xbf16, #tpu.memory_space<vmem>>, %arg10: memref<1x128xf32, #tpu.memory_space<vmem>>, %arg11: memref<256x256xbf16, #tpu.memory_space<vmem>>, %arg12: memref<1x256xf32, #tpu.memory_space<vmem>>, %arg13: memref<256x8xbf16, #tpu.memory_space<vmem>>, %arg14: memref<1x1xf32, #tpu.memory_space<vmem>>, %arg15: memref<32x3xbf16, #tpu.memory_space<vmem>>, %arg16: memref<1x3xf32, #tpu.memory_space<vmem>>, %arg17: memref<2x3xf32, #tpu.memory_space<vmem>>, %arg18: memref<2x8xf32, #tpu.memory_space<vmem>>, %arg19: memref<2x256xf32, #tpu.memory_space<vmem>>) attributes {dimension_semantics = [#tpu.dimension_semantics<parallel>], iteration_bounds = array<i64: 1>, scalar_prefetch = 0 : i64, scratch_operands = 1 : i64, tpu.core_type = #tpu.core_type<tc>, window_params = [{transform_indices = @transform_0, window_bounds = array<i64: 8, 2, 4>}, {transform_indices = @transform_1, window_bounds = array<i64: 2, 4, 8>}, {transform_indices = @transform_2, window_bounds = array<i64: 2, 32>}, {transform_indices = @transform_3, window_bounds = array<i64: 2, 32>}, {pipeline_mode = #tpu.pipeline_mode<synchronous>, transform_indices = @transform_4, window_bounds = array<i64: 64, 8>}, {pipeline_mode = #tpu.pipeline_mode<synchronous>, transform_indices = @transform_5, window_bounds = array<i64: 1, 8>}, {pipeline_mode = #tpu.pipeline_mode<synchronous>, transform_indices = @transform_6, window_bounds = array<i64: 1, 8>}, {pipeline_mode = #tpu.pipeline_mode<synchronous>, transform_indices = @transform_7, window_bounds = array<i64: 1, 1>}, {pipeline_mode = #tpu.pipeline_mode<synchronous>, transform_indices = @transform_8, window_bounds = array<i64: 36, 128>}, {pipeline_mode = #tpu.pipeline_mode<synchronous>, transform_indices = @transform_9, window_bounds = array<i64: 1, 128>}, {pipeline_mode = #tpu.pipeline_mode<synchronous>, transform_indices = @transform_10, window_bounds = array<i64: 256, 256>}, {pipeline_mode = #tpu.pipeline_mode<synchronous>, transform_indices = @transform_11, window_bounds = array<i64: 1, 256>}, {pipeline_mode = #tpu.pipeline_mode<synchronous>, transform_indices = @transform_12, window_bounds = array<i64: 256, 8>}, {pipeline_mode = #tpu.pipeline_mode<synchronous>, transform_indices = @transform_13, window_bounds = array<i64: 1, 1>}, {pipeline_mode = #tpu.pipeline_mode<synchronous>, transform_indices = @transform_14, window_bounds = array<i64: 32, 3>}, {pipeline_mode = #tpu.pipeline_mode<synchronous>, transform_indices = @transform_15, window_bounds = array<i64: 1, 3>}, {transform_indices = @transform_16, window_bounds = array<i64: 2, 3>}, {transform_indices = @transform_17, window_bounds = array<i64: 2, 8>}]} {
    %c0 = arith.constant 0 : index
    %c0_0 = arith.constant 0 : index
    %c0_1 = arith.constant 0 : index
    %0 = vector.load %arg2[%c0, %c0_0, %c0_1] : memref<2x4x8xf32, #tpu.memory_space<vmem>>, vector<2x4x8xf32>
    %c0_2 = arith.constant 0 : index
    %c0_3 = arith.constant 0 : index
    %1 = vector.load %arg5[%c0_2, %c0_3] : memref<64x8xbf16, #tpu.memory_space<vmem>>, vector<64x8xbf16>
    %c0_4 = arith.constant 0 : index
    %c0_5 = arith.constant 0 : index
    %2 = vector.load %arg6[%c0_4, %c0_5] : memref<1x8xf32, #tpu.memory_space<vmem>>, vector<1x8xf32>
    %c0_6 = arith.constant 0 : index
    %c0_7 = arith.constant 0 : index
    %3 = vector.load %arg7[%c0_6, %c0_7] : memref<1x8xf32, #tpu.memory_space<vmem>>, vector<1x8xf32>
    %c0_8 = arith.constant 0 : index
    %c0_9 = arith.constant 0 : index
    %4 = vector.load %arg8[%c0_8, %c0_9] : memref<1x1xf32, #tpu.memory_space<vmem>>, vector<1x1xf32>
    %c0_10 = arith.constant 0 : index
    %c0_11 = arith.constant 0 : index
    %5 = vector.load %arg9[%c0_10, %c0_11] : memref<36x128xbf16, #tpu.memory_space<vmem>>, vector<36x128xbf16>
    %c0_12 = arith.constant 0 : index
    %c0_13 = arith.constant 0 : index
    %6 = vector.load %arg10[%c0_12, %c0_13] : memref<1x128xf32, #tpu.memory_space<vmem>>, vector<1x128xf32>
    %c0_14 = arith.constant 0 : index
    %c0_15 = arith.constant 0 : index
    %7 = vector.load %arg3[%c0_14, %c0_15] : memref<2x32xf32, #tpu.memory_space<vmem>>, vector<2x32xf32>
    %c0_16 = arith.constant 0 : index
    %c0_17 = arith.constant 0 : index
    %8 = vector.load %arg4[%c0_16, %c0_17] : memref<2x32xf32, #tpu.memory_space<vmem>>, vector<2x32xf32>
    %9 = tpu.concatenate %7, %8 in 1 : vector<2x32xf32>, vector<2x32xf32> -> vector<2x64xf32>
    %10 = arith.truncf %9 : vector<2x64xf32> to vector<2x64xbf16>
    %cst = arith.constant dense<0.000000e+00> : vector<2x8xf32>
    %11 = tpu.matmul %10, %1, %cst {dimension_numbers = #tpu.dot_dimension_numbers<[1], [0], [0], [1], [0, 0, 1, 1], [], []>} : vector<2x64xbf16>, vector<64x8xbf16>, vector<2x8xf32> -> vector<2x8xf32>
    %12 = vector.broadcast %2 : vector<1x8xf32> to vector<2x8xf32>
    %13 = arith.addf %11, %12 : vector<2x8xf32>
    %14 = vector.shape_cast %13 : vector<2x8xf32> to vector<2x1x8xf32>
    %15 = vector.broadcast %14 : vector<2x1x8xf32> to vector<2x4x8xf32>
    %16 = arith.addf %15, %0 : vector<2x4x8xf32>
    %17 = math.tanh %16 : vector<2x4x8xf32>
    %18 = vector.shape_cast %3 : vector<1x8xf32> to vector<1x1x8xf32>
    %19 = vector.broadcast %18 : vector<1x1x8xf32> to vector<2x4x8xf32>
    %20 = arith.mulf %17, %19 : vector<2x4x8xf32>
    %cst_18 = arith.constant dense<0.000000e+00> : vector<2x4xf32>
    %21 = vector.multi_reduction <add>, %20, %cst_18 [2] : vector<2x4x8xf32> to vector<2x4xf32>
    %22 = vector.broadcast %4 : vector<1x1xf32> to vector<2x4xf32>
    %23 = arith.addf %21, %22 : vector<2x4xf32>
    %cst_19 = arith.constant dense<0xFF800000> : vector<2xf32>
    %24 = vector.multi_reduction <maximumf>, %23, %cst_19 [1] : vector<2x4xf32> to vector<2xf32>
    %25 = vector.shape_cast %24 : vector<2xf32> to vector<2x1xf32>
    %26 = vector.broadcast %25 : vector<2x1xf32> to vector<2x4xf32>
    %27 = arith.subf %23, %26 : vector<2x4xf32>
    %28 = math.exp %27 : vector<2x4xf32>
    %cst_20 = arith.constant dense<0.000000e+00> : vector<2xf32>
    %29 = vector.multi_reduction <add>, %28, %cst_20 [1] : vector<2x4xf32> to vector<2xf32>
    %30 = vector.shape_cast %29 : vector<2xf32> to vector<2x1xf32>
    %31 = vector.broadcast %30 : vector<2x1xf32> to vector<2x4xf32>
    %32 = arith.divf %28, %31 : vector<2x4xf32>
    %c0_21 = arith.constant 0 : index
    %c0_22 = arith.constant 0 : index
    %c0_23 = arith.constant 0 : index
    %33 = vector.load %arg1[%c0_21, %c0_22, %c0_23] : memref<8x2x4xf32, #tpu.memory_space<vmem>>, vector<1x2x4xf32>
    %34 = vector.shape_cast %33 : vector<1x2x4xf32> to vector<2x4xf32>
    %35 = arith.mulf %32, %34 : vector<2x4xf32>
    %36 = tpu.concatenate %35, %7 in 1 : vector<2x4xf32>, vector<2x32xf32> -> vector<2x36xf32>
    %37 = arith.truncf %36 : vector<2x36xf32> to vector<2x36xbf16>
    %cst_24 = arith.constant dense<0.000000e+00> : vector<2x128xf32>
    %38 = tpu.matmul %37, %5, %cst_24 {dimension_numbers = #tpu.dot_dimension_numbers<[1], [0], [0], [1], [0, 0, 1, 1], [], []>} : vector<2x36xbf16>, vector<36x128xbf16>, vector<2x128xf32> -> vector<2x128xf32>
    %39 = vector.broadcast %6 : vector<1x128xf32> to vector<2x128xf32>
    %40 = arith.addf %38, %39 : vector<2x128xf32>
    %41 = arith.negf %40 : vector<2x128xf32>
    %42 = math.exp %41 : vector<2x128xf32>
    %cst_25 = arith.constant 1.000000e+00 : f32
    %43 = vector.broadcast %cst_25 : f32 to vector<2x128xf32>
    %44 = arith.addf %43, %42 : vector<2x128xf32>
    %45 = arith.divf %43, %44 : vector<2x128xf32>
    %46 = math.tanh %40 : vector<2x128xf32>
    %47 = vector.extract_strided_slice %45 {offsets = [0, 0], sizes = [2, 32], strides = [1, 1]} : vector<2x128xf32> to vector<2x32xf32>
    %48 = vector.extract_strided_slice %45 {offsets = [0, 32], sizes = [2, 32], strides = [1, 1]} : vector<2x128xf32> to vector<2x32xf32>
    %49 = vector.extract_strided_slice %46 {offsets = [0, 64], sizes = [2, 32], strides = [1, 1]} : vector<2x128xf32> to vector<2x32xf32>
    %50 = vector.extract_strided_slice %45 {offsets = [0, 96], sizes = [2, 32], strides = [1, 1]} : vector<2x128xf32> to vector<2x32xf32>
    %51 = arith.mulf %48, %8 : vector<2x32xf32>
    %52 = arith.mulf %47, %49 : vector<2x32xf32>
    %53 = arith.addf %51, %52 : vector<2x32xf32>
    %54 = math.tanh %53 : vector<2x32xf32>
    %55 = arith.mulf %50, %54 : vector<2x32xf32>
    %c0_26 = arith.constant 0 : index
    %c0_27 = arith.constant 0 : index
    %56 = vector.load %arg19[%c0_26, %c0_27] : memref<2x256xf32, #tpu.memory_space<vmem>>, vector<2x32xf32>
    tpu.vector_store %arg19[%c0_26, %c0_27], %55 {strides = array<i32>} : memref<2x256xf32, #tpu.memory_space<vmem>>, vector<2x32xf32>,
    %57 = tpu.concatenate %55, %53 in 1 : vector<2x32xf32>, vector<2x32xf32> -> vector<2x64xf32>
    %58 = arith.truncf %57 : vector<2x64xf32> to vector<2x64xbf16>
    %cst_28 = arith.constant dense<0.000000e+00> : vector<2x8xf32>
    %59 = tpu.matmul %58, %1, %cst_28 {dimension_numbers = #tpu.dot_dimension_numbers<[1], [0], [0], [1], [0, 0, 1, 1], [], []>} : vector<2x64xbf16>, vector<64x8xbf16>, vector<2x8xf32> -> vector<2x8xf32>
    %60 = vector.broadcast %2 : vector<1x8xf32> to vector<2x8xf32>
    %61 = arith.addf %59, %60 : vector<2x8xf32>
    %62 = vector.shape_cast %61 : vector<2x8xf32> to vector<2x1x8xf32>
    %63 = vector.broadcast %62 : vector<2x1x8xf32> to vector<2x4x8xf32>
    %64 = arith.addf %63, %0 : vector<2x4x8xf32>
    %65 = math.tanh %64 : vector<2x4x8xf32>
    %66 = vector.shape_cast %3 : vector<1x8xf32> to vector<1x1x8xf32>
    %67 = vector.broadcast %66 : vector<1x1x8xf32> to vector<2x4x8xf32>
    %68 = arith.mulf %65, %67 : vector<2x4x8xf32>
    %cst_29 = arith.constant dense<0.000000e+00> : vector<2x4xf32>
    %69 = vector.multi_reduction <add>, %68, %cst_29 [2] : vector<2x4x8xf32> to vector<2x4xf32>
    %70 = vector.broadcast %4 : vector<1x1xf32> to vector<2x4xf32>
    %71 = arith.addf %69, %70 : vector<2x4xf32>
    %cst_30 = arith.constant dense<0xFF800000> : vector<2xf32>
    %72 = vector.multi_reduction <maximumf>, %71, %cst_30 [1] : vector<2x4xf32> to vector<2xf32>
    %73 = vector.shape_cast %72 : vector<2xf32> to vector<2x1xf32>
    %74 = vector.broadcast %73 : vector<2x1xf32> to vector<2x4xf32>
    %75 = arith.subf %71, %74 : vector<2x4xf32>
    %76 = math.exp %75 : vector<2x4xf32>
    %cst_31 = arith.constant dense<0.000000e+00> : vector<2xf32>
    %77 = vector.multi_reduction <add>, %76, %cst_31 [1] : vector<2x4xf32> to vector<2xf32>
    %78 = vector.shape_cast %77 : vector<2xf32> to vector<2x1xf32>
    %79 = vector.broadcast %78 : vector<2x1xf32> to vector<2x4xf32>
    %80 = arith.divf %76, %79 : vector<2x4xf32>
    %c1 = arith.constant 1 : index
    %c0_32 = arith.constant 0 : index
    %c0_33 = arith.constant 0 : index
    %81 = vector.load %arg1[%c1, %c0_32, %c0_33] : memref<8x2x4xf32, #tpu.memory_space<vmem>>, vector<1x2x4xf32>
    %82 = vector.shape_cast %81 : vector<1x2x4xf32> to vector<2x4xf32>
    %83 = arith.mulf %80, %82 : vector<2x4xf32>
    %84 = tpu.concatenate %83, %55 in 1 : vector<2x4xf32>, vector<2x32xf32> -> vector<2x36xf32>
    %85 = arith.truncf %84 : vector<2x36xf32> to vector<2x36xbf16>
    %cst_34 = arith.constant dense<0.000000e+00> : vector<2x128xf32>
    %86 = tpu.matmul %85, %5, %cst_34 {dimension_numbers = #tpu.dot_dimension_numbers<[1], [0], [0], [1], [0, 0, 1, 1], [], []>} : vector<2x36xbf16>, vector<36x128xbf16>, vector<2x128xf32> -> vector<2x128xf32>
    %87 = vector.broadcast %6 : vector<1x128xf32> to vector<2x128xf32>
    %88 = arith.addf %86, %87 : vector<2x128xf32>
    %89 = arith.negf %88 : vector<2x128xf32>
    %90 = math.exp %89 : vector<2x128xf32>
    %cst_35 = arith.constant 1.000000e+00 : f32
    %91 = vector.broadcast %cst_35 : f32 to vector<2x128xf32>
    %92 = arith.addf %91, %90 : vector<2x128xf32>
    %93 = arith.divf %91, %92 : vector<2x128xf32>
    %94 = math.tanh %88 : vector<2x128xf32>
    %95 = vector.extract_strided_slice %93 {offsets = [0, 0], sizes = [2, 32], strides = [1, 1]} : vector<2x128xf32> to vector<2x32xf32>
    %96 = vector.extract_strided_slice %93 {offsets = [0, 32], sizes = [2, 32], strides = [1, 1]} : vector<2x128xf32> to vector<2x32xf32>
    %97 = vector.extract_strided_slice %94 {offsets = [0, 64], sizes = [2, 32], strides = [1, 1]} : vector<2x128xf32> to vector<2x32xf32>
    %98 = vector.extract_strided_slice %93 {offsets = [0, 96], sizes = [2, 32], strides = [1, 1]} : vector<2x128xf32> to vector<2x32xf32>
    %99 = arith.mulf %96, %53 : vector<2x32xf32>
    %100 = arith.mulf %95, %97 : vector<2x32xf32>
    %101 = arith.addf %99, %100 : vector<2x32xf32>
    %102 = math.tanh %101 : vector<2x32xf32>
    %103 = arith.mulf %98, %102 : vector<2x32xf32>
    %c0_36 = arith.constant 0 : index
    %c32 = arith.constant 32 : index
    %104 = vector.load %arg19[%c0_36, %c32] : memref<2x256xf32, #tpu.memory_space<vmem>>, vector<2x32xf32>
    tpu.vector_store %arg19[%c0_36, %c32], %103 {strides = array<i32>} : memref<2x256xf32, #tpu.memory_space<vmem>>, vector<2x32xf32>,
    %105 = tpu.concatenate %103, %101 in 1 : vector<2x32xf32>, vector<2x32xf32> -> vector<2x64xf32>
    %106 = arith.truncf %105 : vector<2x64xf32> to vector<2x64xbf16>
    %cst_37 = arith.constant dense<0.000000e+00> : vector<2x8xf32>
    %107 = tpu.matmul %106, %1, %cst_37 {dimension_numbers = #tpu.dot_dimension_numbers<[1], [0], [0], [1], [0, 0, 1, 1], [], []>} : vector<2x64xbf16>, vector<64x8xbf16>, vector<2x8xf32> -> vector<2x8xf32>
    %108 = vector.broadcast %2 : vector<1x8xf32> to vector<2x8xf32>
    %109 = arith.addf %107, %108 : vector<2x8xf32>
    %110 = vector.shape_cast %109 : vector<2x8xf32> to vector<2x1x8xf32>
    %111 = vector.broadcast %110 : vector<2x1x8xf32> to vector<2x4x8xf32>
    %112 = arith.addf %111, %0 : vector<2x4x8xf32>
    %113 = math.tanh %112 : vector<2x4x8xf32>
    %114 = vector.shape_cast %3 : vector<1x8xf32> to vector<1x1x8xf32>
    %115 = vector.broadcast %114 : vector<1x1x8xf32> to vector<2x4x8xf32>
    %116 = arith.mulf %113, %115 : vector<2x4x8xf32>
    %cst_38 = arith.constant dense<0.000000e+00> : vector<2x4xf32>
    %117 = vector.multi_reduction <add>, %116, %cst_38 [2] : vector<2x4x8xf32> to vector<2x4xf32>
    %118 = vector.broadcast %4 : vector<1x1xf32> to vector<2x4xf32>
    %119 = arith.addf %117, %118 : vector<2x4xf32>
    %cst_39 = arith.constant dense<0xFF800000> : vector<2xf32>
    %120 = vector.multi_reduction <maximumf>, %119, %cst_39 [1] : vector<2x4xf32> to vector<2xf32>
    %121 = vector.shape_cast %120 : vector<2xf32> to vector<2x1xf32>
    %122 = vector.broadcast %121 : vector<2x1xf32> to vector<2x4xf32>
    %123 = arith.subf %119, %122 : vector<2x4xf32>
    %124 = math.exp %123 : vector<2x4xf32>
    %cst_40 = arith.constant dense<0.000000e+00> : vector<2xf32>
    %125 = vector.multi_reduction <add>, %124, %cst_40 [1] : vector<2x4xf32> to vector<2xf32>
    %126 = vector.shape_cast %125 : vector<2xf32> to vector<2x1xf32>
    %127 = vector.broadcast %126 : vector<2x1xf32> to vector<2x4xf32>
    %128 = arith.divf %124, %127 : vector<2x4xf32>
    %c2 = arith.constant 2 : index
    %c0_41 = arith.constant 0 : index
    %c0_42 = arith.constant 0 : index
    %129 = vector.load %arg1[%c2, %c0_41, %c0_42] : memref<8x2x4xf32, #tpu.memory_space<vmem>>, vector<1x2x4xf32>
    %130 = vector.shape_cast %129 : vector<1x2x4xf32> to vector<2x4xf32>
    %131 = arith.mulf %128, %130 : vector<2x4xf32>
    %132 = tpu.concatenate %131, %103 in 1 : vector<2x4xf32>, vector<2x32xf32> -> vector<2x36xf32>
    %133 = arith.truncf %132 : vector<2x36xf32> to vector<2x36xbf16>
    %cst_43 = arith.constant dense<0.000000e+00> : vector<2x128xf32>
    %134 = tpu.matmul %133, %5, %cst_43 {dimension_numbers = #tpu.dot_dimension_numbers<[1], [0], [0], [1], [0, 0, 1, 1], [], []>} : vector<2x36xbf16>, vector<36x128xbf16>, vector<2x128xf32> -> vector<2x128xf32>
    %135 = vector.broadcast %6 : vector<1x128xf32> to vector<2x128xf32>
    %136 = arith.addf %134, %135 : vector<2x128xf32>
    %137 = arith.negf %136 : vector<2x128xf32>
    %138 = math.exp %137 : vector<2x128xf32>
    %cst_44 = arith.constant 1.000000e+00 : f32
    %139 = vector.broadcast %cst_44 : f32 to vector<2x128xf32>
    %140 = arith.addf %139, %138 : vector<2x128xf32>
    %141 = arith.divf %139, %140 : vector<2x128xf32>
    %142 = math.tanh %136 : vector<2x128xf32>
    %143 = vector.extract_strided_slice %141 {offsets = [0, 0], sizes = [2, 32], strides = [1, 1]} : vector<2x128xf32> to vector<2x32xf32>
    %144 = vector.extract_strided_slice %141 {offsets = [0, 32], sizes = [2, 32], strides = [1, 1]} : vector<2x128xf32> to vector<2x32xf32>
    %145 = vector.extract_strided_slice %142 {offsets = [0, 64], sizes = [2, 32], strides = [1, 1]} : vector<2x128xf32> to vector<2x32xf32>
    %146 = vector.extract_strided_slice %141 {offsets = [0, 96], sizes = [2, 32], strides = [1, 1]} : vector<2x128xf32> to vector<2x32xf32>
    %147 = arith.mulf %144, %101 : vector<2x32xf32>
    %148 = arith.mulf %143, %145 : vector<2x32xf32>
    %149 = arith.addf %147, %148 : vector<2x32xf32>
    %150 = math.tanh %149 : vector<2x32xf32>
    %151 = arith.mulf %146, %150 : vector<2x32xf32>
    %c0_45 = arith.constant 0 : index
    %c64 = arith.constant 64 : index
    %152 = vector.load %arg19[%c0_45, %c64] : memref<2x256xf32, #tpu.memory_space<vmem>>, vector<2x32xf32>
    tpu.vector_store %arg19[%c0_45, %c64], %151 {strides = array<i32>} : memref<2x256xf32, #tpu.memory_space<vmem>>, vector<2x32xf32>,
    %153 = tpu.concatenate %151, %149 in 1 : vector<2x32xf32>, vector<2x32xf32> -> vector<2x64xf32>
    %154 = arith.truncf %153 : vector<2x64xf32> to vector<2x64xbf16>
    %cst_46 = arith.constant dense<0.000000e+00> : vector<2x8xf32>
    %155 = tpu.matmul %154, %1, %cst_46 {dimension_numbers = #tpu.dot_dimension_numbers<[1], [0], [0], [1], [0, 0, 1, 1], [], []>} : vector<2x64xbf16>, vector<64x8xbf16>, vector<2x8xf32> -> vector<2x8xf32>
    %156 = vector.broadcast %2 : vector<1x8xf32> to vector<2x8xf32>
    %157 = arith.addf %155, %156 : vector<2x8xf32>
    %158 = vector.shape_cast %157 : vector<2x8xf32> to vector<2x1x8xf32>
    %159 = vector.broadcast %158 : vector<2x1x8xf32> to vector<2x4x8xf32>
    %160 = arith.addf %159, %0 : vector<2x4x8xf32>
    %161 = math.tanh %160 : vector<2x4x8xf32>
    %162 = vector.shape_cast %3 : vector<1x8xf32> to vector<1x1x8xf32>
    %163 = vector.broadcast %162 : vector<1x1x8xf32> to vector<2x4x8xf32>
    %164 = arith.mulf %161, %163 : vector<2x4x8xf32>
    %cst_47 = arith.constant dense<0.000000e+00> : vector<2x4xf32>
    %165 = vector.multi_reduction <add>, %164, %cst_47 [2] : vector<2x4x8xf32> to vector<2x4xf32>
    %166 = vector.broadcast %4 : vector<1x1xf32> to vector<2x4xf32>
    %167 = arith.addf %165, %166 : vector<2x4xf32>
    %cst_48 = arith.constant dense<0xFF800000> : vector<2xf32>
    %168 = vector.multi_reduction <maximumf>, %167, %cst_48 [1] : vector<2x4xf32> to vector<2xf32>
    %169 = vector.shape_cast %168 : vector<2xf32> to vector<2x1xf32>
    %170 = vector.broadcast %169 : vector<2x1xf32> to vector<2x4xf32>
    %171 = arith.subf %167, %170 : vector<2x4xf32>
    %172 = math.exp %171 : vector<2x4xf32>
    %cst_49 = arith.constant dense<0.000000e+00> : vector<2xf32>
    %173 = vector.multi_reduction <add>, %172, %cst_49 [1] : vector<2x4xf32> to vector<2xf32>
    %174 = vector.shape_cast %173 : vector<2xf32> to vector<2x1xf32>
    %175 = vector.broadcast %174 : vector<2x1xf32> to vector<2x4xf32>
    %176 = arith.divf %172, %175 : vector<2x4xf32>
    %c3 = arith.constant 3 : index
    %c0_50 = arith.constant 0 : index
    %c0_51 = arith.constant 0 : index
    %177 = vector.load %arg1[%c3, %c0_50, %c0_51] : memref<8x2x4xf32, #tpu.memory_space<vmem>>, vector<1x2x4xf32>
    %178 = vector.shape_cast %177 : vector<1x2x4xf32> to vector<2x4xf32>
    %179 = arith.mulf %176, %178 : vector<2x4xf32>
    %180 = tpu.concatenate %179, %151 in 1 : vector<2x4xf32>, vector<2x32xf32> -> vector<2x36xf32>
    %181 = arith.truncf %180 : vector<2x36xf32> to vector<2x36xbf16>
    %cst_52 = arith.constant dense<0.000000e+00> : vector<2x128xf32>
    %182 = tpu.matmul %181, %5, %cst_52 {dimension_numbers = #tpu.dot_dimension_numbers<[1], [0], [0], [1], [0, 0, 1, 1], [], []>} : vector<2x36xbf16>, vector<36x128xbf16>, vector<2x128xf32> -> vector<2x128xf32>
    %183 = vector.broadcast %6 : vector<1x128xf32> to vector<2x128xf32>
    %184 = arith.addf %182, %183 : vector<2x128xf32>
    %185 = arith.negf %184 : vector<2x128xf32>
    %186 = math.exp %185 : vector<2x128xf32>
    %cst_53 = arith.constant 1.000000e+00 : f32
    %187 = vector.broadcast %cst_53 : f32 to vector<2x128xf32>
    %188 = arith.addf %187, %186 : vector<2x128xf32>
    %189 = arith.divf %187, %188 : vector<2x128xf32>
    %190 = math.tanh %184 : vector<2x128xf32>
    %191 = vector.extract_strided_slice %189 {offsets = [0, 0], sizes = [2, 32], strides = [1, 1]} : vector<2x128xf32> to vector<2x32xf32>
    %192 = vector.extract_strided_slice %189 {offsets = [0, 32], sizes = [2, 32], strides = [1, 1]} : vector<2x128xf32> to vector<2x32xf32>
    %193 = vector.extract_strided_slice %190 {offsets = [0, 64], sizes = [2, 32], strides = [1, 1]} : vector<2x128xf32> to vector<2x32xf32>
    %194 = vector.extract_strided_slice %189 {offsets = [0, 96], sizes = [2, 32], strides = [1, 1]} : vector<2x128xf32> to vector<2x32xf32>
    %195 = arith.mulf %192, %149 : vector<2x32xf32>
    %196 = arith.mulf %191, %193 : vector<2x32xf32>
    %197 = arith.addf %195, %196 : vector<2x32xf32>
    %198 = math.tanh %197 : vector<2x32xf32>
    %199 = arith.mulf %194, %198 : vector<2x32xf32>
    %c0_54 = arith.constant 0 : index
    %c96 = arith.constant 96 : index
    %200 = vector.load %arg19[%c0_54, %c96] : memref<2x256xf32, #tpu.memory_space<vmem>>, vector<2x32xf32>
    tpu.vector_store %arg19[%c0_54, %c96], %199 {strides = array<i32>} : memref<2x256xf32, #tpu.memory_space<vmem>>, vector<2x32xf32>,
    %201 = tpu.concatenate %199, %197 in 1 : vector<2x32xf32>, vector<2x32xf32> -> vector<2x64xf32>
    %202 = arith.truncf %201 : vector<2x64xf32> to vector<2x64xbf16>
    %cst_55 = arith.constant dense<0.000000e+00> : vector<2x8xf32>
    %203 = tpu.matmul %202, %1, %cst_55 {dimension_numbers = #tpu.dot_dimension_numbers<[1], [0], [0], [1], [0, 0, 1, 1], [], []>} : vector<2x64xbf16>, vector<64x8xbf16>, vector<2x8xf32> -> vector<2x8xf32>
    %204 = vector.broadcast %2 : vector<1x8xf32> to vector<2x8xf32>
    %205 = arith.addf %203, %204 : vector<2x8xf32>
    %206 = vector.shape_cast %205 : vector<2x8xf32> to vector<2x1x8xf32>
    %207 = vector.broadcast %206 : vector<2x1x8xf32> to vector<2x4x8xf32>
    %208 = arith.addf %207, %0 : vector<2x4x8xf32>
    %209 = math.tanh %208 : vector<2x4x8xf32>
    %210 = vector.shape_cast %3 : vector<1x8xf32> to vector<1x1x8xf32>
    %211 = vector.broadcast %210 : vector<1x1x8xf32> to vector<2x4x8xf32>
    %212 = arith.mulf %209, %211 : vector<2x4x8xf32>
    %cst_56 = arith.constant dense<0.000000e+00> : vector<2x4xf32>
    %213 = vector.multi_reduction <add>, %212, %cst_56 [2] : vector<2x4x8xf32> to vector<2x4xf32>
    %214 = vector.broadcast %4 : vector<1x1xf32> to vector<2x4xf32>
    %215 = arith.addf %213, %214 : vector<2x4xf32>
    %cst_57 = arith.constant dense<0xFF800000> : vector<2xf32>
    %216 = vector.multi_reduction <maximumf>, %215, %cst_57 [1] : vector<2x4xf32> to vector<2xf32>
    %217 = vector.shape_cast %216 : vector<2xf32> to vector<2x1xf32>
    %218 = vector.broadcast %217 : vector<2x1xf32> to vector<2x4xf32>
    %219 = arith.subf %215, %218 : vector<2x4xf32>
    %220 = math.exp %219 : vector<2x4xf32>
    %cst_58 = arith.constant dense<0.000000e+00> : vector<2xf32>
    %221 = vector.multi_reduction <add>, %220, %cst_58 [1] : vector<2x4xf32> to vector<2xf32>
    %222 = vector.shape_cast %221 : vector<2xf32> to vector<2x1xf32>
    %223 = vector.broadcast %222 : vector<2x1xf32> to vector<2x4xf32>
    %224 = arith.divf %220, %223 : vector<2x4xf32>
    %c4 = arith.constant 4 : index
    %c0_59 = arith.constant 0 : index
    %c0_60 = arith.constant 0 : index
    %225 = vector.load %arg1[%c4, %c0_59, %c0_60] : memref<8x2x4xf32, #tpu.memory_space<vmem>>, vector<1x2x4xf32>
    %226 = vector.shape_cast %225 : vector<1x2x4xf32> to vector<2x4xf32>
    %227 = arith.mulf %224, %226 : vector<2x4xf32>
    %228 = tpu.concatenate %227, %199 in 1 : vector<2x4xf32>, vector<2x32xf32> -> vector<2x36xf32>
    %229 = arith.truncf %228 : vector<2x36xf32> to vector<2x36xbf16>
    %cst_61 = arith.constant dense<0.000000e+00> : vector<2x128xf32>
    %230 = tpu.matmul %229, %5, %cst_61 {dimension_numbers = #tpu.dot_dimension_numbers<[1], [0], [0], [1], [0, 0, 1, 1], [], []>} : vector<2x36xbf16>, vector<36x128xbf16>, vector<2x128xf32> -> vector<2x128xf32>
    %231 = vector.broadcast %6 : vector<1x128xf32> to vector<2x128xf32>
    %232 = arith.addf %230, %231 : vector<2x128xf32>
    %233 = arith.negf %232 : vector<2x128xf32>
    %234 = math.exp %233 : vector<2x128xf32>
    %cst_62 = arith.constant 1.000000e+00 : f32
    %235 = vector.broadcast %cst_62 : f32 to vector<2x128xf32>
    %236 = arith.addf %235, %234 : vector<2x128xf32>
    %237 = arith.divf %235, %236 : vector<2x128xf32>
    %238 = math.tanh %232 : vector<2x128xf32>
    %239 = vector.extract_strided_slice %237 {offsets = [0, 0], sizes = [2, 32], strides = [1, 1]} : vector<2x128xf32> to vector<2x32xf32>
    %240 = vector.extract_strided_slice %237 {offsets = [0, 32], sizes = [2, 32], strides = [1, 1]} : vector<2x128xf32> to vector<2x32xf32>
    %241 = vector.extract_strided_slice %238 {offsets = [0, 64], sizes = [2, 32], strides = [1, 1]} : vector<2x128xf32> to vector<2x32xf32>
    %242 = vector.extract_strided_slice %237 {offsets = [0, 96], sizes = [2, 32], strides = [1, 1]} : vector<2x128xf32> to vector<2x32xf32>
    %243 = arith.mulf %240, %197 : vector<2x32xf32>
    %244 = arith.mulf %239, %241 : vector<2x32xf32>
    %245 = arith.addf %243, %244 : vector<2x32xf32>
    %246 = math.tanh %245 : vector<2x32xf32>
    %247 = arith.mulf %242, %246 : vector<2x32xf32>
    %c0_63 = arith.constant 0 : index
    %c128 = arith.constant 128 : index
    %248 = vector.load %arg19[%c0_63, %c128] : memref<2x256xf32, #tpu.memory_space<vmem>>, vector<2x32xf32>
    tpu.vector_store %arg19[%c0_63, %c128], %247 {strides = array<i32>} : memref<2x256xf32, #tpu.memory_space<vmem>>, vector<2x32xf32>,
    %249 = tpu.concatenate %247, %245 in 1 : vector<2x32xf32>, vector<2x32xf32> -> vector<2x64xf32>
    %250 = arith.truncf %249 : vector<2x64xf32> to vector<2x64xbf16>
    %cst_64 = arith.constant dense<0.000000e+00> : vector<2x8xf32>
    %251 = tpu.matmul %250, %1, %cst_64 {dimension_numbers = #tpu.dot_dimension_numbers<[1], [0], [0], [1], [0, 0, 1, 1], [], []>} : vector<2x64xbf16>, vector<64x8xbf16>, vector<2x8xf32> -> vector<2x8xf32>
    %252 = vector.broadcast %2 : vector<1x8xf32> to vector<2x8xf32>
    %253 = arith.addf %251, %252 : vector<2x8xf32>
    %254 = vector.shape_cast %253 : vector<2x8xf32> to vector<2x1x8xf32>
    %255 = vector.broadcast %254 : vector<2x1x8xf32> to vector<2x4x8xf32>
    %256 = arith.addf %255, %0 : vector<2x4x8xf32>
    %257 = math.tanh %256 : vector<2x4x8xf32>
    %258 = vector.shape_cast %3 : vector<1x8xf32> to vector<1x1x8xf32>
    %259 = vector.broadcast %258 : vector<1x1x8xf32> to vector<2x4x8xf32>
    %260 = arith.mulf %257, %259 : vector<2x4x8xf32>
    %cst_65 = arith.constant dense<0.000000e+00> : vector<2x4xf32>
    %261 = vector.multi_reduction <add>, %260, %cst_65 [2] : vector<2x4x8xf32> to vector<2x4xf32>
    %262 = vector.broadcast %4 : vector<1x1xf32> to vector<2x4xf32>
    %263 = arith.addf %261, %262 : vector<2x4xf32>
    %cst_66 = arith.constant dense<0xFF800000> : vector<2xf32>
    %264 = vector.multi_reduction <maximumf>, %263, %cst_66 [1] : vector<2x4xf32> to vector<2xf32>
    %265 = vector.shape_cast %264 : vector<2xf32> to vector<2x1xf32>
    %266 = vector.broadcast %265 : vector<2x1xf32> to vector<2x4xf32>
    %267 = arith.subf %263, %266 : vector<2x4xf32>
    %268 = math.exp %267 : vector<2x4xf32>
    %cst_67 = arith.constant dense<0.000000e+00> : vector<2xf32>
    %269 = vector.multi_reduction <add>, %268, %cst_67 [1] : vector<2x4xf32> to vector<2xf32>
    %270 = vector.shape_cast %269 : vector<2xf32> to vector<2x1xf32>
    %271 = vector.broadcast %270 : vector<2x1xf32> to vector<2x4xf32>
    %272 = arith.divf %268, %271 : vector<2x4xf32>
    %c5 = arith.constant 5 : index
    %c0_68 = arith.constant 0 : index
    %c0_69 = arith.constant 0 : index
    %273 = vector.load %arg1[%c5, %c0_68, %c0_69] : memref<8x2x4xf32, #tpu.memory_space<vmem>>, vector<1x2x4xf32>
    %274 = vector.shape_cast %273 : vector<1x2x4xf32> to vector<2x4xf32>
    %275 = arith.mulf %272, %274 : vector<2x4xf32>
    %276 = tpu.concatenate %275, %247 in 1 : vector<2x4xf32>, vector<2x32xf32> -> vector<2x36xf32>
    %277 = arith.truncf %276 : vector<2x36xf32> to vector<2x36xbf16>
    %cst_70 = arith.constant dense<0.000000e+00> : vector<2x128xf32>
    %278 = tpu.matmul %277, %5, %cst_70 {dimension_numbers = #tpu.dot_dimension_numbers<[1], [0], [0], [1], [0, 0, 1, 1], [], []>} : vector<2x36xbf16>, vector<36x128xbf16>, vector<2x128xf32> -> vector<2x128xf32>
    %279 = vector.broadcast %6 : vector<1x128xf32> to vector<2x128xf32>
    %280 = arith.addf %278, %279 : vector<2x128xf32>
    %281 = arith.negf %280 : vector<2x128xf32>
    %282 = math.exp %281 : vector<2x128xf32>
    %cst_71 = arith.constant 1.000000e+00 : f32
    %283 = vector.broadcast %cst_71 : f32 to vector<2x128xf32>
    %284 = arith.addf %283, %282 : vector<2x128xf32>
    %285 = arith.divf %283, %284 : vector<2x128xf32>
    %286 = math.tanh %280 : vector<2x128xf32>
    %287 = vector.extract_strided_slice %285 {offsets = [0, 0], sizes = [2, 32], strides = [1, 1]} : vector<2x128xf32> to vector<2x32xf32>
    %288 = vector.extract_strided_slice %285 {offsets = [0, 32], sizes = [2, 32], strides = [1, 1]} : vector<2x128xf32> to vector<2x32xf32>
    %289 = vector.extract_strided_slice %286 {offsets = [0, 64], sizes = [2, 32], strides = [1, 1]} : vector<2x128xf32> to vector<2x32xf32>
    %290 = vector.extract_strided_slice %285 {offsets = [0, 96], sizes = [2, 32], strides = [1, 1]} : vector<2x128xf32> to vector<2x32xf32>
    %291 = arith.mulf %288, %245 : vector<2x32xf32>
    %292 = arith.mulf %287, %289 : vector<2x32xf32>
    %293 = arith.addf %291, %292 : vector<2x32xf32>
    %294 = math.tanh %293 : vector<2x32xf32>
    %295 = arith.mulf %290, %294 : vector<2x32xf32>
    %c0_72 = arith.constant 0 : index
    %c160 = arith.constant 160 : index
    %296 = vector.load %arg19[%c0_72, %c160] : memref<2x256xf32, #tpu.memory_space<vmem>>, vector<2x32xf32>
    tpu.vector_store %arg19[%c0_72, %c160], %295 {strides = array<i32>} : memref<2x256xf32, #tpu.memory_space<vmem>>, vector<2x32xf32>,
    %297 = tpu.concatenate %295, %293 in 1 : vector<2x32xf32>, vector<2x32xf32> -> vector<2x64xf32>
    %298 = arith.truncf %297 : vector<2x64xf32> to vector<2x64xbf16>
    %cst_73 = arith.constant dense<0.000000e+00> : vector<2x8xf32>
    %299 = tpu.matmul %298, %1, %cst_73 {dimension_numbers = #tpu.dot_dimension_numbers<[1], [0], [0], [1], [0, 0, 1, 1], [], []>} : vector<2x64xbf16>, vector<64x8xbf16>, vector<2x8xf32> -> vector<2x8xf32>
    %300 = vector.broadcast %2 : vector<1x8xf32> to vector<2x8xf32>
    %301 = arith.addf %299, %300 : vector<2x8xf32>
    %302 = vector.shape_cast %301 : vector<2x8xf32> to vector<2x1x8xf32>
    %303 = vector.broadcast %302 : vector<2x1x8xf32> to vector<2x4x8xf32>
    %304 = arith.addf %303, %0 : vector<2x4x8xf32>
    %305 = math.tanh %304 : vector<2x4x8xf32>
    %306 = vector.shape_cast %3 : vector<1x8xf32> to vector<1x1x8xf32>
    %307 = vector.broadcast %306 : vector<1x1x8xf32> to vector<2x4x8xf32>
    %308 = arith.mulf %305, %307 : vector<2x4x8xf32>
    %cst_74 = arith.constant dense<0.000000e+00> : vector<2x4xf32>
    %309 = vector.multi_reduction <add>, %308, %cst_74 [2] : vector<2x4x8xf32> to vector<2x4xf32>
    %310 = vector.broadcast %4 : vector<1x1xf32> to vector<2x4xf32>
    %311 = arith.addf %309, %310 : vector<2x4xf32>
    %cst_75 = arith.constant dense<0xFF800000> : vector<2xf32>
    %312 = vector.multi_reduction <maximumf>, %311, %cst_75 [1] : vector<2x4xf32> to vector<2xf32>
    %313 = vector.shape_cast %312 : vector<2xf32> to vector<2x1xf32>
    %314 = vector.broadcast %313 : vector<2x1xf32> to vector<2x4xf32>
    %315 = arith.subf %311, %314 : vector<2x4xf32>
    %316 = math.exp %315 : vector<2x4xf32>
    %cst_76 = arith.constant dense<0.000000e+00> : vector<2xf32>
    %317 = vector.multi_reduction <add>, %316, %cst_76 [1] : vector<2x4xf32> to vector<2xf32>
    %318 = vector.shape_cast %317 : vector<2xf32> to vector<2x1xf32>
    %319 = vector.broadcast %318 : vector<2x1xf32> to vector<2x4xf32>
    %320 = arith.divf %316, %319 : vector<2x4xf32>
    %c6 = arith.constant 6 : index
    %c0_77 = arith.constant 0 : index
    %c0_78 = arith.constant 0 : index
    %321 = vector.load %arg1[%c6, %c0_77, %c0_78] : memref<8x2x4xf32, #tpu.memory_space<vmem>>, vector<1x2x4xf32>
    %322 = vector.shape_cast %321 : vector<1x2x4xf32> to vector<2x4xf32>
    %323 = arith.mulf %320, %322 : vector<2x4xf32>
    %324 = tpu.concatenate %323, %295 in 1 : vector<2x4xf32>, vector<2x32xf32> -> vector<2x36xf32>
    %325 = arith.truncf %324 : vector<2x36xf32> to vector<2x36xbf16>
    %cst_79 = arith.constant dense<0.000000e+00> : vector<2x128xf32>
    %326 = tpu.matmul %325, %5, %cst_79 {dimension_numbers = #tpu.dot_dimension_numbers<[1], [0], [0], [1], [0, 0, 1, 1], [], []>} : vector<2x36xbf16>, vector<36x128xbf16>, vector<2x128xf32> -> vector<2x128xf32>
    %327 = vector.broadcast %6 : vector<1x128xf32> to vector<2x128xf32>
    %328 = arith.addf %326, %327 : vector<2x128xf32>
    %329 = arith.negf %328 : vector<2x128xf32>
    %330 = math.exp %329 : vector<2x128xf32>
    %cst_80 = arith.constant 1.000000e+00 : f32
    %331 = vector.broadcast %cst_80 : f32 to vector<2x128xf32>
    %332 = arith.addf %331, %330 : vector<2x128xf32>
    %333 = arith.divf %331, %332 : vector<2x128xf32>
    %334 = math.tanh %328 : vector<2x128xf32>
    %335 = vector.extract_strided_slice %333 {offsets = [0, 0], sizes = [2, 32], strides = [1, 1]} : vector<2x128xf32> to vector<2x32xf32>
    %336 = vector.extract_strided_slice %333 {offsets = [0, 32], sizes = [2, 32], strides = [1, 1]} : vector<2x128xf32> to vector<2x32xf32>
    %337 = vector.extract_strided_slice %334 {offsets = [0, 64], sizes = [2, 32], strides = [1, 1]} : vector<2x128xf32> to vector<2x32xf32>
    %338 = vector.extract_strided_slice %333 {offsets = [0, 96], sizes = [2, 32], strides = [1, 1]} : vector<2x128xf32> to vector<2x32xf32>
    %339 = arith.mulf %336, %293 : vector<2x32xf32>
    %340 = arith.mulf %335, %337 : vector<2x32xf32>
    %341 = arith.addf %339, %340 : vector<2x32xf32>
    %342 = math.tanh %341 : vector<2x32xf32>
    %343 = arith.mulf %338, %342 : vector<2x32xf32>
    %c0_81 = arith.constant 0 : index
    %c192 = arith.constant 192 : index
    %344 = vector.load %arg19[%c0_81, %c192] : memref<2x256xf32, #tpu.memory_space<vmem>>, vector<2x32xf32>
    tpu.vector_store %arg19[%c0_81, %c192], %343 {strides = array<i32>} : memref<2x256xf32, #tpu.memory_space<vmem>>, vector<2x32xf32>,
    %345 = tpu.concatenate %343, %341 in 1 : vector<2x32xf32>, vector<2x32xf32> -> vector<2x64xf32>
    %346 = arith.truncf %345 : vector<2x64xf32> to vector<2x64xbf16>
    %cst_82 = arith.constant dense<0.000000e+00> : vector<2x8xf32>
    %347 = tpu.matmul %346, %1, %cst_82 {dimension_numbers = #tpu.dot_dimension_numbers<[1], [0], [0], [1], [0, 0, 1, 1], [], []>} : vector<2x64xbf16>, vector<64x8xbf16>, vector<2x8xf32> -> vector<2x8xf32>
    %348 = vector.broadcast %2 : vector<1x8xf32> to vector<2x8xf32>
    %349 = arith.addf %347, %348 : vector<2x8xf32>
    %350 = vector.shape_cast %349 : vector<2x8xf32> to vector<2x1x8xf32>
    %351 = vector.broadcast %350 : vector<2x1x8xf32> to vector<2x4x8xf32>
    %352 = arith.addf %351, %0 : vector<2x4x8xf32>
    %353 = math.tanh %352 : vector<2x4x8xf32>
    %354 = vector.shape_cast %3 : vector<1x8xf32> to vector<1x1x8xf32>
    %355 = vector.broadcast %354 : vector<1x1x8xf32> to vector<2x4x8xf32>
    %356 = arith.mulf %353, %355 : vector<2x4x8xf32>
    %cst_83 = arith.constant dense<0.000000e+00> : vector<2x4xf32>
    %357 = vector.multi_reduction <add>, %356, %cst_83 [2] : vector<2x4x8xf32> to vector<2x4xf32>
    %358 = vector.broadcast %4 : vector<1x1xf32> to vector<2x4xf32>
    %359 = arith.addf %357, %358 : vector<2x4xf32>
    %cst_84 = arith.constant dense<0xFF800000> : vector<2xf32>
    %360 = vector.multi_reduction <maximumf>, %359, %cst_84 [1] : vector<2x4xf32> to vector<2xf32>
    %361 = vector.shape_cast %360 : vector<2xf32> to vector<2x1xf32>
    %362 = vector.broadcast %361 : vector<2x1xf32> to vector<2x4xf32>
    %363 = arith.subf %359, %362 : vector<2x4xf32>
    %364 = math.exp %363 : vector<2x4xf32>
    %cst_85 = arith.constant dense<0.000000e+00> : vector<2xf32>
    %365 = vector.multi_reduction <add>, %364, %cst_85 [1] : vector<2x4xf32> to vector<2xf32>
    %366 = vector.shape_cast %365 : vector<2xf32> to vector<2x1xf32>
    %367 = vector.broadcast %366 : vector<2x1xf32> to vector<2x4xf32>
    %368 = arith.divf %364, %367 : vector<2x4xf32>
    %c7 = arith.constant 7 : index
    %c0_86 = arith.constant 0 : index
    %c0_87 = arith.constant 0 : index
    %369 = vector.load %arg1[%c7, %c0_86, %c0_87] : memref<8x2x4xf32, #tpu.memory_space<vmem>>, vector<1x2x4xf32>
    %370 = vector.shape_cast %369 : vector<1x2x4xf32> to vector<2x4xf32>
    %371 = arith.mulf %368, %370 : vector<2x4xf32>
    %372 = tpu.concatenate %371, %343 in 1 : vector<2x4xf32>, vector<2x32xf32> -> vector<2x36xf32>
    %373 = arith.truncf %372 : vector<2x36xf32> to vector<2x36xbf16>
    %cst_88 = arith.constant dense<0.000000e+00> : vector<2x128xf32>
    %374 = tpu.matmul %373, %5, %cst_88 {dimension_numbers = #tpu.dot_dimension_numbers<[1], [0], [0], [1], [0, 0, 1, 1], [], []>} : vector<2x36xbf16>, vector<36x128xbf16>, vector<2x128xf32> -> vector<2x128xf32>
    %375 = vector.broadcast %6 : vector<1x128xf32> to vector<2x128xf32>
    %376 = arith.addf %374, %375 : vector<2x128xf32>
    %377 = arith.negf %376 : vector<2x128xf32>
    %378 = math.exp %377 : vector<2x128xf32>
    %cst_89 = arith.constant 1.000000e+00 : f32
    %379 = vector.broadcast %cst_89 : f32 to vector<2x128xf32>
    %380 = arith.addf %379, %378 : vector<2x128xf32>
    %381 = arith.divf %379, %380 : vector<2x128xf32>
    %382 = math.tanh %376 : vector<2x128xf32>
    %383 = vector.extract_strided_slice %381 {offsets = [0, 0], sizes = [2, 32], strides = [1, 1]} : vector<2x128xf32> to vector<2x32xf32>
    %384 = vector.extract_strided_slice %381 {offsets = [0, 32], sizes = [2, 32], strides = [1, 1]} : vector<2x128xf32> to vector<2x32xf32>
    %385 = vector.extract_strided_slice %382 {offsets = [0, 64], sizes = [2, 32], strides = [1, 1]} : vector<2x128xf32> to vector<2x32xf32>
    %386 = vector.extract_strided_slice %381 {offsets = [0, 96], sizes = [2, 32], strides = [1, 1]} : vector<2x128xf32> to vector<2x32xf32>
    %387 = arith.mulf %384, %341 : vector<2x32xf32>
    %388 = arith.mulf %383, %385 : vector<2x32xf32>
    %389 = arith.addf %387, %388 : vector<2x32xf32>
    %390 = math.tanh %389 : vector<2x32xf32>
    %391 = arith.mulf %386, %390 : vector<2x32xf32>
    %c0_90 = arith.constant 0 : index
    %c224 = arith.constant 224 : index
    %392 = vector.load %arg19[%c0_90, %c224] : memref<2x256xf32, #tpu.memory_space<vmem>>, vector<2x32xf32>
    tpu.vector_store %arg19[%c0_90, %c224], %391 {strides = array<i32>} : memref<2x256xf32, #tpu.memory_space<vmem>>, vector<2x32xf32>,
    %c0_91 = arith.constant 0 : index
    %c0_92 = arith.constant 0 : index
    %393 = vector.load %arg19[%c0_91, %c0_92] : memref<2x256xf32, #tpu.memory_space<vmem>>, vector<2x256xf32>
    %394 = arith.truncf %393 : vector<2x256xf32> to vector<2x256xbf16>
    %c0_93 = arith.constant 0 : index
    %c0_94 = arith.constant 0 : index
    %395 = vector.load %arg11[%c0_93, %c0_94] : memref<256x256xbf16, #tpu.memory_space<vmem>>, vector<256x256xbf16>
    %cst_95 = arith.constant dense<0.000000e+00> : vector<2x256xf32>
    %396 = tpu.matmul %394, %395, %cst_95 {dimension_numbers = #tpu.dot_dimension_numbers<[1], [0], [0], [1], [0, 0, 1, 1], [], []>} : vector<2x256xbf16>, vector<256x256xbf16>, vector<2x256xf32> -> vector<2x256xf32>
    %c0_96 = arith.constant 0 : index
    %c0_97 = arith.constant 0 : index
    %397 = vector.load %arg12[%c0_96, %c0_97] : memref<1x256xf32, #tpu.memory_space<vmem>>, vector<1x256xf32>
    %398 = vector.broadcast %397 : vector<1x256xf32> to vector<2x256xf32>
    %399 = arith.addf %396, %398 : vector<2x256xf32>
    %400 = math.tanh %399 : vector<2x256xf32>
    %401 = arith.truncf %400 : vector<2x256xf32> to vector<2x256xbf16>
    %c0_98 = arith.constant 0 : index
    %c0_99 = arith.constant 0 : index
    %402 = vector.load %arg13[%c0_98, %c0_99] : memref<256x8xbf16, #tpu.memory_space<vmem>>, vector<256x8xbf16>
    %cst_100 = arith.constant dense<0.000000e+00> : vector<2x8xf32>
    %403 = tpu.matmul %401, %402, %cst_100 {dimension_numbers = #tpu.dot_dimension_numbers<[1], [0], [0], [1], [0, 0, 1, 1], [], []>} : vector<2x256xbf16>, vector<256x8xbf16>, vector<2x8xf32> -> vector<2x8xf32>
    %c0_101 = arith.constant 0 : index
    %c0_102 = arith.constant 0 : index
    %404 = vector.load %arg14[%c0_101, %c0_102] : memref<1x1xf32, #tpu.memory_space<vmem>>, vector<1x1xf32>
    %405 = vector.broadcast %404 : vector<1x1xf32> to vector<2x8xf32>
    %406 = arith.addf %403, %405 : vector<2x8xf32>
    %cst_103 = arith.constant dense<0xFF800000> : vector<2xf32>
    %407 = vector.multi_reduction <maximumf>, %406, %cst_103 [1] : vector<2x8xf32> to vector<2xf32>
    %408 = vector.shape_cast %407 : vector<2xf32> to vector<2x1xf32>
    %409 = vector.broadcast %408 : vector<2x1xf32> to vector<2x8xf32>
    %410 = arith.subf %406, %409 : vector<2x8xf32>
    %411 = math.exp %410 : vector<2x8xf32>
    %cst_104 = arith.constant dense<0.000000e+00> : vector<2xf32>
    %412 = vector.multi_reduction <add>, %411, %cst_104 [1] : vector<2x8xf32> to vector<2xf32>
    %413 = vector.shape_cast %412 : vector<2xf32> to vector<2x1xf32>
    %414 = vector.broadcast %413 : vector<2x1xf32> to vector<2x8xf32>
    %415 = arith.divf %411, %414 : vector<2x8xf32>
    %cst_105 = arith.constant 0.000000e+00 : f32
    %416 = vector.broadcast %cst_105 : f32 to vector<2x32xf32>
    %417 = vector.extract_strided_slice %415 {offsets = [0, 0], sizes = [2, 1], strides = [1, 1]} : vector<2x8xf32> to vector<2x1xf32>
    %418 = vector.extract_strided_slice %393 {offsets = [0, 0], sizes = [2, 32], strides = [1, 1]} : vector<2x256xf32> to vector<2x32xf32>
    %419 = vector.broadcast %417 : vector<2x1xf32> to vector<2x32xf32>
    %420 = arith.mulf %419, %418 : vector<2x32xf32>
    %421 = arith.addf %416, %420 : vector<2x32xf32>
    %422 = vector.extract_strided_slice %415 {offsets = [0, 1], sizes = [2, 1], strides = [1, 1]} : vector<2x8xf32> to vector<2x1xf32>
    %423 = vector.extract_strided_slice %393 {offsets = [0, 32], sizes = [2, 32], strides = [1, 1]} : vector<2x256xf32> to vector<2x32xf32>
    %424 = vector.broadcast %422 : vector<2x1xf32> to vector<2x32xf32>
    %425 = arith.mulf %424, %423 : vector<2x32xf32>
    %426 = arith.addf %421, %425 : vector<2x32xf32>
    %427 = vector.extract_strided_slice %415 {offsets = [0, 2], sizes = [2, 1], strides = [1, 1]} : vector<2x8xf32> to vector<2x1xf32>
    %428 = vector.extract_strided_slice %393 {offsets = [0, 64], sizes = [2, 32], strides = [1, 1]} : vector<2x256xf32> to vector<2x32xf32>
    %429 = vector.broadcast %427 : vector<2x1xf32> to vector<2x32xf32>
    %430 = arith.mulf %429, %428 : vector<2x32xf32>
    %431 = arith.addf %426, %430 : vector<2x32xf32>
    %432 = vector.extract_strided_slice %415 {offsets = [0, 3], sizes = [2, 1], strides = [1, 1]} : vector<2x8xf32> to vector<2x1xf32>
    %433 = vector.extract_strided_slice %393 {offsets = [0, 96], sizes = [2, 32], strides = [1, 1]} : vector<2x256xf32> to vector<2x32xf32>
    %434 = vector.broadcast %432 : vector<2x1xf32> to vector<2x32xf32>
    %435 = arith.mulf %434, %433 : vector<2x32xf32>
    %436 = arith.addf %431, %435 : vector<2x32xf32>
    %437 = vector.extract_strided_slice %415 {offsets = [0, 4], sizes = [2, 1], strides = [1, 1]} : vector<2x8xf32> to vector<2x1xf32>
    %438 = vector.extract_strided_slice %393 {offsets = [0, 128], sizes = [2, 32], strides = [1, 1]} : vector<2x256xf32> to vector<2x32xf32>
    %439 = vector.broadcast %437 : vector<2x1xf32> to vector<2x32xf32>
    %440 = arith.mulf %439, %438 : vector<2x32xf32>
    %441 = arith.addf %436, %440 : vector<2x32xf32>
    %442 = vector.extract_strided_slice %415 {offsets = [0, 5], sizes = [2, 1], strides = [1, 1]} : vector<2x8xf32> to vector<2x1xf32>
    %443 = vector.extract_strided_slice %393 {offsets = [0, 160], sizes = [2, 32], strides = [1, 1]} : vector<2x256xf32> to vector<2x32xf32>
    %444 = vector.broadcast %442 : vector<2x1xf32> to vector<2x32xf32>
    %445 = arith.mulf %444, %443 : vector<2x32xf32>
    %446 = arith.addf %441, %445 : vector<2x32xf32>
    %447 = vector.extract_strided_slice %415 {offsets = [0, 6], sizes = [2, 1], strides = [1, 1]} : vector<2x8xf32> to vector<2x1xf32>
    %448 = vector.extract_strided_slice %393 {offsets = [0, 192], sizes = [2, 32], strides = [1, 1]} : vector<2x256xf32> to vector<2x32xf32>
    %449 = vector.broadcast %447 : vector<2x1xf32> to vector<2x32xf32>
    %450 = arith.mulf %449, %448 : vector<2x32xf32>
    %451 = arith.addf %446, %450 : vector<2x32xf32>
    %452 = vector.extract_strided_slice %415 {offsets = [0, 7], sizes = [2, 1], strides = [1, 1]} : vector<2x8xf32> to vector<2x1xf32>
    %453 = vector.extract_strided_slice %393 {offsets = [0, 224], sizes = [2, 32], strides = [1, 1]} : vector<2x256xf32> to vector<2x32xf32>
    %454 = vector.broadcast %452 : vector<2x1xf32> to vector<2x32xf32>
    %455 = arith.mulf %454, %453 : vector<2x32xf32>
    %456 = arith.addf %451, %455 : vector<2x32xf32>
    %457 = arith.truncf %456 : vector<2x32xf32> to vector<2x32xbf16>
    %c0_106 = arith.constant 0 : index
    %c0_107 = arith.constant 0 : index
    %458 = vector.load %arg15[%c0_106, %c0_107] : memref<32x3xbf16, #tpu.memory_space<vmem>>, vector<32x3xbf16>
    %cst_108 = arith.constant dense<0.000000e+00> : vector<2x3xf32>
    %459 = tpu.matmul %457, %458, %cst_108 {dimension_numbers = #tpu.dot_dimension_numbers<[1], [0], [0], [1], [0, 0, 1, 1], [], []>} : vector<2x32xbf16>, vector<32x3xbf16>, vector<2x3xf32> -> vector<2x3xf32>
    %c0_109 = arith.constant 0 : index
    %c0_110 = arith.constant 0 : index
    %460 = vector.load %arg16[%c0_109, %c0_110] : memref<1x3xf32, #tpu.memory_space<vmem>>, vector<1x3xf32>
    %461 = vector.broadcast %460 : vector<1x3xf32> to vector<2x3xf32>
    %462 = arith.addf %459, %461 : vector<2x3xf32>
    %c0_111 = arith.constant 0 : index
    %c0_112 = arith.constant 0 : index
    %463 = vector.load %arg17[%c0_111, %c0_112] : memref<2x3xf32, #tpu.memory_space<vmem>>, vector<2x3xf32>
    tpu.vector_store %arg17[%c0_111, %c0_112], %462 {strides = array<i32>} : memref<2x3xf32, #tpu.memory_space<vmem>>, vector<2x3xf32>,
    %c0_113 = arith.constant 0 : index
    %c0_114 = arith.constant 0 : index
    %464 = vector.load %arg18[%c0_113, %c0_114] : memref<2x8xf32, #tpu.memory_space<vmem>>, vector<2x8xf32>
    tpu.vector_store %arg18[%c0_113, %c0_114], %415 {strides = array<i32>} : memref<2x8xf32, #tpu.memory_space<vmem>>, vector<2x8xf32>,
    return
  }
  func.func @transform_0(%arg0: i32) -> (i32, i32, i32) {
    %c0_i32 = arith.constant 0 : i32
    %c0_i32_0 = arith.constant 0 : i32
    %c0_i32_1 = arith.constant 0 : i32
    return %c0_i32, %arg0, %c0_i32_0 : i32, i32, i32
  }
  func.func @transform_1(%arg0: i32) -> (i32, i32, i32) {
    %c0_i32 = arith.constant 0 : i32
    %c0_i32_0 = arith.constant 0 : i32
    %c0_i32_1 = arith.constant 0 : i32
    return %arg0, %c0_i32, %c0_i32_0 : i32, i32, i32
  }
  func.func @transform_2(%arg0: i32) -> (i32, i32) {
    %c0_i32 = arith.constant 0 : i32
    %c0_i32_0 = arith.constant 0 : i32
    return %arg0, %c0_i32 : i32, i32
  }
  func.func @transform_3(%arg0: i32) -> (i32, i32) {
    %c0_i32 = arith.constant 0 : i32
    %c0_i32_0 = arith.constant 0 : i32
    return %arg0, %c0_i32 : i32, i32
  }
  func.func @transform_4(%arg0: i32) -> (i32, i32) {
    %c0_i32 = arith.constant 0 : i32
    %c0_i32_0 = arith.constant 0 : i32
    %c0_i32_1 = arith.constant 0 : i32
    return %c0_i32, %c0_i32_0 : i32, i32
  }
  func.func @transform_5(%arg0: i32) -> (i32, i32) {
    %c0_i32 = arith.constant 0 : i32
    %c0_i32_0 = arith.constant 0 : i32
    %c0_i32_1 = arith.constant 0 : i32
    return %c0_i32, %c0_i32_0 : i32, i32
  }
  func.func @transform_6(%arg0: i32) -> (i32, i32) {
    %c0_i32 = arith.constant 0 : i32
    %c0_i32_0 = arith.constant 0 : i32
    %c0_i32_1 = arith.constant 0 : i32
    return %c0_i32, %c0_i32_0 : i32, i32
  }
  func.func @transform_7(%arg0: i32) -> (i32, i32) {
    %c0_i32 = arith.constant 0 : i32
    %c0_i32_0 = arith.constant 0 : i32
    %c0_i32_1 = arith.constant 0 : i32
    return %c0_i32, %c0_i32_0 : i32, i32
  }
  func.func @transform_8(%arg0: i32) -> (i32, i32) {
    %c0_i32 = arith.constant 0 : i32
    %c0_i32_0 = arith.constant 0 : i32
    %c0_i32_1 = arith.constant 0 : i32
    return %c0_i32, %c0_i32_0 : i32, i32
  }
  func.func @transform_9(%arg0: i32) -> (i32, i32) {
    %c0_i32 = arith.constant 0 : i32
    %c0_i32_0 = arith.constant 0 : i32
    %c0_i32_1 = arith.constant 0 : i32
    return %c0_i32, %c0_i32_0 : i32, i32
  }
  func.func @transform_10(%arg0: i32) -> (i32, i32) {
    %c0_i32 = arith.constant 0 : i32
    %c0_i32_0 = arith.constant 0 : i32
    %c0_i32_1 = arith.constant 0 : i32
    return %c0_i32, %c0_i32_0 : i32, i32
  }
  func.func @transform_11(%arg0: i32) -> (i32, i32) {
    %c0_i32 = arith.constant 0 : i32
    %c0_i32_0 = arith.constant 0 : i32
    %c0_i32_1 = arith.constant 0 : i32
    return %c0_i32, %c0_i32_0 : i32, i32
  }
  func.func @transform_12(%arg0: i32) -> (i32, i32) {
    %c0_i32 = arith.constant 0 : i32
    %c0_i32_0 = arith.constant 0 : i32
    %c0_i32_1 = arith.constant 0 : i32
    return %c0_i32, %c0_i32_0 : i32, i32
  }
  func.func @transform_13(%arg0: i32) -> (i32, i32) {
    %c0_i32 = arith.constant 0 : i32
    %c0_i32_0 = arith.constant 0 : i32
    %c0_i32_1 = arith.constant 0 : i32
    return %c0_i32, %c0_i32_0 : i32, i32
  }
  func.func @transform_14(%arg0: i32) -> (i32, i32) {
    %c0_i32 = arith.constant 0 : i32
    %c0_i32_0 = arith.constant 0 : i32
    %c0_i32_1 = arith.constant 0 : i32
    return %c0_i32, %c0_i32_0 : i32, i32
  }
  func.func @transform_15(%arg0: i32) -> (i32, i32) {
    %c0_i32 = arith.constant 0 : i32
    %c0_i32_0 = arith.constant 0 : i32
    %c0_i32_1 = arith.constant 0 : i32
    return %c0_i32, %c0_i32_0 : i32, i32
  }
  func.func @transform_16(%arg0: i32) -> (i32, i32) {
    %c0_i32 = arith.constant 0 : i32
    %c0_i32_0 = arith.constant 0 : i32
    return %arg0, %c0_i32 : i32, i32
  }
  func.func @transform_17(%arg0: i32) -> (i32, i32) {
    %c0_i32 = arith.constant 0 : i32
    %c0_i32_0 = arith.constant 0 : i32
    return %arg0, %c0_i32 : i32, i32
  }
}

</mosaic_0001>

<llo_original>
// kernel: tile.9
$region0: #{tile.9}
  %s0 = inlined_call_operand.vmem [shape: f32[8,32], index: 0, kind: input, shape index: {}]
  %s1 = inlined_call_operand.vmem [shape: f32[1,256], index: 1, kind: output, shape index: {}]
  $region1: #{tile.9} parent=0
    #allocation0 [shape = 'u8[8192]{0}', space=vmem, size = 0x2000, scoped, tag = 'scoped mem for output reshape']
    %s2 = smov 3
    %v3 = vld [vmem:[%s0] ss:$4 sm:%s2]
    %vm4 = vcmask 261120
    %5 = vst.msk [vmem:[#allocation0] ss:$8 sm:$0x3] %vm4, %v3
    %s6 = scalar_lea.vmem %s0, 3
    %s7 = smov 3
    %v8 = vld [vmem:[%s6] ss:$4 sm:%s7]
    %9 = vrot.lane.b32.xlu0 %v8, 96
    %v10 = vpop.permute.xlu0 %9
    %vm11 = vcmask 1048320
    %12 = vst.msk [vmem:[#allocation0] ss:$8 sm:$0x3] %vm11, %v10
    %s13 = scalar_lea.vmem %s0, 2
    %s14 = smov 3
    %v15 = vld [vmem:[%s13] ss:$4 sm:%s14]
    %16 = vrot.lane.b32.xlu0 %v15, 64
    %v17 = vpop.permute.xlu0 %16
    %vm18 = vcmask 785920
    %19 = vst.msk [vmem:[#allocation0] ss:$8 sm:$0x3] %vm18, %v17
    %s20 = scalar_lea.vmem %s0, 1
    %s21 = smov 3
    %v22 = vld [vmem:[%s20] ss:$4 sm:%s21]
    %23 = vrot.lane.b32.xlu0 %v22, 32
    %v24 = vpop.permute.xlu0 %23
    %vm25 = vcmask 523520
    %26 = vst.msk [vmem:[#allocation0] ss:$8 sm:$0x3] %vm25, %v24
    %s28 = sshll.u32 1, 1
    %s29 = ssub.s32 %s28, 1
    %v31 = vld [vmem:[#allocation0] sm:%s29]
    %s32 = sshll.u32 1, 1
    %s33 = ssub.s32 %s32, 1
    %34 = vst [vmem:[%s1] sm:%s33] %v31
    %s35 = scalar_lea.vmem [#allocation0], 8
    %v36 = vld [vmem:[%s35] sm:%s29]
    %s37 = sshll.u32 1, 1
    %s38 = ssub.s32 %s37, 1
    %s39 = scalar_lea.vmem %s1, 1
    %40 = vst [vmem:[%s39] sm:%s38] %v36

// kernel: darnn_forward.1
$region0: #{darnn_forward.1}
  #allocation0 [shape = 'u32[]', space=smem, size = 0x4, offset = 0x4, fixed_abs, tag = 'smem constant byte address 0x4 - core index']
  #allocation1 [shape = 'u32[144,128]{1,0:T(1,128)}', space=vmem, size = 0x12000, scoped, tag = 'internal scratch']
  #allocation2 [shape = 'f32[2,256]{1,0:T(2,128)}', space=vmem, size = 0x800, scoped, tag = 'scratch operand']
  #allocation3 [shape = 'f32[1,1]{1,0:T(1,128)S(1)}', space=vmem, size = 0x200, scoped, tag = 'scoped memory for darnn_forward.1']
  #allocation4 [shape = 'f32[1,1]{1,0:T(1,128)S(1)}', space=vmem, size = 0x200, scoped, tag = 'scoped memory for darnn_forward.1']
  %s0 = inlined_call_operand.vmem [shape: f32[8,2,4], index: 0, kind: input, shape index: {}]
  %s1 = inlined_call_operand.vmem [shape: f32[2,4,8], index: 1, kind: input, shape index: {}]
  %s2 = inlined_call_operand.vmem [shape: f32[2,32], index: 2, kind: input, shape index: {}]
  %s3 = inlined_call_operand.vmem [shape: f32[2,32], index: 3, kind: input, shape index: {}]
  %s4 = inlined_call_operand.vmem [shape: bf16[64,8], index: 4, kind: input, shape index: {}]
  %s5 = inlined_call_operand.vmem [shape: f32[1,8], index: 5, kind: input, shape index: {}]
  %s6 = inlined_call_operand.vmem [shape: f32[1,8], index: 6, kind: input, shape index: {}]
  %s7 = inlined_call_operand.<no memory space> [shape: f32[1,1], index: 7, kind: input, shape index: {}]
  %s8 = inlined_call_operand.vmem [shape: bf16[36,128], index: 8, kind: input, shape index: {}]
  %s9 = inlined_call_operand.vmem [shape: f32[1,128], index: 9, kind: input, shape index: {}]
  %s10 = inlined_call_operand.vmem [shape: bf16[256,256], index: 10, kind: input, shape index: {}]
  %s11 = inlined_call_operand.vmem [shape: f32[1,256], index: 11, kind: input, shape index: {}]
  %s12 = inlined_call_operand.vmem [shape: bf16[256,8], index: 12, kind: input, shape index: {}]
  %s13 = inlined_call_operand.<no memory space> [shape: f32[1,1], index: 13, kind: input, shape index: {}]
  %s14 = inlined_call_operand.vmem [shape: bf16[32,3], index: 14, kind: input, shape index: {}]
  %s15 = inlined_call_operand.vmem [shape: f32[1,3], index: 15, kind: input, shape index: {}]
  %s16 = inlined_call_operand.hbm [shape: f32[2,3], index: 16, kind: output, shape index: {0}]
  %s17 = inlined_call_operand.hbm [shape: f32[2,8], index: 17, kind: output, shape index: {1}]
  %18 = xla_tuple %s16, %s17
  %s19 = sld [smem:[#allocation0]]
  $region82: #{darnn_forward.1} parent=0
    _
  %s21 = ssub.s32 1, %s19
  %s22 = scalar_select 0, %s21, %s19
  %v23 = vstv %s7
  %24 = vst [vmem:[#allocation3] sm:$0x1] %v23
  %v25 = vstv %s13
  %26 = vst [vmem:[#allocation4] sm:$0x1] %v25
  $region1: #{darnn_forward.1} parent=0
    #allocation5 [shape = 'u8[1024]{0}', space=vmem, size = 0x400, scoped, tag = 'output window, operand 0, single buffered']
    #allocation6 [shape = 's32[1]{0}', space=sflag, size = 0x4, scoped, tag = 'scoped memory for darnn_forward.1']
    #allocation7 [shape = 'u8[1024]{0}', space=vmem, size = 0x400, scoped, tag = 'output window, operand 1, single buffered']
    #allocation8 [shape = 's32[1]{0}', space=sflag, size = 0x4, scoped, tag = 'scoped memory for darnn_forward.1']
    %27 = vsyncpa [#allocation6], 0
    %28 = vsyncpa [#allocation8], 0
    // Predicated region
    $region2: #{darnn_forward.1} parent=1 // pred_check
      _
    $region3: #{darnn_forward.1} parent=1 // pred_check_branch
      %30 = sbr.rel (0) target = $region5
    $region4: #{darnn_forward.1} parent=1 // pred_region
      _
    $region5: #{darnn_forward.1} parent=1 // pred_fallthru
      _
    // Predicated region
    $region6: #{darnn_forward.1} parent=1 // pred_check
      _
    $region7: #{darnn_forward.1} parent=1 // pred_check_branch
      %32 = sbr.rel (0) target = $region9
    $region8: #{darnn_forward.1} parent=1 // pred_region
      _
    $region9: #{darnn_forward.1} parent=1 // pred_fallthru
      _
    // Predicated region
    $region10: #{darnn_forward.1} parent=1 // pred_check
      _
    $region11: #{darnn_forward.1} parent=1 // pred_check_branch
      %34 = sbr.rel (0) target = $region13
    $region12: #{darnn_forward.1} parent=1 // pred_region
      _
    $region13: #{darnn_forward.1} parent=1 // pred_fallthru
      _
    // Predicated region
    $region14: #{darnn_forward.1} parent=1 // pred_check
      _
    $region15: #{darnn_forward.1} parent=1 // pred_check_branch
      %36 = sbr.rel (0) target = $region17
    $region16: #{darnn_forward.1} parent=1 // pred_region
      _
    $region17: #{darnn_forward.1} parent=1 // pred_fallthru
      _
    // Predicated region
    $region18: #{darnn_forward.1} parent=1 // pred_check
      _
    $region19: #{darnn_forward.1} parent=1 // pred_check_branch
      %38 = sbr.rel (0) target = $region21
    $region20: #{darnn_forward.1} parent=1 // pred_region
      _
    $region21: #{darnn_forward.1} parent=1 // pred_fallthru
      _
    // Predicated region
    $region22: #{darnn_forward.1} parent=1 // pred_check
      _
    $region23: #{darnn_forward.1} parent=1 // pred_check_branch
      %40 = sbr.rel (0) target = $region25
    $region24: #{darnn_forward.1} parent=1 // pred_region
      _
    $region25: #{darnn_forward.1} parent=1 // pred_fallthru
      _
    // Predicated region
    $region26: #{darnn_forward.1} parent=1 // pred_check
      _
    $region27: #{darnn_forward.1} parent=1 // pred_check_branch
      %42 = sbr.rel (0) target = $region29
    $region28: #{darnn_forward.1} parent=1 // pred_region
      _
    $region29: #{darnn_forward.1} parent=1 // pred_fallthru
      _
    // Predicated region
    $region30: #{darnn_forward.1} parent=1 // pred_check
      _
    $region31: #{darnn_forward.1} parent=1 // pred_check_branch
      %44 = sbr.rel (0) target = $region33
    $region32: #{darnn_forward.1} parent=1 // pred_region
      _
    $region33: #{darnn_forward.1} parent=1 // pred_fallthru
      _
    // Predicated region
    $region34: #{darnn_forward.1} parent=1 // pred_check
      _
    $region35: #{darnn_forward.1} parent=1 // pred_check_branch
      %46 = sbr.rel (0) target = $region37
    $region36: #{darnn_forward.1} parent=1 // pred_region
      _
    $region37: #{darnn_forward.1} parent=1 // pred_fallthru
      _
    // Predicated region
    $region38: #{darnn_forward.1} parent=1 // pred_check
      _
    $region39: #{darnn_forward.1} parent=1 // pred_check_branch
      %48 = sbr.rel (0) target = $region41
    $region40: #{darnn_forward.1} parent=1 // pred_region
      _
    $region41: #{darnn_forward.1} parent=1 // pred_fallthru
      _
    // Predicated region
    $region42: #{darnn_forward.1} parent=1 // pred_check
      _
    $region43: #{darnn_forward.1} parent=1 // pred_check_branch
      %50 = sbr.rel (0) target = $region45
    $region44: #{darnn_forward.1} parent=1 // pred_region
      _
    $region45: #{darnn_forward.1} parent=1 // pred_fallthru
      _
    // Predicated region
    $region46: #{darnn_forward.1} parent=1 // pred_check
      _
    $region47: #{darnn_forward.1} parent=1 // pred_check_branch
      %52 = sbr.rel (0) target = $region49
    $region48: #{darnn_forward.1} parent=1 // pred_region
      _
    $region49: #{darnn_forward.1} parent=1 // pred_fallthru
      _
    // Predicated region
    $region50: #{darnn_forward.1} parent=1 // pred_check
      _
    $region51: #{darnn_forward.1} parent=1 // pred_check_branch
      %54 = sbr.rel (0) target = $region53
    $region52: #{darnn_forward.1} parent=1 // pred_region
      _
    $region53: #{darnn_forward.1} parent=1 // pred_fallthru
      _
    // Predicated region
    $region54: #{darnn_forward.1} parent=1 // pred_check
      _
    $region55: #{darnn_forward.1} parent=1 // pred_check_branch
      %56 = sbr.rel (0) target = $region57
    $region56: #{darnn_forward.1} parent=1 // pred_region
      _
    $region57: #{darnn_forward.1} parent=1 // pred_fallthru
      _
    // Predicated region
    $region58: #{darnn_forward.1} parent=1 // pred_check
      _
    $region59: #{darnn_forward.1} parent=1 // pred_check_branch
      %58 = sbr.rel (0) target = $region61
    $region60: #{darnn_forward.1} parent=1 // pred_region
      _
    $region61: #{darnn_forward.1} parent=1 // pred_fallthru
      _
    // Predicated region
    $region62: #{darnn_forward.1} parent=1 // pred_check
      _
    $region63: #{darnn_forward.1} parent=1 // pred_check_branch
      %60 = sbr.rel (0) target = $region65
    $region64: #{darnn_forward.1} parent=1 // pred_region
      _
    $region65: #{darnn_forward.1} parent=1 // pred_fallthru
      _
    %v62 = vld [vmem:[%s1] sm:$0xf]
    %v63 = vld [vmem:[%s1 + $0x4] sm:$0xf]
    %v64 = vld [vmem:[%s4] sm:$0xf]
    %v65 = vld [vmem:[%s4 + $0x4] sm:$0xf]
    %v66 = vld [vmem:[%s4 + $0x8] sm:$0xf]
    %v67 = vld [vmem:[%s4 + $0xc] sm:$0xf]
    %v68 = vld [vmem:[%s4 + $0x10] sm:$0xf]
    %v69 = vld [vmem:[%s4 + $0x14] sm:$0xf]
    %v70 = vld [vmem:[%s4 + $0x18] sm:$0xf]
    %v71 = vld [vmem:[%s4 + $0x1c] sm:$0xf]
    %v72 = vld [vmem:[%s5] sm:$0x1]
    %v73 = vld [vmem:[%s6] sm:$0x1]
    %v74 = vld [vmem:[#allocation3] sm:$0x1]
    %v75 = vld [vmem:[%s8] sm:$0xf]
    %v76 = vld [vmem:[%s8 + $0x4] sm:$0xf]
    %v77 = vld [vmem:[%s8 + $0x8] sm:$0xf]
    %v78 = vld [vmem:[%s8 + $0xc] sm:$0xf]
    %v79 = vld [vmem:[%s8 + $0x10] sm:$0x3]
    %v80 = vld [vmem:[%s9] sm:$0x1]
    %v81 = vld [vmem:[%s2] sm:$0x3]
    %v82 = vld [vmem:[%s3] sm:$0x3]
    %84 = vrot.lane.b32.xlu0 %v82, 32
    %v85 = vpop.permute.xlu0 %84
    %vm87 = vcmask 261120
    %v88 = vsel %vm87, %v81, %v85
    %v89 = vpack.c.bf16 %v88, %v88
    %v91 = vlaneseq
    %v92 = vshrl.u32 %v91, 7
    %v93 = vsub.s32 0, %v92
    %v94 = vrot.slane %v72, %v93
    %v104 = vunpack.c.l.b16 %v64
    %v105 = vunpack.c.l.b16 %v65
    %v106 = vunpack.c.l.b16 %v66
    %v107 = vunpack.c.l.b16 %v67
    %v108 = vunpack.c.l.b16 %v68
    %v109 = vunpack.c.l.b16 %v69
    %v110 = vunpack.c.l.b16 %v70
    %v111 = vunpack.c.l.b16 %v71
    %v112 = vpack.c.b16 %v105, %v104
    %v113 = vpack.c.b16 %v107, %v106
    %v114 = vpack.c.b16 %v109, %v108
    %v115 = vpack.c.b16 %v111, %v110
    %vm120 = vcmask 523264
    %v122 = vsel %vm120, %v89, 0
    %124 = vmatprep.subr.bf16.mxu0 0
    %125 = vmatpush1.bf16.msra.mxu0 0
    %126 = vmatprep.subr.bf16.mxu0 0
    %127 = vmatpush1.bf16.msra.mxu0 0
    %128 = vmatprep.subr.bf16.mxu0 0
    %129 = vmatpush1.bf16.msra.mxu0 0
    %130 = vmatprep.subr.bf16.mxu0 0
    %131 = vmatpush1.bf16.msra.mxu0 0
    %132 = vmatprep.subr.bf16.mxu0 0
    %133 = vmatpush1.bf16.msra.mxu0 %v115
    %134 = vmatprep.subr.bf16.mxu0 0
    %135 = vmatpush1.bf16.msra.mxu0 %v114
    %136 = vmatprep.subr.bf16.mxu0 0
    %137 = vmatpush1.bf16.msra.mxu0 %v113
    %138 = vmatprep.subr.bf16.mxu0 0
    %139 = vmatpush1.bf16.msra.mxu0 %v112
    %140 = vmatprep.subr.bf16.mxu0 0
    %141 = vmatpush2.bf16.msra.mxu0 0
    %142 = vmatprep.subr.bf16.mxu0 0
    %143 = vmatpush2.bf16.msra.mxu0 0
    %144 = vmatprep.subr.bf16.mxu0 0
    %145 = vmatpush2.bf16.msra.mxu0 0
    %146 = vmatprep.subr.bf16.mxu0 0
    %147 = vmatpush2.bf16.msra.mxu0 0
    %148 = vmatprep.subr.bf16.mxu0 0
    %149 = vmatpush2.bf16.msra.mxu0 0
    %150 = vmatprep.subr.bf16.mxu0 0
    %151 = vmatpush2.bf16.msra.mxu0 0
    %152 = vmatprep.subr.bf16.mxu0 0
    %153 = vmatpush2.bf16.msra.mxu0 0
    %154 = vmatprep.subr.bf16.mxu0 0
    %155 = vmatpush2.bf16.msra.mxu0 0
    %156 = vmatprep.mubr.bf16.mxu0 0
    %157 = vmatmul.mubr.bf16.gmra.mxu0 %v122
    %v158 = vpop.f32.mrf.mxu0
    %v159 = vadd.f32 %v94, %v158
    %v160 = vpop.f32.mrf.mxu0
    %v161 = vpop.f32.mrf.mxu0
    %v162 = vpop.f32.mrf.mxu0
    %163 = vdwg.mxu0
    %v166 = vunpack.c.l.s4 1966171168
    %v167 = vunpack.c.0.s8 %v166
    %v168 = vlaneseq
    %v169 = vshrl.u32 %v168, 7
    %v170 = vsub.s32 %v167, %v169
    %v171 = vrot.slane %v159, %v170
    %v172 = vcombine.high %v171, %v171
    %v174 = vunpack.c.l.s4 1966171168
    %v175 = vunpack.c.0.s8 %v174
    %v176 = vlaneseq
    %v177 = vshrl.u32 %v176, 7
    %v178 = vsub.s32 %v175, %v177
    %v179 = vrot.slane %v171, %v178
    %v181 = vunpack.c.l.s4 1966171168
    %v182 = vunpack.c.0.s8 %v181
    %v183 = vlaneseq
    %v184 = vshrl.u32 %v183, 7
    %v185 = vsub.s32 %v182, %v184
    %v186 = vrot.slane %v172, %v185
    %v187 = vlaneseq
    %v188 = vshrl.u32 %v187, 7
    %v189 = vsub.s32 0, %v188
    %v190 = vrot.slane %v179, %v189
    %v191 = vlaneseq
    %v192 = vshrl.u32 %v191, 7
    %v193 = vsub.s32 0, %v192
    %v194 = vrot.slane %v186, %v193
    %v197 = vadd.f32 %v190, %v62
    %v198 = vadd.f32 %v194, %v63
    %v199 = vtanh.pop %v197
    %v200 = vtanh.pop %v198
    %v202 = vlaneseq
    %v203 = vshrl.u32 %v202, 7
    %v204 = vsub.s32 0, %v203
    %v205 = vrot.slane %v73, %v204
    %v207 = vmul.f32 %v199, %v205
    %v208 = vmul.f32 %v200, %v205
    %vm209 = vcmask 60416
    %v210 = vsel %vm209, %v207, 0.0
    %211 = vadd.xlane.f32.xlu0 %v210
    %v212 = vpop.xlane.xlu0 %211
    %v213 = vsel %vm209, %v208, 0.0
    %214 = vadd.xlane.f32.xlu0 %v213
    %v215 = vpop.xlane.xlu0 %214
    %v217 = vlaneseq
    %v218 = vshrl.u32 %v217, 7
    %v219 = vsub.s32 0, %v218
    %v220 = vrot.slane %v74, %v219
    %221 = vset.pattern.permute.xlu0 0
    %222 = vperm.xlu0 %221, %v220
    %v223 = vpop.permute.xlu0 %222
    %v225 = vadd.f32 %v212, %v223
    %v226 = vadd.f32 %v215, %v223
    %v229 = vlaneseq
    %v230 = vand.u32 %v229, 127
    %v231 = vlaneseq
    %v232 = vshrl.u32 %v231, 7
    %v233 = vsub.s32 %v230, %v232
    %v234 = vrot.slane %v225, %v233
    %v235 = vlaneseq
    %v236 = vshrl.u32 %v235, 7
    %v237 = vsub.s32 %v230, %v236
    %v238 = vrot.slane %v226, %v237
    %vm239 = vcmask 1041409
    %v240 = vsel %vm239, %v238, %v234
    %vm242 = vcmask 25600
    %v243 = vsel %vm242, %v240, -inf
    %244 = vmax.xlane.f32.xlu0 %v243
    %v245 = vpop.xlane.xlu0 %244
    %v247 = vlaneseq
    %v248 = vshrl.u32 %v247, 7
    %v249 = vsub.s32 0, %v248
    %v250 = vrot.slane %v245, %v249
    %v251 = vlaneseq
    %v252 = vshrl.u32 %v251, 7
    %v253 = vsub.s32 1, %v252
    %v254 = vrot.slane %v245, %v253
    %v257 = vsub.f32 %v225, %v250
    %v258 = vsub.f32 %v226, %v254
    %v259 = vmul.f32 %v257, 1.442695
    %v260 = vpow.pop %v259
    %v261 = vmul.f32 %v258, 1.442695
    %v262 = vpow.pop %v261
    %265 = vset.pattern.permute.xlu0 0
    %266 = vperm.xlu0 %265, %v260
    %v267 = vpop.permute.xlu0 %266
    %268 = vset.pattern.permute.xlu0 0
    %269 = vperm.xlu0 %268, %v262
    %v270 = vpop.permute.xlu0 %269
    %v271 = vlaneseq
    %v272 = vshrl.u32 %v271, 7
    %v273 = vsub.s32 %v230, %v272
    %v274 = vrot.slane %v267, %v273
    %v275 = vlaneseq
    %v276 = vshrl.u32 %v275, 7
    %v277 = vsub.s32 %v230, %v276
    %v278 = vrot.slane %v270, %v277
    %v279 = vsel %vm239, %v278, %v274
    %v281 = vsel %vm242, %v279, 0.0
    %282 = vadd.xlane.f32.xlu0 %v281
    %v283 = vpop.xlane.xlu0 %282
    %v285 = vlaneseq
    %v286 = vshrl.u32 %v285, 7
    %v287 = vsub.s32 0, %v286
    %v288 = vrot.slane %v283, %v287
    %v289 = vlaneseq
    %v290 = vshrl.u32 %v289, 7
    %v291 = vsub.s32 1, %v290
    %v292 = vrot.slane %v283, %v291
    %v295 = vrcp.pop %v288
    %v296 = vmul.f32 %v260, %v295
    %v297 = vrcp.pop %v292
    %v298 = vmul.f32 %v262, %v297
    %v299 = vld [vmem:[%s0] sm:$0x3]
    %v301 = vlaneseq
    %v302 = vshrl.u32 %v301, 7
    %v303 = vsub.s32 0, %v302
    %v304 = vrot.slane %v299, %v303
    %306 = vbcast.lane.b32.xlu0 %v304, 256
    %v307 = vpop.permute.xlu0 %306
    %v308 = vlaneseq
    %v309 = vshrl.u32 %v308, 7
    %v310 = vsub.s32 1, %v309
    %v311 = vrot.slane %v299, %v310
    %313 = vbcast.lane.b32.xlu0 %v311, 256
    %v314 = vpop.permute.xlu0 %313
    %v317 = vmul.f32 %v296, %v307
    %v318 = vmul.f32 %v298, %v314
    %321 = vset.pattern.permute.xlu0 0
    %322 = vperm.xlu0 %321, %v317
    %v323 = vpop.permute.xlu0 %322
    %324 = vset.pattern.permute.xlu0 0
    %325 = vperm.xlu0 %324, %v318
    %v326 = vpop.permute.xlu0 %325
    %v327 = vlaneseq
    %v328 = vshrl.u32 %v327, 7
    %v329 = vsub.s32 %v230, %v328
    %v330 = vrot.slane %v323, %v329
    %v331 = vlaneseq
    %v332 = vshrl.u32 %v331, 7
    %v333 = vsub.s32 %v230, %v332
    %v334 = vrot.slane %v326, %v333
    %v335 = vsel %vm239, %v334, %v330
    %338 = vrot.lane.b32.xlu0 %v81, 4
    %v339 = vpop.permute.xlu0 %338
    %vm341 = vcmask 31744
    %v342 = vsel %vm341, %v335, %v339
    %v343 = vpack.c.bf16 %v342, %v342
    %v345 = vlaneseq
    %v346 = vshrl.u32 %v345, 7
    %v347 = vsub.s32 0, %v346
    %v348 = vrot.slane %v80, %v347
    %v355 = vunpack.c.l.b16 %v75
    %v356 = vunpack.c.l.b16 %v76
    %v357 = vunpack.c.l.b16 %v77
    %v358 = vunpack.c.l.b16 %v78
    %v359 = vunpack.c.l.b16 %v79
    %v360 = vpack.c.b16 %v356, %v355
    %v361 = vpack.c.b16 %v358, %v357
    %v362 = vpack.c.b16 %v359, %v359
    %vm365 = vcmask 293888
    %v367 = vsel %vm365, %v343, 0
    %vm369 = vcmask 1041408
    %v371 = vsel %vm369, %v362, 0
    %373 = vmatprep.subr.bf16.mxu0 0
    %374 = vmatpush1.bf16.msra.mxu0 0
    %375 = vmatprep.subr.bf16.mxu0 0
    %376 = vmatpush1.bf16.msra.mxu0 0
    %377 = vmatprep.subr.bf16.mxu0 0
    %378 = vmatpush1.bf16.msra.mxu0 0
    %379 = vmatprep.subr.bf16.mxu0 0
    %380 = vmatpush1.bf16.msra.mxu0 0
    %381 = vmatprep.subr.bf16.mxu0 0
    %382 = vmatpush1.bf16.msra.mxu0 0
    %383 = vmatprep.subr.bf16.mxu0 0
    %384 = vmatpush1.bf16.msra.mxu0 %v371
    %385 = vmatprep.subr.bf16.mxu0 0
    %386 = vmatpush1.bf16.msra.mxu0 %v361
    %387 = vmatprep.subr.bf16.mxu0 0
    %388 = vmatpush1.bf16.msra.mxu0 %v360
    %389 = vmatprep.subr.bf16.mxu0 0
    %390 = vmatpush2.bf16.msra.mxu0 0
    %391 = vmatprep.subr.bf16.mxu0 0
    %392 = vmatpush2.bf16.msra.mxu0 0
    %393 = vmatprep.subr.bf16.mxu0 0
    %394 = vmatpush2.bf16.msra.mxu0 0
    %395 = vmatprep.subr.bf16.mxu0 0
    %396 = vmatpush2.bf16.msra.mxu0 0
    %397 = vmatprep.subr.bf16.mxu0 0
    %398 = vmatpush2.bf16.msra.mxu0 0
    %399 = vmatprep.subr.bf16.mxu0 0
    %400 = vmatpush2.bf16.msra.mxu0 0
    %401 = vmatprep.subr.bf16.mxu0 0
    %402 = vmatpush2.bf16.msra.mxu0 0
    %403 = vmatprep.subr.bf16.mxu0 0
    %404 = vmatpush2.bf16.msra.mxu0 0
    %405 = vmatprep.mubr.bf16.mxu0 0
    %406 = vmatmul.mubr.bf16.gmra.mxu0 %v367
    %v407 = vpop.f32.mrf.mxu0
    %v408 = vadd.f32 %v348, %v407
    %v409 = vpop.f32.mrf.mxu0
    %v410 = vpop.f32.mrf.mxu0
    %v411 = vpop.f32.mrf.mxu0
    %412 = vdwg.mxu0
    %v413 = vxor.u32 %v408, 2147483648
    %v414 = vmul.f32 %v413, 1.442695
    %v415 = vpow.pop %v414
    %v416 = vadd.f32 %v415, 1.0
    %v417 = vrcp.pop %v416
    %v418 = vmul.f32 1.0, %v417
    %v419 = vtanh.pop %v408
    %v420 = vmul.f32 %v418, %v85
    %422 = vrot.lane.b32.xlu0 %v419, 64
    %v423 = vpop.permute.xlu0 %422
    %v425 = vmul.f32 %v418, %v423
    %427 = vrot.lane.b32.xlu0 %v425, 32
    %v428 = vpop.permute.xlu0 %427
    %v430 = vadd.f32 %v420, %v428
    %v431 = vtanh.pop %v430
    %433 = vrot.lane.b32.xlu0 %v431, 64
    %v434 = vpop.permute.xlu0 %433
    %v436 = vmul.f32 %v418, %v434
    %v439 = vunpack.c.l.s4 1983009808
    %v440 = vunpack.c.0.s8 %v439
    %v441 = vlaneseq
    %v442 = vshrl.u32 %v441, 7
    %v443 = vsub.s32 %v440, %v442
    %v444 = vrot.slane %v436, %v443
    %445 = vrot.lane.b32.xlu0 %v444, 32
    %v446 = vpop.permute.xlu0 %445
    %vm448 = vcmask 254976
    %449 = vst.msk [vmem:[#allocation2] sm:$0x3] %vm448, %v446
    %450 = vrot.lane.b32.xlu0 %v436, 32
    %v451 = vpop.permute.xlu0 %450
    %v453 = vsel %vm87, %v451, %v430
    %v454 = vpack.c.bf16 %v453, %v453
    %v456 = vsel %vm120, %v454, 0
    %458 = vmatprep.subr.bf16.mxu0 0
    %459 = vmatpush1.bf16.msra.mxu0 0
    %460 = vmatprep.subr.bf16.mxu0 0
    %461 = vmatpush1.bf16.msra.mxu0 0
    %462 = vmatprep.subr.bf16.mxu0 0
    %463 = vmatpush1.bf16.msra.mxu0 0
    %464 = vmatprep.subr.bf16.mxu0 0
    %465 = vmatpush1.bf16.msra.mxu0 0
    %466 = vmatprep.subr.bf16.mxu0 0
    %467 = vmatpush1.bf16.msra.mxu0 %v115
    %468 = vmatprep.subr.bf16.mxu0 0
    %469 = vmatpush1.bf16.msra.mxu0 %v114
    %470 = vmatprep.subr.bf16.mxu0 0
    %471 = vmatpush1.bf16.msra.mxu0 %v113
    %472 = vmatprep.subr.bf16.mxu0 0
    %473 = vmatpush1.bf16.msra.mxu0 %v112
    %474 = vmatprep.subr.bf16.mxu0 0
    %475 = vmatpush2.bf16.msra.mxu0 0
    %476 = vmatprep.subr.bf16.mxu0 0
    %477 = vmatpush2.bf16.msra.mxu0 0
    %478 = vmatprep.subr.bf16.mxu0 0
    %479 = vmatpush2.bf16.msra.mxu0 0
    %480 = vmatprep.subr.bf16.mxu0 0
    %481 = vmatpush2.bf16.msra.mxu0 0
    %482 = vmatprep.subr.bf16.mxu0 0
    %483 = vmatpush2.bf16.msra.mxu0 0
    %484 = vmatprep.subr.bf16.mxu0 0
    %485 = vmatpush2.bf16.msra.mxu0 0
    %486 = vmatprep.subr.bf16.mxu0 0
    %487 = vmatpush2.bf16.msra.mxu0 0
    %488 = vmatprep.subr.bf16.mxu0 0
    %489 = vmatpush2.bf16.msra.mxu0 0
    %490 = vmatprep.mubr.bf16.mxu0 0
    %491 = vmatmul.mubr.bf16.gmra.mxu0 %v456
    %v492 = vpop.f32.mrf.mxu0
    %v493 = vadd.f32 %v94, %v492
    %v494 = vpop.f32.mrf.mxu0
    %v495 = vpop.f32.mrf.mxu0
    %v496 = vpop.f32.mrf.mxu0
    %497 = vdwg.mxu0
    %v500 = vunpack.c.l.s4 1966171168
    %v501 = vunpack.c.0.s8 %v500
    %v502 = vlaneseq
    %v503 = vshrl.u32 %v502, 7
    %v504 = vsub.s32 %v501, %v503
    %v505 = vrot.slane %v493, %v504
    %v506 = vcombine.high %v505, %v505
    %v508 = vunpack.c.l.s4 1966171168
    %v509 = vunpack.c.0.s8 %v508
    %v510 = vlaneseq
    %v511 = vshrl.u32 %v510, 7
    %v512 = vsub.s32 %v509, %v511
    %v513 = vrot.slane %v505, %v512
    %v515 = vunpack.c.l.s4 1966171168
    %v516 = vunpack.c.0.s8 %v515
    %v517 = vlaneseq
    %v518 = vshrl.u32 %v517, 7
    %v519 = vsub.s32 %v516, %v518
    %v520 = vrot.slane %v506, %v519
    %v521 = vlaneseq
    %v522 = vshrl.u32 %v521, 7
    %v523 = vsub.s32 0, %v522
    %v524 = vrot.slane %v513, %v523
    %v525 = vlaneseq
    %v526 = vshrl.u32 %v525, 7
    %v527 = vsub.s32 0, %v526
    %v528 = vrot.slane %v520, %v527
    %v531 = vadd.f32 %v524, %v62
    %v532 = vadd.f32 %v528, %v63
    %v533 = vtanh.pop %v531
    %v534 = vtanh.pop %v532
    %v535 = vmul.f32 %v533, %v205
    %v536 = vmul.f32 %v534, %v205
    %v537 = vsel %vm209, %v535, 0.0
    %538 = vadd.xlane.f32.xlu0 %v537
    %v539 = vpop.xlane.xlu0 %538
    %v540 = vsel %vm209, %v536, 0.0
    %541 = vadd.xlane.f32.xlu0 %v540
    %v542 = vpop.xlane.xlu0 %541
    %v543 = vadd.f32 %v539, %v223
    %v544 = vadd.f32 %v542, %v223
    %v547 = vlaneseq
    %v548 = vshrl.u32 %v547, 7
    %v549 = vsub.s32 %v230, %v548
    %v550 = vrot.slane %v543, %v549
    %v551 = vlaneseq
    %v552 = vshrl.u32 %v551, 7
    %v553 = vsub.s32 %v230, %v552
    %v554 = vrot.slane %v544, %v553
    %v555 = vsel %vm239, %v554, %v550
    %v557 = vsel %vm242, %v555, -inf
    %558 = vmax.xlane.f32.xlu0 %v557
    %v559 = vpop.xlane.xlu0 %558
    %v561 = vlaneseq
    %v562 = vshrl.u32 %v561, 7
    %v563 = vsub.s32 0, %v562
    %v564 = vrot.slane %v559, %v563
    %v565 = vlaneseq
    %v566 = vshrl.u32 %v565, 7
    %v567 = vsub.s32 1, %v566
    %v568 = vrot.slane %v559, %v567
    %v571 = vsub.f32 %v543, %v564
    %v572 = vsub.f32 %v544, %v568
    %v573 = vmul.f32 %v571, 1.442695
    %v574 = vpow.pop %v573
    %v575 = vmul.f32 %v572, 1.442695
    %v576 = vpow.pop %v575
    %579 = vset.pattern.permute.xlu0 0
    %580 = vperm.xlu0 %579, %v574
    %v581 = vpop.permute.xlu0 %580
    %582 = vset.pattern.permute.xlu0 0
    %583 = vperm.xlu0 %582, %v576
    %v584 = vpop.permute.xlu0 %583
    %v585 = vlaneseq
    %v586 = vshrl.u32 %v585, 7
    %v587 = vsub.s32 %v230, %v586
    %v588 = vrot.slane %v581, %v587
    %v589 = vlaneseq
    %v590 = vshrl.u32 %v589, 7
    %v591 = vsub.s32 %v230, %v590
    %v592 = vrot.slane %v584, %v591
    %v593 = vsel %vm239, %v592, %v588
    %v595 = vsel %vm242, %v593, 0.0
    %596 = vadd.xlane.f32.xlu0 %v595
    %v597 = vpop.xlane.xlu0 %596
    %v599 = vlaneseq
    %v600 = vshrl.u32 %v599, 7
    %v601 = vsub.s32 0, %v600
    %v602 = vrot.slane %v597, %v601
    %v603 = vlaneseq
    %v604 = vshrl.u32 %v603, 7
    %v605 = vsub.s32 1, %v604
    %v606 = vrot.slane %v597, %v605
    %v609 = vrcp.pop %v602
    %v610 = vmul.f32 %v574, %v609
    %v611 = vrcp.pop %v606
    %v612 = vmul.f32 %v576, %v611
    %s613 = scalar_lea.vmem %s0, 2
    %v614 = vld [vmem:[%s613] sm:$0x3]
    %v616 = vlaneseq
    %v617 = vshrl.u32 %v616, 7
    %v618 = vsub.s32 0, %v617
    %v619 = vrot.slane %v614, %v618
    %621 = vbcast.lane.b32.xlu0 %v619, 256
    %v622 = vpop.permute.xlu0 %621
    %v623 = vlaneseq
    %v624 = vshrl.u32 %v623, 7
    %v625 = vsub.s32 1, %v624
    %v626 = vrot.slane %v614, %v625
    %628 = vbcast.lane.b32.xlu0 %v626, 256
    %v629 = vpop.permute.xlu0 %628
    %v632 = vmul.f32 %v610, %v622
    %v633 = vmul.f32 %v612, %v629
    %636 = vset.pattern.permute.xlu0 0
    %637 = vperm.xlu0 %636, %v632
    %v638 = vpop.permute.xlu0 %637
    %639 = vset.pattern.permute.xlu0 0
    %640 = vperm.xlu0 %639, %v633
    %v641 = vpop.permute.xlu0 %640
    %v642 = vlaneseq
    %v643 = vshrl.u32 %v642, 7
    %v644 = vsub.s32 %v230, %v643
    %v645 = vrot.slane %v638, %v644
    %v646 = vlaneseq
    %v647 = vshrl.u32 %v646, 7
    %v648 = vsub.s32 %v230, %v647
    %v649 = vrot.slane %v641, %v648
    %v650 = vsel %vm239, %v649, %v645
    %652 = vrot.lane.b32.xlu0 %v436, 36
    %v653 = vpop.permute.xlu0 %652
    %v655 = vsel %vm341, %v650, %v653
    %v656 = vpack.c.bf16 %v655, %v655
    %v658 = vsel %vm365, %v656, 0
    %660 = vmatprep.subr.bf16.mxu0 0
    %661 = vmatpush1.bf16.msra.mxu0 0
    %662 = vmatprep.subr.bf16.mxu0 0
    %663 = vmatpush1.bf16.msra.mxu0 0
    %664 = vmatprep.subr.bf16.mxu0 0
    %665 = vmatpush1.bf16.msra.mxu0 0
    %666 = vmatprep.subr.bf16.mxu0 0
    %667 = vmatpush1.bf16.msra.mxu0 0
    %668 = vmatprep.subr.bf16.mxu0 0
    %669 = vmatpush1.bf16.msra.mxu0 0
    %670 = vmatprep.subr.bf16.mxu0 0
    %671 = vmatpush1.bf16.msra.mxu0 %v371
    %672 = vmatprep.subr.bf16.mxu0 0
    %673 = vmatpush1.bf16.msra.mxu0 %v361
    %674 = vmatprep.subr.bf16.mxu0 0
    %675 = vmatpush1.bf16.msra.mxu0 %v360
    %676 = vmatprep.subr.bf16.mxu0 0
    %677 = vmatpush2.bf16.msra.mxu0 0
    %678 = vmatprep.subr.bf16.mxu0 0
    %679 = vmatpush2.bf16.msra.mxu0 0
    %680 = vmatprep.subr.bf16.mxu0 0
    %681 = vmatpush2.bf16.msra.mxu0 0
    %682 = vmatprep.subr.bf16.mxu0 0
    %683 = vmatpush2.bf16.msra.mxu0 0
    %684 = vmatprep.subr.bf16.mxu0 0
    %685 = vmatpush2.bf16.msra.mxu0 0
    %686 = vmatprep.subr.bf16.mxu0 0
    %687 = vmatpush2.bf16.msra.mxu0 0
    %688 = vmatprep.subr.bf16.mxu0 0
    %689 = vmatpush2.bf16.msra.mxu0 0
    %690 = vmatprep.subr.bf16.mxu0 0
    %691 = vmatpush2.bf16.msra.mxu0 0
    %692 = vmatprep.mubr.bf16.mxu0 0
    %693 = vmatmul.mubr.bf16.gmra.mxu0 %v658
    %v694 = vpop.f32.mrf.mxu0
    %v695 = vadd.f32 %v348, %v694
    %v696 = vpop.f32.mrf.mxu0
    %v697 = vpop.f32.mrf.mxu0
    %v698 = vpop.f32.mrf.mxu0
    %699 = vdwg.mxu0
    %v700 = vxor.u32 %v695, 2147483648
    %v701 = vmul.f32 %v700, 1.442695
    %v702 = vpow.pop %v701
    %v703 = vadd.f32 %v702, 1.0
    %v704 = vrcp.pop %v703
    %v705 = vmul.f32 1.0, %v704
    %v706 = vtanh.pop %v695
    %v707 = vmul.f32 %v705, %v430
    %709 = vrot.lane.b32.xlu0 %v706, 64
    %v710 = vpop.permute.xlu0 %709
    %v712 = vmul.f32 %v705, %v710
    %714 = vrot.lane.b32.xlu0 %v712, 32
    %v715 = vpop.permute.xlu0 %714
    %v717 = vadd.f32 %v707, %v715
    %v718 = vtanh.pop %v717
    %720 = vrot.lane.b32.xlu0 %v718, 64
    %v721 = vpop.permute.xlu0 %720
    %v723 = vmul.f32 %v705, %v721
    %v726 = vunpack.c.l.s4 1983009808
    %v727 = vunpack.c.0.s8 %v726
    %v728 = vlaneseq
    %v729 = vshrl.u32 %v728, 7
    %v730 = vsub.s32 %v727, %v729
    %v731 = vrot.slane %v723, %v730
    %732 = vrot.lane.b32.xlu0 %v731, 64
    %v733 = vpop.permute.xlu0 %732
    %vm735 = vcmask 517376
    %736 = vst.msk [vmem:[#allocation2] sm:$0x3] %vm735, %v733
    %737 = vrot.lane.b32.xlu0 %v723, 32
    %v738 = vpop.permute.xlu0 %737
    %v740 = vsel %vm87, %v738, %v717
    %v741 = vpack.c.bf16 %v740, %v740
    %v743 = vsel %vm120, %v741, 0
    %745 = vmatprep.subr.bf16.mxu0 0
    %746 = vmatpush1.bf16.msra.mxu0 0
    %747 = vmatprep.subr.bf16.mxu0 0
    %748 = vmatpush1.bf16.msra.mxu0 0
    %749 = vmatprep.subr.bf16.mxu0 0
    %750 = vmatpush1.bf16.msra.mxu0 0
    %751 = vmatprep.subr.bf16.mxu0 0
    %752 = vmatpush1.bf16.msra.mxu0 0
    %753 = vmatprep.subr.bf16.mxu0 0
    %754 = vmatpush1.bf16.msra.mxu0 %v115
    %755 = vmatprep.subr.bf16.mxu0 0
    %756 = vmatpush1.bf16.msra.mxu0 %v114
    %757 = vmatprep.subr.bf16.mxu0 0
    %758 = vmatpush1.bf16.msra.mxu0 %v113
    %759 = vmatprep.subr.bf16.mxu0 0
    %760 = vmatpush1.bf16.msra.mxu0 %v112
    %761 = vmatprep.subr.bf16.mxu0 0
    %762 = vmatpush2.bf16.msra.mxu0 0
    %763 = vmatprep.subr.bf16.mxu0 0
    %764 = vmatpush2.bf16.msra.mxu0 0
    %765 = vmatprep.subr.bf16.mxu0 0
    %766 = vmatpush2.bf16.msra.mxu0 0
    %767 = vmatprep.subr.bf16.mxu0 0
    %768 = vmatpush2.bf16.msra.mxu0 0
    %769 = vmatprep.subr.bf16.mxu0 0
    %770 = vmatpush2.bf16.msra.mxu0 0
    %771 = vmatprep.subr.bf16.mxu0 0
    %772 = vmatpush2.bf16.msra.mxu0 0
    %773 = vmatprep.subr.bf16.mxu0 0
    %774 = vmatpush2.bf16.msra.mxu0 0
    %775 = vmatprep.subr.bf16.mxu0 0
    %776 = vmatpush2.bf16.msra.mxu0 0
    %777 = vmatprep.mubr.bf16.mxu0 0
    %778 = vmatmul.mubr.bf16.gmra.mxu0 %v743
    %v779 = vpop.f32.mrf.mxu0
    %v780 = vadd.f32 %v94, %v779
    %v781 = vpop.f32.mrf.mxu0
    %v782 = vpop.f32.mrf.mxu0
    %v783 = vpop.f32.mrf.mxu0
    %784 = vdwg.mxu0
    %v787 = vunpack.c.l.s4 1966171168
    %v788 = vunpack.c.0.s8 %v787
    %v789 = vlaneseq
    %v790 = vshrl.u32 %v789, 7
    %v791 = vsub.s32 %v788, %v790
    %v792 = vrot.slane %v780, %v791
    %v793 = vcombine.high %v792, %v792
    %v795 = vunpack.c.l.s4 1966171168
    %v796 = vunpack.c.0.s8 %v795
    %v797 = vlaneseq
    %v798 = vshrl.u32 %v797, 7
    %v799 = vsub.s32 %v796, %v798
    %v800 = vrot.slane %v792, %v799
    %v802 = vunpack.c.l.s4 1966171168
    %v803 = vunpack.c.0.s8 %v802
    %v804 = vlaneseq
    %v805 = vshrl.u32 %v804, 7
    %v806 = vsub.s32 %v803, %v805
    %v807 = vrot.slane %v793, %v806
    %v808 = vlaneseq
    %v809 = vshrl.u32 %v808, 7
    %v810 = vsub.s32 0, %v809
    %v811 = vrot.slane %v800, %v810
    %v812 = vlaneseq
    %v813 = vshrl.u32 %v812, 7
    %v814 = vsub.s32 0, %v813
    %v815 = vrot.slane %v807, %v814
    %v818 = vadd.f32 %v811, %v62
    %v819 = vadd.f32 %v815, %v63
    %v820 = vtanh.pop %v818
    %v821 = vtanh.pop %v819
    %v822 = vmul.f32 %v820, %v205
    %v823 = vmul.f32 %v821, %v205
    %v824 = vsel %vm209, %v822, 0.0
    %825 = vadd.xlane.f32.xlu0 %v824
    %v826 = vpop.xlane.xlu0 %825
    %v827 = vsel %vm209, %v823, 0.0
    %828 = vadd.xlane.f32.xlu0 %v827
    %v829 = vpop.xlane.xlu0 %828
    %v830 = vadd.f32 %v826, %v223
    %v831 = vadd.f32 %v829, %v223
    %v834 = vlaneseq
    %v835 = vshrl.u32 %v834, 7
    %v836 = vsub.s32 %v230, %v835
    %v837 = vrot.slane %v830, %v836
    %v838 = vlaneseq
    %v839 = vshrl.u32 %v838, 7
    %v840 = vsub.s32 %v230, %v839
    %v841 = vrot.slane %v831, %v840
    %v842 = vsel %vm239, %v841, %v837
    %v844 = vsel %vm242, %v842, -inf
    %845 = vmax.xlane.f32.xlu0 %v844
    %v846 = vpop.xlane.xlu0 %845
    %v848 = vlaneseq
    %v849 = vshrl.u32 %v848, 7
    %v850 = vsub.s32 0, %v849
    %v851 = vrot.slane %v846, %v850
    %v852 = vlaneseq
    %v853 = vshrl.u32 %v852, 7
    %v854 = vsub.s32 1, %v853
    %v855 = vrot.slane %v846, %v854
    %v858 = vsub.f32 %v830, %v851
    %v859 = vsub.f32 %v831, %v855
    %v860 = vmul.f32 %v858, 1.442695
    %v861 = vpow.pop %v860
    %v862 = vmul.f32 %v859, 1.442695
    %v863 = vpow.pop %v862
    %866 = vset.pattern.permute.xlu0 0
    %867 = vperm.xlu0 %866, %v861
    %v868 = vpop.permute.xlu0 %867
    %869 = vset.pattern.permute.xlu0 0
    %870 = vperm.xlu0 %869, %v863
    %v871 = vpop.permute.xlu0 %870
    %v872 = vlaneseq
    %v873 = vshrl.u32 %v872, 7
    %v874 = vsub.s32 %v230, %v873
    %v875 = vrot.slane %v868, %v874
    %v876 = vlaneseq
    %v877 = vshrl.u32 %v876, 7
    %v878 = vsub.s32 %v230, %v877
    %v879 = vrot.slane %v871, %v878
    %v880 = vsel %vm239, %v879, %v875
    %v882 = vsel %vm242, %v880, 0.0
    %883 = vadd.xlane.f32.xlu0 %v882
    %v884 = vpop.xlane.xlu0 %883
    %v886 = vlaneseq
    %v887 = vshrl.u32 %v886, 7
    %v888 = vsub.s32 0, %v887
    %v889 = vrot.slane %v884, %v888
    %v890 = vlaneseq
    %v891 = vshrl.u32 %v890, 7
    %v892 = vsub.s32 1, %v891
    %v893 = vrot.slane %v884, %v892
    %v896 = vrcp.pop %v889
    %v897 = vmul.f32 %v861, %v896
    %v898 = vrcp.pop %v893
    %v899 = vmul.f32 %v863, %v898
    %s900 = scalar_lea.vmem %s0, 4
    %v901 = vld [vmem:[%s900] sm:$0x3]
    %v903 = vlaneseq
    %v904 = vshrl.u32 %v903, 7
    %v905 = vsub.s32 0, %v904
    %v906 = vrot.slane %v901, %v905
    %908 = vbcast.lane.b32.xlu0 %v906, 256
    %v909 = vpop.permute.xlu0 %908
    %v910 = vlaneseq
    %v911 = vshrl.u32 %v910, 7
    %v912 = vsub.s32 1, %v911
    %v913 = vrot.slane %v901, %v912
    %915 = vbcast.lane.b32.xlu0 %v913, 256
    %v916 = vpop.permute.xlu0 %915
    %v919 = vmul.f32 %v897, %v909
    %v920 = vmul.f32 %v899, %v916
    %923 = vset.pattern.permute.xlu0 0
    %924 = vperm.xlu0 %923, %v919
    %v925 = vpop.permute.xlu0 %924
    %926 = vset.pattern.permute.xlu0 0
    %927 = vperm.xlu0 %926, %v920
    %v928 = vpop.permute.xlu0 %927
    %v929 = vlaneseq
    %v930 = vshrl.u32 %v929, 7
    %v931 = vsub.s32 %v230, %v930
    %v932 = vrot.slane %v925, %v931
    %v933 = vlaneseq
    %v934 = vshrl.u32 %v933, 7
    %v935 = vsub.s32 %v230, %v934
    %v936 = vrot.slane %v928, %v935
    %v937 = vsel %vm239, %v936, %v932
    %939 = vrot.lane.b32.xlu0 %v723, 36
    %v940 = vpop.permute.xlu0 %939
    %v942 = vsel %vm341, %v937, %v940
    %v943 = vpack.c.bf16 %v942, %v942
    %v945 = vsel %vm365, %v943, 0
    %947 = vmatprep.subr.bf16.mxu0 0
    %948 = vmatpush1.bf16.msra.mxu0 0
    %949 = vmatprep.subr.bf16.mxu0 0
    %950 = vmatpush1.bf16.msra.mxu0 0
    %951 = vmatprep.subr.bf16.mxu0 0
    %952 = vmatpush1.bf16.msra.mxu0 0
    %953 = vmatprep.subr.bf16.mxu0 0
    %954 = vmatpush1.bf16.msra.mxu0 0
    %955 = vmatprep.subr.bf16.mxu0 0
    %956 = vmatpush1.bf16.msra.mxu0 0
    %957 = vmatprep.subr.bf16.mxu0 0
    %958 = vmatpush1.bf16.msra.mxu0 %v371
    %959 = vmatprep.subr.bf16.mxu0 0
    %960 = vmatpush1.bf16.msra.mxu0 %v361
    %961 = vmatprep.subr.bf16.mxu0 0
    %962 = vmatpush1.bf16.msra.mxu0 %v360
    %963 = vmatprep.subr.bf16.mxu0 0
    %964 = vmatpush2.bf16.msra.mxu0 0
    %965 = vmatprep.subr.bf16.mxu0 0
    %966 = vmatpush2.bf16.msra.mxu0 0
    %967 = vmatprep.subr.bf16.mxu0 0
    %968 = vmatpush2.bf16.msra.mxu0 0
    %969 = vmatprep.subr.bf16.mxu0 0
    %970 = vmatpush2.bf16.msra.mxu0 0
    %971 = vmatprep.subr.bf16.mxu0 0
    %972 = vmatpush2.bf16.msra.mxu0 0
    %973 = vmatprep.subr.bf16.mxu0 0
    %974 = vmatpush2.bf16.msra.mxu0 0
    %975 = vmatprep.subr.bf16.mxu0 0
    %976 = vmatpush2.bf16.msra.mxu0 0
    %977 = vmatprep.subr.bf16.mxu0 0
    %978 = vmatpush2.bf16.msra.mxu0 0
    %979 = vmatprep.mubr.bf16.mxu0 0
    %980 = vmatmul.mubr.bf16.gmra.mxu0 %v945
    %v981 = vpop.f32.mrf.mxu0
    %v982 = vadd.f32 %v348, %v981
    %v983 = vpop.f32.mrf.mxu0
    %v984 = vpop.f32.mrf.mxu0
    %v985 = vpop.f32.mrf.mxu0
    %986 = vdwg.mxu0
    %v987 = vxor.u32 %v982, 2147483648
    %v988 = vmul.f32 %v987, 1.442695
    %v989 = vpow.pop %v988
    %v990 = vadd.f32 %v989, 1.0
    %v991 = vrcp.pop %v990
    %v992 = vmul.f32 1.0, %v991
    %v993 = vtanh.pop %v982
    %v994 = vmul.f32 %v992, %v717
    %996 = vrot.lane.b32.xlu0 %v993, 64
    %v997 = vpop.permute.xlu0 %996
    %v999 = vmul.f32 %v992, %v997
    %1001 = vrot.lane.b32.xlu0 %v999, 32
    %v1002 = vpop.permute.xlu0 %1001
    %v1004 = vadd.f32 %v994, %v1002
    %v1005 = vtanh.pop %v1004
    %1007 = vrot.lane.b32.xlu0 %v1005, 64
    %v1008 = vpop.permute.xlu0 %1007
    %v1010 = vmul.f32 %v992, %v1008
    %v1013 = vunpack.c.l.s4 1983009808
    %v1014 = vunpack.c.0.s8 %v1013
    %v1015 = vlaneseq
    %v1016 = vshrl.u32 %v1015, 7
    %v1017 = vsub.s32 %v1014, %v1016
    %v1018 = vrot.slane %v1010, %v1017
    %1019 = vrot.lane.b32.xlu0 %v1018, 96
    %v1020 = vpop.permute.xlu0 %1019
    %vm1022 = vcmask 779776
    %1023 = vst.msk [vmem:[#allocation2] sm:$0x3] %vm1022, %v1020
    %1024 = vrot.lane.b32.xlu0 %v1010, 32
    %v1025 = vpop.permute.xlu0 %1024
    %v1027 = vsel %vm87, %v1025, %v1004
    %v1028 = vpack.c.bf16 %v1027, %v1027
    %v1030 = vsel %vm120, %v1028, 0
    %1032 = vmatprep.subr.bf16.mxu0 0
    %1033 = vmatpush1.bf16.msra.mxu0 0
    %1034 = vmatprep.subr.bf16.mxu0 0
    %1035 = vmatpush1.bf16.msra.mxu0 0
    %1036 = vmatprep.subr.bf16.mxu0 0
    %1037 = vmatpush1.bf16.msra.mxu0 0
    %1038 = vmatprep.subr.bf16.mxu0 0
    %1039 = vmatpush1.bf16.msra.mxu0 0
    %1040 = vmatprep.subr.bf16.mxu0 0
    %1041 = vmatpush1.bf16.msra.mxu0 %v115
    %1042 = vmatprep.subr.bf16.mxu0 0
    %1043 = vmatpush1.bf16.msra.mxu0 %v114
    %1044 = vmatprep.subr.bf16.mxu0 0
    %1045 = vmatpush1.bf16.msra.mxu0 %v113
    %1046 = vmatprep.subr.bf16.mxu0 0
    %1047 = vmatpush1.bf16.msra.mxu0 %v112
    %1048 = vmatprep.subr.bf16.mxu0 0
    %1049 = vmatpush2.bf16.msra.mxu0 0
    %1050 = vmatprep.subr.bf16.mxu0 0
    %1051 = vmatpush2.bf16.msra.mxu0 0
    %1052 = vmatprep.subr.bf16.mxu0 0
    %1053 = vmatpush2.bf16.msra.mxu0 0
    %1054 = vmatprep.subr.bf16.mxu0 0
    %1055 = vmatpush2.bf16.msra.mxu0 0
    %1056 = vmatprep.subr.bf16.mxu0 0
    %1057 = vmatpush2.bf16.msra.mxu0 0
    %1058 = vmatprep.subr.bf16.mxu0 0
    %1059 = vmatpush2.bf16.msra.mxu0 0
    %1060 = vmatprep.subr.bf16.mxu0 0
    %1061 = vmatpush2.bf16.msra.mxu0 0
    %1062 = vmatprep.subr.bf16.mxu0 0
    %1063 = vmatpush2.bf16.msra.mxu0 0
    %1064 = vmatprep.mubr.bf16.mxu0 0
    %1065 = vmatmul.mubr.bf16.gmra.mxu0 %v1030
    %v1066 = vpop.f32.mrf.mxu0
    %v1067 = vadd.f32 %v94, %v1066
    %v1068 = vpop.f32.mrf.mxu0
    %v1069 = vpop.f32.mrf.mxu0
    %v1070 = vpop.f32.mrf.mxu0
    %1071 = vdwg.mxu0
    %v1074 = vunpack.c.l.s4 1966171168
    %v1075 = vunpack.c.0.s8 %v1074
    %v1076 = vlaneseq
    %v1077 = vshrl.u32 %v1076, 7
    %v1078 = vsub.s32 %v1075, %v1077
    %v1079 = vrot.slane %v1067, %v1078
    %v1080 = vcombine.high %v1079, %v1079
    %v1082 = vunpack.c.l.s4 1966171168
    %v1083 = vunpack.c.0.s8 %v1082
    %v1084 = vlaneseq
    %v1085 = vshrl.u32 %v1084, 7
    %v1086 = vsub.s32 %v1083, %v1085
    %v1087 = vrot.slane %v1079, %v1086
    %v1089 = vunpack.c.l.s4 1966171168
    %v1090 = vunpack.c.0.s8 %v1089
    %v1091 = vlaneseq
    %v1092 = vshrl.u32 %v1091, 7
    %v1093 = vsub.s32 %v1090, %v1092
    %v1094 = vrot.slane %v1080, %v1093
    %v1095 = vlaneseq
    %v1096 = vshrl.u32 %v1095, 7
    %v1097 = vsub.s32 0, %v1096
    %v1098 = vrot.slane %v1087, %v1097
    %v1099 = vlaneseq
    %v1100 = vshrl.u32 %v1099, 7
    %v1101 = vsub.s32 0, %v1100
    %v1102 = vrot.slane %v1094, %v1101
    %v1105 = vadd.f32 %v1098, %v62
    %v1106 = vadd.f32 %v1102, %v63
    %v1107 = vtanh.pop %v1105
    %v1108 = vtanh.pop %v1106
    %v1109 = vmul.f32 %v1107, %v205
    %v1110 = vmul.f32 %v1108, %v205
    %v1111 = vsel %vm209, %v1109, 0.0
    %1112 = vadd.xlane.f32.xlu0 %v1111
    %v1113 = vpop.xlane.xlu0 %1112
    %v1114 = vsel %vm209, %v1110, 0.0
    %1115 = vadd.xlane.f32.xlu0 %v1114
    %v1116 = vpop.xlane.xlu0 %1115
    %v1117 = vadd.f32 %v1113, %v223
    %v1118 = vadd.f32 %v1116, %v223
    %v1121 = vlaneseq
    %v1122 = vshrl.u32 %v1121, 7
    %v1123 = vsub.s32 %v230, %v1122
    %v1124 = vrot.slane %v1117, %v1123
    %v1125 = vlaneseq
    %v1126 = vshrl.u32 %v1125, 7
    %v1127 = vsub.s32 %v230, %v1126
    %v1128 = vrot.slane %v1118, %v1127
    %v1129 = vsel %vm239, %v1128, %v1124
    %v1131 = vsel %vm242, %v1129, -inf
    %1132 = vmax.xlane.f32.xlu0 %v1131
    %v1133 = vpop.xlane.xlu0 %1132
    %v1135 = vlaneseq
    %v1136 = vshrl.u32 %v1135, 7
    %v1137 = vsub.s32 0, %v1136
    %v1138 = vrot.slane %v1133, %v1137
    %v1139 = vlaneseq
    %v1140 = vshrl.u32 %v1139, 7
    %v1141 = vsub.s32 1, %v1140
    %v1142 = vrot.slane %v1133, %v1141
    %v1145 = vsub.f32 %v1117, %v1138
    %v1146 = vsub.f32 %v1118, %v1142
    %v1147 = vmul.f32 %v1145, 1.442695
    %v1148 = vpow.pop %v1147
    %v1149 = vmul.f32 %v1146, 1.442695
    %v1150 = vpow.pop %v1149
    %1153 = vset.pattern.permute.xlu0 0
    %1154 = vperm.xlu0 %1153, %v1148
    %v1155 = vpop.permute.xlu0 %1154
    %1156 = vset.pattern.permute.xlu0 0
    %1157 = vperm.xlu0 %1156, %v1150
    %v1158 = vpop.permute.xlu0 %1157
    %v1159 = vlaneseq
    %v1160 = vshrl.u32 %v1159, 7
    %v1161 = vsub.s32 %v230, %v1160
    %v1162 = vrot.slane %v1155, %v1161
    %v1163 = vlaneseq
    %v1164 = vshrl.u32 %v1163, 7
    %v1165 = vsub.s32 %v230, %v1164
    %v1166 = vrot.slane %v1158, %v1165
    %v1167 = vsel %vm239, %v1166, %v1162
    %v1169 = vsel %vm242, %v1167, 0.0
    %1170 = vadd.xlane.f32.xlu0 %v1169
    %v1171 = vpop.xlane.xlu0 %1170
    %v1173 = vlaneseq
    %v1174 = vshrl.u32 %v1173, 7
    %v1175 = vsub.s32 0, %v1174
    %v1176 = vrot.slane %v1171, %v1175
    %v1177 = vlaneseq
    %v1178 = vshrl.u32 %v1177, 7
    %v1179 = vsub.s32 1, %v1178
    %v1180 = vrot.slane %v1171, %v1179
    %v1183 = vrcp.pop %v1176
    %v1184 = vmul.f32 %v1148, %v1183
    %v1185 = vrcp.pop %v1180
    %v1186 = vmul.f32 %v1150, %v1185
    %s1187 = scalar_lea.vmem %s0, 6
    %v1188 = vld [vmem:[%s1187] sm:$0x3]
    %v1190 = vlaneseq
    %v1191 = vshrl.u32 %v1190, 7
    %v1192 = vsub.s32 0, %v1191
    %v1193 = vrot.slane %v1188, %v1192
    %1195 = vbcast.lane.b32.xlu0 %v1193, 256
    %v1196 = vpop.permute.xlu0 %1195
    %v1197 = vlaneseq
    %v1198 = vshrl.u32 %v1197, 7
    %v1199 = vsub.s32 1, %v1198
    %v1200 = vrot.slane %v1188, %v1199
    %1202 = vbcast.lane.b32.xlu0 %v1200, 256
    %v1203 = vpop.permute.xlu0 %1202
    %v1206 = vmul.f32 %v1184, %v1196
    %v1207 = vmul.f32 %v1186, %v1203
    %1210 = vset.pattern.permute.xlu0 0
    %1211 = vperm.xlu0 %1210, %v1206
    %v1212 = vpop.permute.xlu0 %1211
    %1213 = vset.pattern.permute.xlu0 0
    %1214 = vperm.xlu0 %1213, %v1207
    %v1215 = vpop.permute.xlu0 %1214
    %v1216 = vlaneseq
    %v1217 = vshrl.u32 %v1216, 7
    %v1218 = vsub.s32 %v230, %v1217
    %v1219 = vrot.slane %v1212, %v1218
    %v1220 = vlaneseq
    %v1221 = vshrl.u32 %v1220, 7
    %v1222 = vsub.s32 %v230, %v1221
    %v1223 = vrot.slane %v1215, %v1222
    %v1224 = vsel %vm239, %v1223, %v1219
    %1226 = vrot.lane.b32.xlu0 %v1010, 36
    %v1227 = vpop.permute.xlu0 %1226
    %v1229 = vsel %vm341, %v1224, %v1227
    %v1230 = vpack.c.bf16 %v1229, %v1229
    %v1232 = vsel %vm365, %v1230, 0
    %1234 = vmatprep.subr.bf16.mxu0 0
    %1235 = vmatpush1.bf16.msra.mxu0 0
    %1236 = vmatprep.subr.bf16.mxu0 0
    %1237 = vmatpush1.bf16.msra.mxu0 0
    %1238 = vmatprep.subr.bf16.mxu0 0
    %1239 = vmatpush1.bf16.msra.mxu0 0
    %1240 = vmatprep.subr.bf16.mxu0 0
    %1241 = vmatpush1.bf16.msra.mxu0 0
    %1242 = vmatprep.subr.bf16.mxu0 0
    %1243 = vmatpush1.bf16.msra.mxu0 0
    %1244 = vmatprep.subr.bf16.mxu0 0
    %1245 = vmatpush1.bf16.msra.mxu0 %v371
    %1246 = vmatprep.subr.bf16.mxu0 0
    %1247 = vmatpush1.bf16.msra.mxu0 %v361
    %1248 = vmatprep.subr.bf16.mxu0 0
    %1249 = vmatpush1.bf16.msra.mxu0 %v360
    %1250 = vmatprep.subr.bf16.mxu0 0
    %1251 = vmatpush2.bf16.msra.mxu0 0
    %1252 = vmatprep.subr.bf16.mxu0 0
    %1253 = vmatpush2.bf16.msra.mxu0 0
    %1254 = vmatprep.subr.bf16.mxu0 0
    %1255 = vmatpush2.bf16.msra.mxu0 0
    %1256 = vmatprep.subr.bf16.mxu0 0
    %1257 = vmatpush2.bf16.msra.mxu0 0
    %1258 = vmatprep.subr.bf16.mxu0 0
    %1259 = vmatpush2.bf16.msra.mxu0 0
    %1260 = vmatprep.subr.bf16.mxu0 0
    %1261 = vmatpush2.bf16.msra.mxu0 0
    %1262 = vmatprep.subr.bf16.mxu0 0
    %1263 = vmatpush2.bf16.msra.mxu0 0
    %1264 = vmatprep.subr.bf16.mxu0 0
    %1265 = vmatpush2.bf16.msra.mxu0 0
    %1266 = vmatprep.mubr.bf16.mxu0 0
    %1267 = vmatmul.mubr.bf16.gmra.mxu0 %v1232
    %v1268 = vpop.f32.mrf.mxu0
    %v1269 = vadd.f32 %v348, %v1268
    %v1270 = vpop.f32.mrf.mxu0
    %v1271 = vpop.f32.mrf.mxu0
    %v1272 = vpop.f32.mrf.mxu0
    %1273 = vdwg.mxu0
    %v1274 = vxor.u32 %v1269, 2147483648
    %v1275 = vmul.f32 %v1274, 1.442695
    %v1276 = vpow.pop %v1275
    %v1277 = vadd.f32 %v1276, 1.0
    %v1278 = vrcp.pop %v1277
    %v1279 = vmul.f32 1.0, %v1278
    %v1280 = vtanh.pop %v1269
    %v1281 = vmul.f32 %v1279, %v1004
    %1283 = vrot.lane.b32.xlu0 %v1280, 64
    %v1284 = vpop.permute.xlu0 %1283
    %v1286 = vmul.f32 %v1279, %v1284
    %1288 = vrot.lane.b32.xlu0 %v1286, 32
    %v1289 = vpop.permute.xlu0 %1288
    %v1291 = vadd.f32 %v1281, %v1289
    %v1292 = vtanh.pop %v1291
    %1294 = vrot.lane.b32.xlu0 %v1292, 64
    %v1295 = vpop.permute.xlu0 %1294
    %v1297 = vmul.f32 %v1279, %v1295
    %vm1298 = vcmask 1042176
    %1299 = vst.msk [vmem:[#allocation2] sm:$0x3] %vm1298, %v1297
    %1301 = vrot.lane.b32.xlu0 %v1297, 32
    %v1302 = vpop.permute.xlu0 %1301
    %v1304 = vsel %vm87, %v1302, %v1291
    %v1305 = vpack.c.bf16 %v1304, %v1304
    %v1307 = vsel %vm120, %v1305, 0
    %1309 = vmatprep.subr.bf16.mxu0 0
    %1310 = vmatpush1.bf16.msra.mxu0 0
    %1311 = vmatprep.subr.bf16.mxu0 0
    %1312 = vmatpush1.bf16.msra.mxu0 0
    %1313 = vmatprep.subr.bf16.mxu0 0
    %1314 = vmatpush1.bf16.msra.mxu0 0
    %1315 = vmatprep.subr.bf16.mxu0 0
    %1316 = vmatpush1.bf16.msra.mxu0 0
    %1317 = vmatprep.subr.bf16.mxu0 0
    %1318 = vmatpush1.bf16.msra.mxu0 %v115
    %1319 = vmatprep.subr.bf16.mxu0 0
    %1320 = vmatpush1.bf16.msra.mxu0 %v114
    %1321 = vmatprep.subr.bf16.mxu0 0
    %1322 = vmatpush1.bf16.msra.mxu0 %v113
    %1323 = vmatprep.subr.bf16.mxu0 0
    %1324 = vmatpush1.bf16.msra.mxu0 %v112
    %1325 = vmatprep.subr.bf16.mxu0 0
    %1326 = vmatpush2.bf16.msra.mxu0 0
    %1327 = vmatprep.subr.bf16.mxu0 0
    %1328 = vmatpush2.bf16.msra.mxu0 0
    %1329 = vmatprep.subr.bf16.mxu0 0
    %1330 = vmatpush2.bf16.msra.mxu0 0
    %1331 = vmatprep.subr.bf16.mxu0 0
    %1332 = vmatpush2.bf16.msra.mxu0 0
    %1333 = vmatprep.subr.bf16.mxu0 0
    %1334 = vmatpush2.bf16.msra.mxu0 0
    %1335 = vmatprep.subr.bf16.mxu0 0
    %1336 = vmatpush2.bf16.msra.mxu0 0
    %1337 = vmatprep.subr.bf16.mxu0 0
    %1338 = vmatpush2.bf16.msra.mxu0 0
    %1339 = vmatprep.subr.bf16.mxu0 0
    %1340 = vmatpush2.bf16.msra.mxu0 0
    %1341 = vmatprep.mubr.bf16.mxu0 0
    %1342 = vmatmul.mubr.bf16.gmra.mxu0 %v1307
    %v1343 = vpop.f32.mrf.mxu0
    %v1344 = vadd.f32 %v94, %v1343
    %v1345 = vpop.f32.mrf.mxu0
    %v1346 = vpop.f32.mrf.mxu0
    %v1347 = vpop.f32.mrf.mxu0
    %1348 = vdwg.mxu0
    %v1351 = vunpack.c.l.s4 1966171168
    %v1352 = vunpack.c.0.s8 %v1351
    %v1353 = vlaneseq
    %v1354 = vshrl.u32 %v1353, 7
    %v1355 = vsub.s32 %v1352, %v1354
    %v1356 = vrot.slane %v1344, %v1355
    %v1357 = vcombine.high %v1356, %v1356
    %v1359 = vunpack.c.l.s4 1966171168
    %v1360 = vunpack.c.0.s8 %v1359
    %v1361 = vlaneseq
    %v1362 = vshrl.u32 %v1361, 7
    %v1363 = vsub.s32 %v1360, %v1362
    %v1364 = vrot.slane %v1356, %v1363
    %v1366 = vunpack.c.l.s4 1966171168
    %v1367 = vunpack.c.0.s8 %v1366
    %v1368 = vlaneseq
    %v1369 = vshrl.u32 %v1368, 7
    %v1370 = vsub.s32 %v1367, %v1369
    %v1371 = vrot.slane %v1357, %v1370
    %v1372 = vlaneseq
    %v1373 = vshrl.u32 %v1372, 7
    %v1374 = vsub.s32 0, %v1373
    %v1375 = vrot.slane %v1364, %v1374
    %v1376 = vlaneseq
    %v1377 = vshrl.u32 %v1376, 7
    %v1378 = vsub.s32 0, %v1377
    %v1379 = vrot.slane %v1371, %v1378
    %v1382 = vadd.f32 %v1375, %v62
    %v1383 = vadd.f32 %v1379, %v63
    %v1384 = vtanh.pop %v1382
    %v1385 = vtanh.pop %v1383
    %v1386 = vmul.f32 %v1384, %v205
    %v1387 = vmul.f32 %v1385, %v205
    %v1388 = vsel %vm209, %v1386, 0.0
    %1389 = vadd.xlane.f32.xlu0 %v1388
    %v1390 = vpop.xlane.xlu0 %1389
    %v1391 = vsel %vm209, %v1387, 0.0
    %1392 = vadd.xlane.f32.xlu0 %v1391
    %v1393 = vpop.xlane.xlu0 %1392
    %v1394 = vadd.f32 %v1390, %v223
    %v1395 = vadd.f32 %v1393, %v223
    %v1398 = vlaneseq
    %v1399 = vshrl.u32 %v1398, 7
    %v1400 = vsub.s32 %v230, %v1399
    %v1401 = vrot.slane %v1394, %v1400
    %v1402 = vlaneseq
    %v1403 = vshrl.u32 %v1402, 7
    %v1404 = vsub.s32 %v230, %v1403
    %v1405 = vrot.slane %v1395, %v1404
    %v1406 = vsel %vm239, %v1405, %v1401
    %v1408 = vsel %vm242, %v1406, -inf
    %1409 = vmax.xlane.f32.xlu0 %v1408
    %v1410 = vpop.xlane.xlu0 %1409
    %v1412 = vlaneseq
    %v1413 = vshrl.u32 %v1412, 7
    %v1414 = vsub.s32 0, %v1413
    %v1415 = vrot.slane %v1410, %v1414
    %v1416 = vlaneseq
    %v1417 = vshrl.u32 %v1416, 7
    %v1418 = vsub.s32 1, %v1417
    %v1419 = vrot.slane %v1410, %v1418
    %v1422 = vsub.f32 %v1394, %v1415
    %v1423 = vsub.f32 %v1395, %v1419
    %v1424 = vmul.f32 %v1422, 1.442695
    %v1425 = vpow.pop %v1424
    %v1426 = vmul.f32 %v1423, 1.442695
    %v1427 = vpow.pop %v1426
    %1430 = vset.pattern.permute.xlu0 0
    %1431 = vperm.xlu0 %1430, %v1425
    %v1432 = vpop.permute.xlu0 %1431
    %1433 = vset.pattern.permute.xlu0 0
    %1434 = vperm.xlu0 %1433, %v1427
    %v1435 = vpop.permute.xlu0 %1434
    %v1436 = vlaneseq
    %v1437 = vshrl.u32 %v1436, 7
    %v1438 = vsub.s32 %v230, %v1437
    %v1439 = vrot.slane %v1432, %v1438
    %v1440 = vlaneseq
    %v1441 = vshrl.u32 %v1440, 7
    %v1442 = vsub.s32 %v230, %v1441
    %v1443 = vrot.slane %v1435, %v1442
    %v1444 = vsel %vm239, %v1443, %v1439
    %v1446 = vsel %vm242, %v1444, 0.0
    %1447 = vadd.xlane.f32.xlu0 %v1446
    %v1448 = vpop.xlane.xlu0 %1447
    %v1450 = vlaneseq
    %v1451 = vshrl.u32 %v1450, 7
    %v1452 = vsub.s32 0, %v1451
    %v1453 = vrot.slane %v1448, %v1452
    %v1454 = vlaneseq
    %v1455 = vshrl.u32 %v1454, 7
    %v1456 = vsub.s32 1, %v1455
    %v1457 = vrot.slane %v1448, %v1456
    %v1460 = vrcp.pop %v1453
    %v1461 = vmul.f32 %v1425, %v1460
    %v1462 = vrcp.pop %v1457
    %v1463 = vmul.f32 %v1427, %v1462
    %s1464 = scalar_lea.vmem %s0, 8
    %v1465 = vld [vmem:[%s1464] sm:$0x3]
    %v1467 = vlaneseq
    %v1468 = vshrl.u32 %v1467, 7
    %v1469 = vsub.s32 0, %v1468
    %v1470 = vrot.slane %v1465, %v1469
    %1472 = vbcast.lane.b32.xlu0 %v1470, 256
    %v1473 = vpop.permute.xlu0 %1472
    %v1474 = vlaneseq
    %v1475 = vshrl.u32 %v1474, 7
    %v1476 = vsub.s32 1, %v1475
    %v1477 = vrot.slane %v1465, %v1476
    %1479 = vbcast.lane.b32.xlu0 %v1477, 256
    %v1480 = vpop.permute.xlu0 %1479
    %v1483 = vmul.f32 %v1461, %v1473
    %v1484 = vmul.f32 %v1463, %v1480
    %1487 = vset.pattern.permute.xlu0 0
    %1488 = vperm.xlu0 %1487, %v1483
    %v1489 = vpop.permute.xlu0 %1488
    %1490 = vset.pattern.permute.xlu0 0
    %1491 = vperm.xlu0 %1490, %v1484
    %v1492 = vpop.permute.xlu0 %1491
    %v1493 = vlaneseq
    %v1494 = vshrl.u32 %v1493, 7
    %v1495 = vsub.s32 %v230, %v1494
    %v1496 = vrot.slane %v1489, %v1495
    %v1497 = vlaneseq
    %v1498 = vshrl.u32 %v1497, 7
    %v1499 = vsub.s32 %v230, %v1498
    %v1500 = vrot.slane %v1492, %v1499
    %v1501 = vsel %vm239, %v1500, %v1496
    %1503 = vrot.lane.b32.xlu0 %v1297, 36
    %v1504 = vpop.permute.xlu0 %1503
    %v1506 = vsel %vm341, %v1501, %v1504
    %v1507 = vpack.c.bf16 %v1506, %v1506
    %v1509 = vsel %vm365, %v1507, 0
    %1511 = vmatprep.subr.bf16.mxu0 0
    %1512 = vmatpush1.bf16.msra.mxu0 0
    %1513 = vmatprep.subr.bf16.mxu0 0
    %1514 = vmatpush1.bf16.msra.mxu0 0
    %1515 = vmatprep.subr.bf16.mxu0 0
    %1516 = vmatpush1.bf16.msra.mxu0 0
    %1517 = vmatprep.subr.bf16.mxu0 0
    %1518 = vmatpush1.bf16.msra.mxu0 0
    %1519 = vmatprep.subr.bf16.mxu0 0
    %1520 = vmatpush1.bf16.msra.mxu0 0
    %1521 = vmatprep.subr.bf16.mxu0 0
    %1522 = vmatpush1.bf16.msra.mxu0 %v371
    %1523 = vmatprep.subr.bf16.mxu0 0
    %1524 = vmatpush1.bf16.msra.mxu0 %v361
    %1525 = vmatprep.subr.bf16.mxu0 0
    %1526 = vmatpush1.bf16.msra.mxu0 %v360
    %1527 = vmatprep.subr.bf16.mxu0 0
    %1528 = vmatpush2.bf16.msra.mxu0 0
    %1529 = vmatprep.subr.bf16.mxu0 0
    %1530 = vmatpush2.bf16.msra.mxu0 0
    %1531 = vmatprep.subr.bf16.mxu0 0
    %1532 = vmatpush2.bf16.msra.mxu0 0
    %1533 = vmatprep.subr.bf16.mxu0 0
    %1534 = vmatpush2.bf16.msra.mxu0 0
    %1535 = vmatprep.subr.bf16.mxu0 0
    %1536 = vmatpush2.bf16.msra.mxu0 0
    %1537 = vmatprep.subr.bf16.mxu0 0
    %1538 = vmatpush2.bf16.msra.mxu0 0
    %1539 = vmatprep.subr.bf16.mxu0 0
    %1540 = vmatpush2.bf16.msra.mxu0 0
    %1541 = vmatprep.subr.bf16.mxu0 0
    %1542 = vmatpush2.bf16.msra.mxu0 0
    %1543 = vmatprep.mubr.bf16.mxu0 0
    %1544 = vmatmul.mubr.bf16.gmra.mxu0 %v1509
    %v1545 = vpop.f32.mrf.mxu0
    %v1546 = vadd.f32 %v348, %v1545
    %v1547 = vpop.f32.mrf.mxu0
    %v1548 = vpop.f32.mrf.mxu0
    %v1549 = vpop.f32.mrf.mxu0
    %1550 = vdwg.mxu0
    %v1551 = vxor.u32 %v1546, 2147483648
    %v1552 = vmul.f32 %v1551, 1.442695
    %v1553 = vpow.pop %v1552
    %v1554 = vadd.f32 %v1553, 1.0
    %v1555 = vrcp.pop %v1554
    %v1556 = vmul.f32 1.0, %v1555
    %v1557 = vtanh.pop %v1546
    %v1558 = vmul.f32 %v1556, %v1291
    %1560 = vrot.lane.b32.xlu0 %v1557, 64
    %v1561 = vpop.permute.xlu0 %1560
    %v1563 = vmul.f32 %v1556, %v1561
    %1565 = vrot.lane.b32.xlu0 %v1563, 32
    %v1566 = vpop.permute.xlu0 %1565
    %v1568 = vadd.f32 %v1558, %v1566
    %v1569 = vtanh.pop %v1568
    %1571 = vrot.lane.b32.xlu0 %v1569, 64
    %v1572 = vpop.permute.xlu0 %1571
    %v1574 = vmul.f32 %v1556, %v1572
    %v1577 = vunpack.c.l.s4 1983009808
    %v1578 = vunpack.c.0.s8 %v1577
    %v1579 = vlaneseq
    %v1580 = vshrl.u32 %v1579, 7
    %v1581 = vsub.s32 %v1578, %v1580
    %v1582 = vrot.slane %v1574, %v1581
    %1583 = vrot.lane.b32.xlu0 %v1582, 32
    %v1584 = vpop.permute.xlu0 %1583
    %1586 = vst.msk [vmem:[#allocation2 + $0x2] sm:$0x3] %vm448, %v1584
    %1587 = vrot.lane.b32.xlu0 %v1574, 32
    %v1588 = vpop.permute.xlu0 %1587
    %v1590 = vsel %vm87, %v1588, %v1568
    %v1591 = vpack.c.bf16 %v1590, %v1590
    %v1593 = vsel %vm120, %v1591, 0
    %1595 = vmatprep.subr.bf16.mxu0 0
    %1596 = vmatpush1.bf16.msra.mxu0 0
    %1597 = vmatprep.subr.bf16.mxu0 0
    %1598 = vmatpush1.bf16.msra.mxu0 0
    %1599 = vmatprep.subr.bf16.mxu0 0
    %1600 = vmatpush1.bf16.msra.mxu0 0
    %1601 = vmatprep.subr.bf16.mxu0 0
    %1602 = vmatpush1.bf16.msra.mxu0 0
    %1603 = vmatprep.subr.bf16.mxu0 0
    %1604 = vmatpush1.bf16.msra.mxu0 %v115
    %1605 = vmatprep.subr.bf16.mxu0 0
    %1606 = vmatpush1.bf16.msra.mxu0 %v114
    %1607 = vmatprep.subr.bf16.mxu0 0
    %1608 = vmatpush1.bf16.msra.mxu0 %v113
    %1609 = vmatprep.subr.bf16.mxu0 0
    %1610 = vmatpush1.bf16.msra.mxu0 %v112
    %1611 = vmatprep.subr.bf16.mxu0 0
    %1612 = vmatpush2.bf16.msra.mxu0 0
    %1613 = vmatprep.subr.bf16.mxu0 0
    %1614 = vmatpush2.bf16.msra.mxu0 0
    %1615 = vmatprep.subr.bf16.mxu0 0
    %1616 = vmatpush2.bf16.msra.mxu0 0
    %1617 = vmatprep.subr.bf16.mxu0 0
    %1618 = vmatpush2.bf16.msra.mxu0 0
    %1619 = vmatprep.subr.bf16.mxu0 0
    %1620 = vmatpush2.bf16.msra.mxu0 0
    %1621 = vmatprep.subr.bf16.mxu0 0
    %1622 = vmatpush2.bf16.msra.mxu0 0
    %1623 = vmatprep.subr.bf16.mxu0 0
    %1624 = vmatpush2.bf16.msra.mxu0 0
    %1625 = vmatprep.subr.bf16.mxu0 0
    %1626 = vmatpush2.bf16.msra.mxu0 0
    %1627 = vmatprep.mubr.bf16.mxu0 0
    %1628 = vmatmul.mubr.bf16.gmra.mxu0 %v1593
    %v1629 = vpop.f32.mrf.mxu0
    %v1630 = vadd.f32 %v94, %v1629
    %v1631 = vpop.f32.mrf.mxu0
    %v1632 = vpop.f32.mrf.mxu0
    %v1633 = vpop.f32.mrf.mxu0
    %1634 = vdwg.mxu0
    %v1637 = vunpack.c.l.s4 1966171168
    %v1638 = vunpack.c.0.s8 %v1637
    %v1639 = vlaneseq
    %v1640 = vshrl.u32 %v1639, 7
    %v1641 = vsub.s32 %v1638, %v1640
    %v1642 = vrot.slane %v1630, %v1641
    %v1643 = vcombine.high %v1642, %v1642
    %v1645 = vunpack.c.l.s4 1966171168
    %v1646 = vunpack.c.0.s8 %v1645
    %v1647 = vlaneseq
    %v1648 = vshrl.u32 %v1647, 7
    %v1649 = vsub.s32 %v1646, %v1648
    %v1650 = vrot.slane %v1642, %v1649
    %v1652 = vunpack.c.l.s4 1966171168
    %v1653 = vunpack.c.0.s8 %v1652
    %v1654 = vlaneseq
    %v1655 = vshrl.u32 %v1654, 7
    %v1656 = vsub.s32 %v1653, %v1655
    %v1657 = vrot.slane %v1643, %v1656
    %v1658 = vlaneseq
    %v1659 = vshrl.u32 %v1658, 7
    %v1660 = vsub.s32 0, %v1659
    %v1661 = vrot.slane %v1650, %v1660
    %v1662 = vlaneseq
    %v1663 = vshrl.u32 %v1662, 7
    %v1664 = vsub.s32 0, %v1663
    %v1665 = vrot.slane %v1657, %v1664
    %v1668 = vadd.f32 %v1661, %v62
    %v1669 = vadd.f32 %v1665, %v63
    %v1670 = vtanh.pop %v1668
    %v1671 = vtanh.pop %v1669
    %v1672 = vmul.f32 %v1670, %v205
    %v1673 = vmul.f32 %v1671, %v205
    %v1674 = vsel %vm209, %v1672, 0.0
    %1675 = vadd.xlane.f32.xlu0 %v1674
    %v1676 = vpop.xlane.xlu0 %1675
    %v1677 = vsel %vm209, %v1673, 0.0
    %1678 = vadd.xlane.f32.xlu0 %v1677
    %v1679 = vpop.xlane.xlu0 %1678
    %v1680 = vadd.f32 %v1676, %v223
    %v1681 = vadd.f32 %v1679, %v223
    %v1684 = vlaneseq
    %v1685 = vshrl.u32 %v1684, 7
    %v1686 = vsub.s32 %v230, %v1685
    %v1687 = vrot.slane %v1680, %v1686
    %v1688 = vlaneseq
    %v1689 = vshrl.u32 %v1688, 7
    %v1690 = vsub.s32 %v230, %v1689
    %v1691 = vrot.slane %v1681, %v1690
    %v1692 = vsel %vm239, %v1691, %v1687
    %v1694 = vsel %vm242, %v1692, -inf
    %1695 = vmax.xlane.f32.xlu0 %v1694
    %v1696 = vpop.xlane.xlu0 %1695
    %v1698 = vlaneseq
    %v1699 = vshrl.u32 %v1698, 7
    %v1700 = vsub.s32 0, %v1699
    %v1701 = vrot.slane %v1696, %v1700
    %v1702 = vlaneseq
    %v1703 = vshrl.u32 %v1702, 7
    %v1704 = vsub.s32 1, %v1703
    %v1705 = vrot.slane %v1696, %v1704
    %v1708 = vsub.f32 %v1680, %v1701
    %v1709 = vsub.f32 %v1681, %v1705
    %v1710 = vmul.f32 %v1708, 1.442695
    %v1711 = vpow.pop %v1710
    %v1712 = vmul.f32 %v1709, 1.442695
    %v1713 = vpow.pop %v1712
    %1716 = vset.pattern.permute.xlu0 0
    %1717 = vperm.xlu0 %1716, %v1711
    %v1718 = vpop.permute.xlu0 %1717
    %1719 = vset.pattern.permute.xlu0 0
    %1720 = vperm.xlu0 %1719, %v1713
    %v1721 = vpop.permute.xlu0 %1720
    %v1722 = vlaneseq
    %v1723 = vshrl.u32 %v1722, 7
    %v1724 = vsub.s32 %v230, %v1723
    %v1725 = vrot.slane %v1718, %v1724
    %v1726 = vlaneseq
    %v1727 = vshrl.u32 %v1726, 7
    %v1728 = vsub.s32 %v230, %v1727
    %v1729 = vrot.slane %v1721, %v1728
    %v1730 = vsel %vm239, %v1729, %v1725
    %v1732 = vsel %vm242, %v1730, 0.0
    %1733 = vadd.xlane.f32.xlu0 %v1732
    %v1734 = vpop.xlane.xlu0 %1733
    %v1736 = vlaneseq
    %v1737 = vshrl.u32 %v1736, 7
    %v1738 = vsub.s32 0, %v1737
    %v1739 = vrot.slane %v1734, %v1738
    %v1740 = vlaneseq
    %v1741 = vshrl.u32 %v1740, 7
    %v1742 = vsub.s32 1, %v1741
    %v1743 = vrot.slane %v1734, %v1742
    %v1746 = vrcp.pop %v1739
    %v1747 = vmul.f32 %v1711, %v1746
    %v1748 = vrcp.pop %v1743
    %v1749 = vmul.f32 %v1713, %v1748
    %s1750 = scalar_lea.vmem %s0, 10
    %v1751 = vld [vmem:[%s1750] sm:$0x3]
    %v1753 = vlaneseq
    %v1754 = vshrl.u32 %v1753, 7
    %v1755 = vsub.s32 0, %v1754
    %v1756 = vrot.slane %v1751, %v1755
    %1758 = vbcast.lane.b32.xlu0 %v1756, 256
    %v1759 = vpop.permute.xlu0 %1758
    %v1760 = vlaneseq
    %v1761 = vshrl.u32 %v1760, 7
    %v1762 = vsub.s32 1, %v1761
    %v1763 = vrot.slane %v1751, %v1762
    %1765 = vbcast.lane.b32.xlu0 %v1763, 256
    %v1766 = vpop.permute.xlu0 %1765
    %v1769 = vmul.f32 %v1747, %v1759
    %v1770 = vmul.f32 %v1749, %v1766
    %1773 = vset.pattern.permute.xlu0 0
    %1774 = vperm.xlu0 %1773, %v1769
    %v1775 = vpop.permute.xlu0 %1774
    %1776 = vset.pattern.permute.xlu0 0
    %1777 = vperm.xlu0 %1776, %v1770
    %v1778 = vpop.permute.xlu0 %1777
    %v1779 = vlaneseq
    %v1780 = vshrl.u32 %v1779, 7
    %v1781 = vsub.s32 %v230, %v1780
    %v1782 = vrot.slane %v1775, %v1781
    %v1783 = vlaneseq
    %v1784 = vshrl.u32 %v1783, 7
    %v1785 = vsub.s32 %v230, %v1784
    %v1786 = vrot.slane %v1778, %v1785
    %v1787 = vsel %vm239, %v1786, %v1782
    %1789 = vrot.lane.b32.xlu0 %v1574, 36
    %v1790 = vpop.permute.xlu0 %1789
    %v1792 = vsel %vm341, %v1787, %v1790
    %v1793 = vpack.c.bf16 %v1792, %v1792
    %v1795 = vsel %vm365, %v1793, 0
    %1797 = vmatprep.subr.bf16.mxu0 0
    %1798 = vmatpush1.bf16.msra.mxu0 0
    %1799 = vmatprep.subr.bf16.mxu0 0
    %1800 = vmatpush1.bf16.msra.mxu0 0
    %1801 = vmatprep.subr.bf16.mxu0 0
    %1802 = vmatpush1.bf16.msra.mxu0 0
    %1803 = vmatprep.subr.bf16.mxu0 0
    %1804 = vmatpush1.bf16.msra.mxu0 0
    %1805 = vmatprep.subr.bf16.mxu0 0
    %1806 = vmatpush1.bf16.msra.mxu0 0
    %1807 = vmatprep.subr.bf16.mxu0 0
    %1808 = vmatpush1.bf16.msra.mxu0 %v371
    %1809 = vmatprep.subr.bf16.mxu0 0
    %1810 = vmatpush1.bf16.msra.mxu0 %v361
    %1811 = vmatprep.subr.bf16.mxu0 0
    %1812 = vmatpush1.bf16.msra.mxu0 %v360
    %1813 = vmatprep.subr.bf16.mxu0 0
    %1814 = vmatpush2.bf16.msra.mxu0 0
    %1815 = vmatprep.subr.bf16.mxu0 0
    %1816 = vmatpush2.bf16.msra.mxu0 0
    %1817 = vmatprep.subr.bf16.mxu0 0
    %1818 = vmatpush2.bf16.msra.mxu0 0
    %1819 = vmatprep.subr.bf16.mxu0 0
    %1820 = vmatpush2.bf16.msra.mxu0 0
    %1821 = vmatprep.subr.bf16.mxu0 0
    %1822 = vmatpush2.bf16.msra.mxu0 0
    %1823 = vmatprep.subr.bf16.mxu0 0
    %1824 = vmatpush2.bf16.msra.mxu0 0
    %1825 = vmatprep.subr.bf16.mxu0 0
    %1826 = vmatpush2.bf16.msra.mxu0 0
    %1827 = vmatprep.subr.bf16.mxu0 0
    %1828 = vmatpush2.bf16.msra.mxu0 0
    %1829 = vmatprep.mubr.bf16.mxu0 0
    %1830 = vmatmul.mubr.bf16.gmra.mxu0 %v1795
    %v1831 = vpop.f32.mrf.mxu0
    %v1832 = vadd.f32 %v348, %v1831
    %v1833 = vpop.f32.mrf.mxu0
    %v1834 = vpop.f32.mrf.mxu0
    %v1835 = vpop.f32.mrf.mxu0
    %1836 = vdwg.mxu0
    %v1837 = vxor.u32 %v1832, 2147483648
    %v1838 = vmul.f32 %v1837, 1.442695
    %v1839 = vpow.pop %v1838
    %v1840 = vadd.f32 %v1839, 1.0
    %v1841 = vrcp.pop %v1840
    %v1842 = vmul.f32 1.0, %v1841
    %v1843 = vtanh.pop %v1832
    %v1844 = vmul.f32 %v1842, %v1568
    %1846 = vrot.lane.b32.xlu0 %v1843, 64
    %v1847 = vpop.permute.xlu0 %1846
    %v1849 = vmul.f32 %v1842, %v1847
    %1851 = vrot.lane.b32.xlu0 %v1849, 32
    %v1852 = vpop.permute.xlu0 %1851
    %v1854 = vadd.f32 %v1844, %v1852
    %v1855 = vtanh.pop %v1854
    %1857 = vrot.lane.b32.xlu0 %v1855, 64
    %v1858 = vpop.permute.xlu0 %1857
    %v1860 = vmul.f32 %v1842, %v1858
    %v1863 = vunpack.c.l.s4 1983009808
    %v1864 = vunpack.c.0.s8 %v1863
    %v1865 = vlaneseq
    %v1866 = vshrl.u32 %v1865, 7
    %v1867 = vsub.s32 %v1864, %v1866
    %v1868 = vrot.slane %v1860, %v1867
    %1869 = vrot.lane.b32.xlu0 %v1868, 64
    %v1870 = vpop.permute.xlu0 %1869
    %1872 = vst.msk [vmem:[#allocation2 + $0x2] sm:$0x3] %vm735, %v1870
    %1873 = vrot.lane.b32.xlu0 %v1860, 32
    %v1874 = vpop.permute.xlu0 %1873
    %v1876 = vsel %vm87, %v1874, %v1854
    %v1877 = vpack.c.bf16 %v1876, %v1876
    %v1879 = vsel %vm120, %v1877, 0
    %1881 = vmatprep.subr.bf16.mxu0 0
    %1882 = vmatpush1.bf16.msra.mxu0 0
    %1883 = vmatprep.subr.bf16.mxu0 0
    %1884 = vmatpush1.bf16.msra.mxu0 0
    %1885 = vmatprep.subr.bf16.mxu0 0
    %1886 = vmatpush1.bf16.msra.mxu0 0
    %1887 = vmatprep.subr.bf16.mxu0 0
    %1888 = vmatpush1.bf16.msra.mxu0 0
    %1889 = vmatprep.subr.bf16.mxu0 0
    %1890 = vmatpush1.bf16.msra.mxu0 %v115
    %1891 = vmatprep.subr.bf16.mxu0 0
    %1892 = vmatpush1.bf16.msra.mxu0 %v114
    %1893 = vmatprep.subr.bf16.mxu0 0
    %1894 = vmatpush1.bf16.msra.mxu0 %v113
    %1895 = vmatprep.subr.bf16.mxu0 0
    %1896 = vmatpush1.bf16.msra.mxu0 %v112
    %1897 = vmatprep.subr.bf16.mxu0 0
    %1898 = vmatpush2.bf16.msra.mxu0 0
    %1899 = vmatprep.subr.bf16.mxu0 0
    %1900 = vmatpush2.bf16.msra.mxu0 0
    %1901 = vmatprep.subr.bf16.mxu0 0
    %1902 = vmatpush2.bf16.msra.mxu0 0
    %1903 = vmatprep.subr.bf16.mxu0 0
    %1904 = vmatpush2.bf16.msra.mxu0 0
    %1905 = vmatprep.subr.bf16.mxu0 0
    %1906 = vmatpush2.bf16.msra.mxu0 0
    %1907 = vmatprep.subr.bf16.mxu0 0
    %1908 = vmatpush2.bf16.msra.mxu0 0
    %1909 = vmatprep.subr.bf16.mxu0 0
    %1910 = vmatpush2.bf16.msra.mxu0 0
    %1911 = vmatprep.subr.bf16.mxu0 0
    %1912 = vmatpush2.bf16.msra.mxu0 0
    %1913 = vmatprep.mubr.bf16.mxu0 0
    %1914 = vmatmul.mubr.bf16.gmra.mxu0 %v1879
    %v1915 = vpop.f32.mrf.mxu0
    %v1916 = vadd.f32 %v94, %v1915
    %v1917 = vpop.f32.mrf.mxu0
    %v1918 = vpop.f32.mrf.mxu0
    %v1919 = vpop.f32.mrf.mxu0
    %1920 = vdwg.mxu0
    %v1923 = vunpack.c.l.s4 1966171168
    %v1924 = vunpack.c.0.s8 %v1923
    %v1925 = vlaneseq
    %v1926 = vshrl.u32 %v1925, 7
    %v1927 = vsub.s32 %v1924, %v1926
    %v1928 = vrot.slane %v1916, %v1927
    %v1929 = vcombine.high %v1928, %v1928
    %v1931 = vunpack.c.l.s4 1966171168
    %v1932 = vunpack.c.0.s8 %v1931
    %v1933 = vlaneseq
    %v1934 = vshrl.u32 %v1933, 7
    %v1935 = vsub.s32 %v1932, %v1934
    %v1936 = vrot.slane %v1928, %v1935
    %v1938 = vunpack.c.l.s4 1966171168
    %v1939 = vunpack.c.0.s8 %v1938
    %v1940 = vlaneseq
    %v1941 = vshrl.u32 %v1940, 7
    %v1942 = vsub.s32 %v1939, %v1941
    %v1943 = vrot.slane %v1929, %v1942
    %v1944 = vlaneseq
    %v1945 = vshrl.u32 %v1944, 7
    %v1946 = vsub.s32 0, %v1945
    %v1947 = vrot.slane %v1936, %v1946
    %v1948 = vlaneseq
    %v1949 = vshrl.u32 %v1948, 7
    %v1950 = vsub.s32 0, %v1949
    %v1951 = vrot.slane %v1943, %v1950
    %v1954 = vadd.f32 %v1947, %v62
    %v1955 = vadd.f32 %v1951, %v63
    %v1956 = vtanh.pop %v1954
    %v1957 = vtanh.pop %v1955
    %v1958 = vmul.f32 %v1956, %v205
    %v1959 = vmul.f32 %v1957, %v205
    %v1960 = vsel %vm209, %v1958, 0.0
    %1961 = vadd.xlane.f32.xlu0 %v1960
    %v1962 = vpop.xlane.xlu0 %1961
    %v1963 = vsel %vm209, %v1959, 0.0
    %1964 = vadd.xlane.f32.xlu0 %v1963
    %v1965 = vpop.xlane.xlu0 %1964
    %v1966 = vadd.f32 %v1962, %v223
    %v1967 = vadd.f32 %v1965, %v223
    %v1970 = vlaneseq
    %v1971 = vshrl.u32 %v1970, 7
    %v1972 = vsub.s32 %v230, %v1971
    %v1973 = vrot.slane %v1966, %v1972
    %v1974 = vlaneseq
    %v1975 = vshrl.u32 %v1974, 7
    %v1976 = vsub.s32 %v230, %v1975
    %v1977 = vrot.slane %v1967, %v1976
    %v1978 = vsel %vm239, %v1977, %v1973
    %v1980 = vsel %vm242, %v1978, -inf
    %1981 = vmax.xlane.f32.xlu0 %v1980
    %v1982 = vpop.xlane.xlu0 %1981
    %v1984 = vlaneseq
    %v1985 = vshrl.u32 %v1984, 7
    %v1986 = vsub.s32 0, %v1985
    %v1987 = vrot.slane %v1982, %v1986
    %v1988 = vlaneseq
    %v1989 = vshrl.u32 %v1988, 7
    %v1990 = vsub.s32 1, %v1989
    %v1991 = vrot.slane %v1982, %v1990
    %v1994 = vsub.f32 %v1966, %v1987
    %v1995 = vsub.f32 %v1967, %v1991
    %v1996 = vmul.f32 %v1994, 1.442695
    %v1997 = vpow.pop %v1996
    %v1998 = vmul.f32 %v1995, 1.442695
    %v1999 = vpow.pop %v1998
    %2002 = vset.pattern.permute.xlu0 0
    %2003 = vperm.xlu0 %2002, %v1997
    %v2004 = vpop.permute.xlu0 %2003
    %2005 = vset.pattern.permute.xlu0 0
    %2006 = vperm.xlu0 %2005, %v1999
    %v2007 = vpop.permute.xlu0 %2006
    %v2008 = vlaneseq
    %v2009 = vshrl.u32 %v2008, 7
    %v2010 = vsub.s32 %v230, %v2009
    %v2011 = vrot.slane %v2004, %v2010
    %v2012 = vlaneseq
    %v2013 = vshrl.u32 %v2012, 7
    %v2014 = vsub.s32 %v230, %v2013
    %v2015 = vrot.slane %v2007, %v2014
    %v2016 = vsel %vm239, %v2015, %v2011
    %v2018 = vsel %vm242, %v2016, 0.0
    %2019 = vadd.xlane.f32.xlu0 %v2018
    %v2020 = vpop.xlane.xlu0 %2019
    %v2022 = vlaneseq
    %v2023 = vshrl.u32 %v2022, 7
    %v2024 = vsub.s32 0, %v2023
    %v2025 = vrot.slane %v2020, %v2024
    %v2026 = vlaneseq
    %v2027 = vshrl.u32 %v2026, 7
    %v2028 = vsub.s32 1, %v2027
    %v2029 = vrot.slane %v2020, %v2028
    %v2032 = vrcp.pop %v2025
    %v2033 = vmul.f32 %v1997, %v2032
    %v2034 = vrcp.pop %v2029
    %v2035 = vmul.f32 %v1999, %v2034
    %s2036 = scalar_lea.vmem %s0, 12
    %v2037 = vld [vmem:[%s2036] sm:$0x3]
    %v2039 = vlaneseq
    %v2040 = vshrl.u32 %v2039, 7
    %v2041 = vsub.s32 0, %v2040
    %v2042 = vrot.slane %v2037, %v2041
    %2044 = vbcast.lane.b32.xlu0 %v2042, 256
    %v2045 = vpop.permute.xlu0 %2044
    %v2046 = vlaneseq
    %v2047 = vshrl.u32 %v2046, 7
    %v2048 = vsub.s32 1, %v2047
    %v2049 = vrot.slane %v2037, %v2048
    %2051 = vbcast.lane.b32.xlu0 %v2049, 256
    %v2052 = vpop.permute.xlu0 %2051
    %v2055 = vmul.f32 %v2033, %v2045
    %v2056 = vmul.f32 %v2035, %v2052
    %2059 = vset.pattern.permute.xlu0 0
    %2060 = vperm.xlu0 %2059, %v2055
    %v2061 = vpop.permute.xlu0 %2060
    %2062 = vset.pattern.permute.xlu0 0
    %2063 = vperm.xlu0 %2062, %v2056
    %v2064 = vpop.permute.xlu0 %2063
    %v2065 = vlaneseq
    %v2066 = vshrl.u32 %v2065, 7
    %v2067 = vsub.s32 %v230, %v2066
    %v2068 = vrot.slane %v2061, %v2067
    %v2069 = vlaneseq
    %v2070 = vshrl.u32 %v2069, 7
    %v2071 = vsub.s32 %v230, %v2070
    %v2072 = vrot.slane %v2064, %v2071
    %v2073 = vsel %vm239, %v2072, %v2068
    %2075 = vrot.lane.b32.xlu0 %v1860, 36
    %v2076 = vpop.permute.xlu0 %2075
    %v2078 = vsel %vm341, %v2073, %v2076
    %v2079 = vpack.c.bf16 %v2078, %v2078
    %v2081 = vsel %vm365, %v2079, 0
    %2083 = vmatprep.subr.bf16.mxu0 0
    %2084 = vmatpush1.bf16.msra.mxu0 0
    %2085 = vmatprep.subr.bf16.mxu0 0
    %2086 = vmatpush1.bf16.msra.mxu0 0
    %2087 = vmatprep.subr.bf16.mxu0 0
    %2088 = vmatpush1.bf16.msra.mxu0 0
    %2089 = vmatprep.subr.bf16.mxu0 0
    %2090 = vmatpush1.bf16.msra.mxu0 0
    %2091 = vmatprep.subr.bf16.mxu0 0
    %2092 = vmatpush1.bf16.msra.mxu0 0
    %2093 = vmatprep.subr.bf16.mxu0 0
    %2094 = vmatpush1.bf16.msra.mxu0 %v371
    %2095 = vmatprep.subr.bf16.mxu0 0
    %2096 = vmatpush1.bf16.msra.mxu0 %v361
    %2097 = vmatprep.subr.bf16.mxu0 0
    %2098 = vmatpush1.bf16.msra.mxu0 %v360
    %2099 = vmatprep.subr.bf16.mxu0 0
    %2100 = vmatpush2.bf16.msra.mxu0 0
    %2101 = vmatprep.subr.bf16.mxu0 0
    %2102 = vmatpush2.bf16.msra.mxu0 0
    %2103 = vmatprep.subr.bf16.mxu0 0
    %2104 = vmatpush2.bf16.msra.mxu0 0
    %2105 = vmatprep.subr.bf16.mxu0 0
    %2106 = vmatpush2.bf16.msra.mxu0 0
    %2107 = vmatprep.subr.bf16.mxu0 0
    %2108 = vmatpush2.bf16.msra.mxu0 0
    %2109 = vmatprep.subr.bf16.mxu0 0
    %2110 = vmatpush2.bf16.msra.mxu0 0
    %2111 = vmatprep.subr.bf16.mxu0 0
    %2112 = vmatpush2.bf16.msra.mxu0 0
    %2113 = vmatprep.subr.bf16.mxu0 0
    %2114 = vmatpush2.bf16.msra.mxu0 0
    %2115 = vmatprep.mubr.bf16.mxu0 0
    %2116 = vmatmul.mubr.bf16.gmra.mxu0 %v2081
    %v2117 = vpop.f32.mrf.mxu0
    %v2118 = vadd.f32 %v348, %v2117
    %v2119 = vpop.f32.mrf.mxu0
    %v2120 = vpop.f32.mrf.mxu0
    %v2121 = vpop.f32.mrf.mxu0
    %2122 = vdwg.mxu0
    %v2123 = vxor.u32 %v2118, 2147483648
    %v2124 = vmul.f32 %v2123, 1.442695
    %v2125 = vpow.pop %v2124
    %v2126 = vadd.f32 %v2125, 1.0
    %v2127 = vrcp.pop %v2126
    %v2128 = vmul.f32 1.0, %v2127
    %v2129 = vtanh.pop %v2118
    %v2130 = vmul.f32 %v2128, %v1854
    %2132 = vrot.lane.b32.xlu0 %v2129, 64
    %v2133 = vpop.permute.xlu0 %2132
    %v2135 = vmul.f32 %v2128, %v2133
    %2137 = vrot.lane.b32.xlu0 %v2135, 32
    %v2138 = vpop.permute.xlu0 %2137
    %v2140 = vadd.f32 %v2130, %v2138
    %v2141 = vtanh.pop %v2140
    %2143 = vrot.lane.b32.xlu0 %v2141, 64
    %v2144 = vpop.permute.xlu0 %2143
    %v2146 = vmul.f32 %v2128, %v2144
    %v2149 = vunpack.c.l.s4 1983009808
    %v2150 = vunpack.c.0.s8 %v2149
    %v2151 = vlaneseq
    %v2152 = vshrl.u32 %v2151, 7
    %v2153 = vsub.s32 %v2150, %v2152
    %v2154 = vrot.slane %v2146, %v2153
    %2155 = vrot.lane.b32.xlu0 %v2154, 96
    %v2156 = vpop.permute.xlu0 %2155
    %2158 = vst.msk [vmem:[#allocation2 + $0x2] sm:$0x3] %vm1022, %v2156
    %2159 = vrot.lane.b32.xlu0 %v2146, 32
    %v2160 = vpop.permute.xlu0 %2159
    %v2162 = vsel %vm87, %v2160, %v2140
    %v2163 = vpack.c.bf16 %v2162, %v2162
    %v2165 = vsel %vm120, %v2163, 0
    %2167 = vmatprep.subr.bf16.mxu0 0
    %2168 = vmatpush1.bf16.msra.mxu0 0
    %2169 = vmatprep.subr.bf16.mxu0 0
    %2170 = vmatpush1.bf16.msra.mxu0 0
    %2171 = vmatprep.subr.bf16.mxu0 0
    %2172 = vmatpush1.bf16.msra.mxu0 0
    %2173 = vmatprep.subr.bf16.mxu0 0
    %2174 = vmatpush1.bf16.msra.mxu0 0
    %2175 = vmatprep.subr.bf16.mxu0 0
    %2176 = vmatpush1.bf16.msra.mxu0 %v115
    %2177 = vmatprep.subr.bf16.mxu0 0
    %2178 = vmatpush1.bf16.msra.mxu0 %v114
    %2179 = vmatprep.subr.bf16.mxu0 0
    %2180 = vmatpush1.bf16.msra.mxu0 %v113
    %2181 = vmatprep.subr.bf16.mxu0 0
    %2182 = vmatpush1.bf16.msra.mxu0 %v112
    %2183 = vmatprep.subr.bf16.mxu0 0
    %2184 = vmatpush2.bf16.msra.mxu0 0
    %2185 = vmatprep.subr.bf16.mxu0 0
    %2186 = vmatpush2.bf16.msra.mxu0 0
    %2187 = vmatprep.subr.bf16.mxu0 0
    %2188 = vmatpush2.bf16.msra.mxu0 0
    %2189 = vmatprep.subr.bf16.mxu0 0
    %2190 = vmatpush2.bf16.msra.mxu0 0
    %2191 = vmatprep.subr.bf16.mxu0 0
    %2192 = vmatpush2.bf16.msra.mxu0 0
    %2193 = vmatprep.subr.bf16.mxu0 0
    %2194 = vmatpush2.bf16.msra.mxu0 0
    %2195 = vmatprep.subr.bf16.mxu0 0
    %2196 = vmatpush2.bf16.msra.mxu0 0
    %2197 = vmatprep.subr.bf16.mxu0 0
    %2198 = vmatpush2.bf16.msra.mxu0 0
    %2199 = vmatprep.mubr.bf16.mxu0 0
    %2200 = vmatmul.mubr.bf16.gmra.mxu0 %v2165
    %v2201 = vpop.f32.mrf.mxu0
    %v2202 = vadd.f32 %v94, %v2201
    %v2203 = vpop.f32.mrf.mxu0
    %v2204 = vpop.f32.mrf.mxu0
    %v2205 = vpop.f32.mrf.mxu0
    %2206 = vdwg.mxu0
    %v2209 = vunpack.c.l.s4 1966171168
    %v2210 = vunpack.c.0.s8 %v2209
    %v2211 = vlaneseq
    %v2212 = vshrl.u32 %v2211, 7
    %v2213 = vsub.s32 %v2210, %v2212
    %v2214 = vrot.slane %v2202, %v2213
    %v2215 = vcombine.high %v2214, %v2214
    %v2217 = vunpack.c.l.s4 1966171168
    %v2218 = vunpack.c.0.s8 %v2217
    %v2219 = vlaneseq
    %v2220 = vshrl.u32 %v2219, 7
    %v2221 = vsub.s32 %v2218, %v2220
    %v2222 = vrot.slane %v2214, %v2221
    %v2224 = vunpack.c.l.s4 1966171168
    %v2225 = vunpack.c.0.s8 %v2224
    %v2226 = vlaneseq
    %v2227 = vshrl.u32 %v2226, 7
    %v2228 = vsub.s32 %v2225, %v2227
    %v2229 = vrot.slane %v2215, %v2228
    %v2230 = vlaneseq
    %v2231 = vshrl.u32 %v2230, 7
    %v2232 = vsub.s32 0, %v2231
    %v2233 = vrot.slane %v2222, %v2232
    %v2234 = vlaneseq
    %v2235 = vshrl.u32 %v2234, 7
    %v2236 = vsub.s32 0, %v2235
    %v2237 = vrot.slane %v2229, %v2236
    %v2240 = vadd.f32 %v2233, %v62
    %v2241 = vadd.f32 %v2237, %v63
    %v2242 = vtanh.pop %v2240
    %v2243 = vtanh.pop %v2241
    %v2244 = vmul.f32 %v2242, %v205
    %v2245 = vmul.f32 %v2243, %v205
    %v2246 = vsel %vm209, %v2244, 0.0
    %2247 = vadd.xlane.f32.xlu0 %v2246
    %v2248 = vpop.xlane.xlu0 %2247
    %v2249 = vsel %vm209, %v2245, 0.0
    %2250 = vadd.xlane.f32.xlu0 %v2249
    %v2251 = vpop.xlane.xlu0 %2250
    %v2252 = vadd.f32 %v2248, %v223
    %v2253 = vadd.f32 %v2251, %v223
    %v2256 = vlaneseq
    %v2257 = vshrl.u32 %v2256, 7
    %v2258 = vsub.s32 %v230, %v2257
    %v2259 = vrot.slane %v2252, %v2258
    %v2260 = vlaneseq
    %v2261 = vshrl.u32 %v2260, 7
    %v2262 = vsub.s32 %v230, %v2261
    %v2263 = vrot.slane %v2253, %v2262
    %v2264 = vsel %vm239, %v2263, %v2259
    %v2266 = vsel %vm242, %v2264, -inf
    %2267 = vmax.xlane.f32.xlu0 %v2266
    %v2268 = vpop.xlane.xlu0 %2267
    %v2270 = vlaneseq
    %v2271 = vshrl.u32 %v2270, 7
    %v2272 = vsub.s32 0, %v2271
    %v2273 = vrot.slane %v2268, %v2272
    %v2274 = vlaneseq
    %v2275 = vshrl.u32 %v2274, 7
    %v2276 = vsub.s32 1, %v2275
    %v2277 = vrot.slane %v2268, %v2276
    %v2280 = vsub.f32 %v2252, %v2273
    %v2281 = vsub.f32 %v2253, %v2277
    %v2282 = vmul.f32 %v2280, 1.442695
    %v2283 = vpow.pop %v2282
    %v2284 = vmul.f32 %v2281, 1.442695
    %v2285 = vpow.pop %v2284
    %2288 = vset.pattern.permute.xlu0 0
    %2289 = vperm.xlu0 %2288, %v2283
    %v2290 = vpop.permute.xlu0 %2289
    %2291 = vset.pattern.permute.xlu0 0
    %2292 = vperm.xlu0 %2291, %v2285
    %v2293 = vpop.permute.xlu0 %2292
    %v2294 = vlaneseq
    %v2295 = vshrl.u32 %v2294, 7
    %v2296 = vsub.s32 %v230, %v2295
    %v2297 = vrot.slane %v2290, %v2296
    %v2298 = vlaneseq
    %v2299 = vshrl.u32 %v2298, 7
    %v2300 = vsub.s32 %v230, %v2299
    %v2301 = vrot.slane %v2293, %v2300
    %v2302 = vsel %vm239, %v2301, %v2297
    %v2304 = vsel %vm242, %v2302, 0.0
    %2305 = vadd.xlane.f32.xlu0 %v2304
    %v2306 = vpop.xlane.xlu0 %2305
    %v2308 = vlaneseq
    %v2309 = vshrl.u32 %v2308, 7
    %v2310 = vsub.s32 0, %v2309
    %v2311 = vrot.slane %v2306, %v2310
    %v2312 = vlaneseq
    %v2313 = vshrl.u32 %v2312, 7
    %v2314 = vsub.s32 1, %v2313
    %v2315 = vrot.slane %v2306, %v2314
    %v2318 = vrcp.pop %v2311
    %v2319 = vmul.f32 %v2283, %v2318
    %v2320 = vrcp.pop %v2315
    %v2321 = vmul.f32 %v2285, %v2320
    %s2322 = scalar_lea.vmem %s0, 14
    %v2323 = vld [vmem:[%s2322] sm:$0x3]
    %v2325 = vlaneseq
    %v2326 = vshrl.u32 %v2325, 7
    %v2327 = vsub.s32 0, %v2326
    %v2328 = vrot.slane %v2323, %v2327
    %2330 = vbcast.lane.b32.xlu0 %v2328, 256
    %v2331 = vpop.permute.xlu0 %2330
    %v2332 = vlaneseq
    %v2333 = vshrl.u32 %v2332, 7
    %v2334 = vsub.s32 1, %v2333
    %v2335 = vrot.slane %v2323, %v2334
    %2337 = vbcast.lane.b32.xlu0 %v2335, 256
    %v2338 = vpop.permute.xlu0 %2337
    %v2341 = vmul.f32 %v2319, %v2331
    %v2342 = vmul.f32 %v2321, %v2338
    %2345 = vset.pattern.permute.xlu0 0
    %2346 = vperm.xlu0 %2345, %v2341
    %v2347 = vpop.permute.xlu0 %2346
    %2348 = vset.pattern.permute.xlu0 0
    %2349 = vperm.xlu0 %2348, %v2342
    %v2350 = vpop.permute.xlu0 %2349
    %v2351 = vlaneseq
    %v2352 = vshrl.u32 %v2351, 7
    %v2353 = vsub.s32 %v230, %v2352
    %v2354 = vrot.slane %v2347, %v2353
    %v2355 = vlaneseq
    %v2356 = vshrl.u32 %v2355, 7
    %v2357 = vsub.s32 %v230, %v2356
    %v2358 = vrot.slane %v2350, %v2357
    %v2359 = vsel %vm239, %v2358, %v2354
    %2361 = vrot.lane.b32.xlu0 %v2146, 36
    %v2362 = vpop.permute.xlu0 %2361
    %v2364 = vsel %vm341, %v2359, %v2362
    %v2365 = vpack.c.bf16 %v2364, %v2364
    %v2367 = vsel %vm365, %v2365, 0
    %2369 = vmatprep.subr.bf16.mxu0 0
    %2370 = vmatpush1.bf16.msra.mxu0 0
    %2371 = vmatprep.subr.bf16.mxu0 0
    %2372 = vmatpush1.bf16.msra.mxu0 0
    %2373 = vmatprep.subr.bf16.mxu0 0
    %2374 = vmatpush1.bf16.msra.mxu0 0
    %2375 = vmatprep.subr.bf16.mxu0 0
    %2376 = vmatpush1.bf16.msra.mxu0 0
    %2377 = vmatprep.subr.bf16.mxu0 0
    %2378 = vmatpush1.bf16.msra.mxu0 0
    %2379 = vmatprep.subr.bf16.mxu0 0
    %2380 = vmatpush1.bf16.msra.mxu0 %v371
    %2381 = vmatprep.subr.bf16.mxu0 0
    %2382 = vmatpush1.bf16.msra.mxu0 %v361
    %2383 = vmatprep.subr.bf16.mxu0 0
    %2384 = vmatpush1.bf16.msra.mxu0 %v360
    %2385 = vmatprep.subr.bf16.mxu0 0
    %2386 = vmatpush2.bf16.msra.mxu0 0
    %2387 = vmatprep.subr.bf16.mxu0 0
    %2388 = vmatpush2.bf16.msra.mxu0 0
    %2389 = vmatprep.subr.bf16.mxu0 0
    %2390 = vmatpush2.bf16.msra.mxu0 0
    %2391 = vmatprep.subr.bf16.mxu0 0
    %2392 = vmatpush2.bf16.msra.mxu0 0
    %2393 = vmatprep.subr.bf16.mxu0 0
    %2394 = vmatpush2.bf16.msra.mxu0 0
    %2395 = vmatprep.subr.bf16.mxu0 0
    %2396 = vmatpush2.bf16.msra.mxu0 0
    %2397 = vmatprep.subr.bf16.mxu0 0
    %2398 = vmatpush2.bf16.msra.mxu0 0
    %2399 = vmatprep.subr.bf16.mxu0 0
    %2400 = vmatpush2.bf16.msra.mxu0 0
    %2401 = vmatprep.mubr.bf16.mxu0 0
    %2402 = vmatmul.mubr.bf16.gmra.mxu0 %v2367
    %v2403 = vpop.f32.mrf.mxu0
    %v2404 = vadd.f32 %v348, %v2403
    %v2405 = vpop.f32.mrf.mxu0
    %v2406 = vpop.f32.mrf.mxu0
    %v2407 = vpop.f32.mrf.mxu0
    %2408 = vdwg.mxu0
    %v2409 = vxor.u32 %v2404, 2147483648
    %v2410 = vmul.f32 %v2409, 1.442695
    %v2411 = vpow.pop %v2410
    %v2412 = vadd.f32 %v2411, 1.0
    %v2413 = vrcp.pop %v2412
    %v2414 = vmul.f32 1.0, %v2413
    %v2415 = vtanh.pop %v2404
    %v2416 = vmul.f32 %v2414, %v2140
    %2418 = vrot.lane.b32.xlu0 %v2415, 64
    %v2419 = vpop.permute.xlu0 %2418
    %v2421 = vmul.f32 %v2414, %v2419
    %2423 = vrot.lane.b32.xlu0 %v2421, 32
    %v2424 = vpop.permute.xlu0 %2423
    %v2426 = vadd.f32 %v2416, %v2424
    %v2427 = vtanh.pop %v2426
    %2429 = vrot.lane.b32.xlu0 %v2427, 64
    %v2430 = vpop.permute.xlu0 %2429
    %v2432 = vmul.f32 %v2414, %v2430
    %2433 = vst.msk [vmem:[#allocation2 + $0x2] sm:$0x3] %vm1298, %v2432
    %v2434 = vld [vmem:[#allocation2] sm:$0xf]
    %v2437 = vunpack.c.l.s4 1983009808
    %v2438 = vunpack.c.0.s8 %v2437
    %v2439 = vlaneseq
    %v2440 = vshrl.u32 %v2439, 7
    %v2441 = vsub.s32 %v2438, %v2440
    %v2442 = vrot.slane %v2434, %v2441
    %v2443 = vcombine.high %v2442, %v2442
    %v2446 = vpack.c.bf16 %v2442, %v2442
    %v2447 = vpack.c.bf16 %v2443, %v2443
    %v2448 = vld [vmem:[%s10] sm:$0xff]
    %v2449 = vld [vmem:[%s10 + $0x8] sm:$0xff]
    %v2450 = vld [vmem:[%s10 + $0x10] sm:$0xff]
    %v2451 = vld [vmem:[%s10 + $0x18] sm:$0xff]
    %v2452 = vld [vmem:[%s10 + $0x20] sm:$0xff]
    %v2453 = vld [vmem:[%s10 + $0x28] sm:$0xff]
    %v2454 = vld [vmem:[%s10 + $0x30] sm:$0xff]
    %v2455 = vld [vmem:[%s10 + $0x38] sm:$0xff]
    %v2456 = vld [vmem:[%s10 + $0x40] sm:$0xff]
    %v2457 = vld [vmem:[%s10 + $0x48] sm:$0xff]
    %v2458 = vld [vmem:[%s10 + $0x50] sm:$0xff]
    %v2459 = vld [vmem:[%s10 + $0x58] sm:$0xff]
    %v2460 = vld [vmem:[%s10 + $0x60] sm:$0xff]
    %v2461 = vld [vmem:[%s10 + $0x68] sm:$0xff]
    %v2462 = vld [vmem:[%s10 + $0x70] sm:$0xff]
    %v2463 = vld [vmem:[%s10 + $0x78] sm:$0xff]
    %v2464 = vld [vmem:[%s10 + $0x80] sm:$0xff]
    %v2465 = vld [vmem:[%s10 + $0x88] sm:$0xff]
    %v2466 = vld [vmem:[%s10 + $0x90] sm:$0xff]
    %v2467 = vld [vmem:[%s10 + $0x98] sm:$0xff]
    %v2468 = vld [vmem:[%s10 + $0xa0] sm:$0xff]
    %v2469 = vld [vmem:[%s10 + $0xa8] sm:$0xff]
    %v2470 = vld [vmem:[%s10 + $0xb0] sm:$0xff]
    %v2471 = vld [vmem:[%s10 + $0xb8] sm:$0xff]
    %v2472 = vld [vmem:[%s10 + $0xc0] sm:$0xff]
    %v2473 = vld [vmem:[%s10 + $0xc8] sm:$0xff]
    %v2474 = vld [vmem:[%s10 + $0xd0] sm:$0xff]
    %v2475 = vld [vmem:[%s10 + $0xd8] sm:$0xff]
    %v2476 = vld [vmem:[%s10 + $0xe0] sm:$0xff]
    %v2477 = vld [vmem:[%s10 + $0xe8] sm:$0xff]
    %v2478 = vld [vmem:[%s10 + $0xf0] sm:$0xff]
    %v2479 = vld [vmem:[%s10 + $0xf8] sm:$0xff]
    %v2480 = vld [vmem:[%s11] sm:$0x3]
    %v2482 = vlaneseq
    %v2483 = vshrl.u32 %v2482, 7
    %v2484 = vsub.s32 0, %v2483
    %v2485 = vrot.slane %v2480, %v2484
    %v2486 = vlaneseq
    %v2487 = vshrl.u32 %v2486, 7
    %v2488 = vsub.s32 1, %v2487
    %v2489 = vrot.slane %v2480, %v2488
    %v2524 = vunpack.c.l.b16 %v2448
    %v2525 = vunpack.c.h.b16 %v2448
    %v2526 = vunpack.c.l.b16 %v2449
    %v2527 = vunpack.c.h.b16 %v2449
    %v2528 = vunpack.c.l.b16 %v2450
    %v2529 = vunpack.c.h.b16 %v2450
    %v2530 = vunpack.c.l.b16 %v2451
    %v2531 = vunpack.c.h.b16 %v2451
    %v2532 = vunpack.c.l.b16 %v2452
    %v2533 = vunpack.c.h.b16 %v2452
    %v2534 = vunpack.c.l.b16 %v2453
    %v2535 = vunpack.c.h.b16 %v2453
    %v2536 = vunpack.c.l.b16 %v2454
    %v2537 = vunpack.c.h.b16 %v2454
    %v2538 = vunpack.c.l.b16 %v2455
    %v2539 = vunpack.c.h.b16 %v2455
    %v2540 = vunpack.c.l.b16 %v2456
    %v2541 = vunpack.c.h.b16 %v2456
    %v2542 = vunpack.c.l.b16 %v2457
    %v2543 = vunpack.c.h.b16 %v2457
    %v2544 = vunpack.c.l.b16 %v2458
    %v2545 = vunpack.c.h.b16 %v2458
    %v2546 = vunpack.c.l.b16 %v2459
    %v2547 = vunpack.c.h.b16 %v2459
    %v2548 = vunpack.c.l.b16 %v2460
    %v2549 = vunpack.c.h.b16 %v2460
    %v2550 = vunpack.c.l.b16 %v2461
    %v2551 = vunpack.c.h.b16 %v2461
    %v2552 = vunpack.c.l.b16 %v2462
    %v2553 = vunpack.c.h.b16 %v2462
    %v2554 = vunpack.c.l.b16 %v2463
    %v2555 = vunpack.c.h.b16 %v2463
    %v2556 = vunpack.c.l.b16 %v2464
    %v2557 = vunpack.c.h.b16 %v2464
    %v2558 = vunpack.c.l.b16 %v2465
    %v2559 = vunpack.c.h.b16 %v2465
    %v2560 = vunpack.c.l.b16 %v2466
    %v2561 = vunpack.c.h.b16 %v2466
    %v2562 = vunpack.c.l.b16 %v2467
    %v2563 = vunpack.c.h.b16 %v2467
    %v2564 = vunpack.c.l.b16 %v2468
    %v2565 = vunpack.c.h.b16 %v2468
    %v2566 = vunpack.c.l.b16 %v2469
    %v2567 = vunpack.c.h.b16 %v2469
    %v2568 = vunpack.c.l.b16 %v2470
    %v2569 = vunpack.c.h.b16 %v2470
    %v2570 = vunpack.c.l.b16 %v2471
    %v2571 = vunpack.c.h.b16 %v2471
    %v2572 = vunpack.c.l.b16 %v2472
    %v2573 = vunpack.c.h.b16 %v2472
    %v2574 = vunpack.c.l.b16 %v2473
    %v2575 = vunpack.c.h.b16 %v2473
    %v2576 = vunpack.c.l.b16 %v2474
    %v2577 = vunpack.c.h.b16 %v2474
    %v2578 = vunpack.c.l.b16 %v2475
    %v2579 = vunpack.c.h.b16 %v2475
    %v2580 = vunpack.c.l.b16 %v2476
    %v2581 = vunpack.c.h.b16 %v2476
    %v2582 = vunpack.c.l.b16 %v2477
    %v2583 = vunpack.c.h.b16 %v2477
    %v2584 = vunpack.c.l.b16 %v2478
    %v2585 = vunpack.c.h.b16 %v2478
    %v2586 = vunpack.c.l.b16 %v2479
    %v2587 = vunpack.c.h.b16 %v2479
    %v2588 = vpack.c.b16 %v2526, %v2524
    %v2589 = vpack.c.b16 %v2527, %v2525
    %v2590 = vpack.c.b16 %v2530, %v2528
    %v2591 = vpack.c.b16 %v2531, %v2529
    %v2592 = vpack.c.b16 %v2534, %v2532
    %v2593 = vpack.c.b16 %v2535, %v2533
    %v2594 = vpack.c.b16 %v2538, %v2536
    %v2595 = vpack.c.b16 %v2539, %v2537
    %v2596 = vpack.c.b16 %v2542, %v2540
    %v2597 = vpack.c.b16 %v2543, %v2541
    %v2598 = vpack.c.b16 %v2546, %v2544
    %v2599 = vpack.c.b16 %v2547, %v2545
    %v2600 = vpack.c.b16 %v2550, %v2548
    %v2601 = vpack.c.b16 %v2551, %v2549
    %v2602 = vpack.c.b16 %v2554, %v2552
    %v2603 = vpack.c.b16 %v2555, %v2553
    %v2604 = vpack.c.b16 %v2558, %v2556
    %v2605 = vpack.c.b16 %v2559, %v2557
    %v2606 = vpack.c.b16 %v2562, %v2560
    %v2607 = vpack.c.b16 %v2563, %v2561
    %v2608 = vpack.c.b16 %v2566, %v2564
    %v2609 = vpack.c.b16 %v2567, %v2565
    %v2610 = vpack.c.b16 %v2570, %v2568
    %v2611 = vpack.c.b16 %v2571, %v2569
    %v2612 = vpack.c.b16 %v2574, %v2572
    %v2613 = vpack.c.b16 %v2575, %v2573
    %v2614 = vpack.c.b16 %v2578, %v2576
    %v2615 = vpack.c.b16 %v2579, %v2577
    %v2616 = vpack.c.b16 %v2582, %v2580
    %v2617 = vpack.c.b16 %v2583, %v2581
    %v2618 = vpack.c.b16 %v2586, %v2584
    %v2619 = vpack.c.b16 %v2587, %v2585
    %2652 = vmatprep.subr.bf16.mxu0 %v2603
    %2653 = vmatpush1.bf16.msra.mxu0 %v2602
    %2654 = vmatprep.subr.bf16.mxu0 %v2601
    %2655 = vmatpush1.bf16.msra.mxu0 %v2600
    %2656 = vmatprep.subr.bf16.mxu0 %v2599
    %2657 = vmatpush1.bf16.msra.mxu0 %v2598
    %2658 = vmatprep.subr.bf16.mxu0 %v2597
    %2659 = vmatpush1.bf16.msra.mxu0 %v2596
    %2660 = vmatprep.subr.bf16.mxu0 %v2595
    %2661 = vmatpush1.bf16.msra.mxu0 %v2594
    %2662 = vmatprep.subr.bf16.mxu0 %v2593
    %2663 = vmatpush1.bf16.msra.mxu0 %v2592
    %2664 = vmatprep.subr.bf16.mxu0 %v2591
    %2665 = vmatpush1.bf16.msra.mxu0 %v2590
    %2666 = vmatprep.subr.bf16.mxu0 %v2589
    %2667 = vmatpush1.bf16.msra.mxu0 %v2588
    %2668 = vmatprep.subr.bf16.mxu0 %v2619
    %2669 = vmatpush2.bf16.msra.mxu0 %v2618
    %2670 = vmatprep.subr.bf16.mxu0 %v2617
    %2671 = vmatpush2.bf16.msra.mxu0 %v2616
    %2672 = vmatprep.subr.bf16.mxu0 %v2615
    %2673 = vmatpush2.bf16.msra.mxu0 %v2614
    %2674 = vmatprep.subr.bf16.mxu0 %v2613
    %2675 = vmatpush2.bf16.msra.mxu0 %v2612
    %2676 = vmatprep.subr.bf16.mxu0 %v2611
    %2677 = vmatpush2.bf16.msra.mxu0 %v2610
    %2678 = vmatprep.subr.bf16.mxu0 %v2609
    %2679 = vmatpush2.bf16.msra.mxu0 %v2608
    %2680 = vmatprep.subr.bf16.mxu0 %v2607
    %2681 = vmatpush2.bf16.msra.mxu0 %v2606
    %2682 = vmatprep.subr.bf16.mxu0 %v2605
    %2683 = vmatpush2.bf16.msra.mxu0 %v2604
    %2684 = vmatprep.mubr.bf16.mxu0 %v2447
    %2685 = vmatmul.mubr.bf16.gmra.mxu0 %v2446
    %v2686 = vpop.f32.mrf.mxu0
    %v2687 = vadd.f32 %v2485, %v2686
    %v2688 = vpop.f32.mrf.mxu0
    %v2689 = vadd.f32 %v2489, %v2688
    %v2690 = vpop.f32.mrf.mxu0
    %v2691 = vpop.f32.mrf.mxu0
    %2692 = vdwg.mxu0
    %v2693 = vtanh.pop %v2687
    %v2694 = vtanh.pop %v2689
    %v2695 = vpack.c.bf16 %v2693, %v2693
    %v2696 = vpack.c.bf16 %v2694, %v2694
    %v2697 = vld [vmem:[%s12] sm:$0xf]
    %v2698 = vld [vmem:[%s12 + $0x4] sm:$0xf]
    %v2699 = vld [vmem:[%s12 + $0x8] sm:$0xf]
    %v2700 = vld [vmem:[%s12 + $0xc] sm:$0xf]
    %v2701 = vld [vmem:[%s12 + $0x10] sm:$0xf]
    %v2702 = vld [vmem:[%s12 + $0x14] sm:$0xf]
    %v2703 = vld [vmem:[%s12 + $0x18] sm:$0xf]
    %v2704 = vld [vmem:[%s12 + $0x1c] sm:$0xf]
    %v2705 = vld [vmem:[%s12 + $0x20] sm:$0xf]
    %v2706 = vld [vmem:[%s12 + $0x24] sm:$0xf]
    %v2707 = vld [vmem:[%s12 + $0x28] sm:$0xf]
    %v2708 = vld [vmem:[%s12 + $0x2c] sm:$0xf]
    %v2709 = vld [vmem:[%s12 + $0x30] sm:$0xf]
    %v2710 = vld [vmem:[%s12 + $0x34] sm:$0xf]
    %v2711 = vld [vmem:[%s12 + $0x38] sm:$0xf]
    %v2712 = vld [vmem:[%s12 + $0x3c] sm:$0xf]
    %v2713 = vld [vmem:[%s12 + $0x40] sm:$0xf]
    %v2714 = vld [vmem:[%s12 + $0x44] sm:$0xf]
    %v2715 = vld [vmem:[%s12 + $0x48] sm:$0xf]
    %v2716 = vld [vmem:[%s12 + $0x4c] sm:$0xf]
    %v2717 = vld [vmem:[%s12 + $0x50] sm:$0xf]
    %v2718 = vld [vmem:[%s12 + $0x54] sm:$0xf]
    %v2719 = vld [vmem:[%s12 + $0x58] sm:$0xf]
    %v2720 = vld [vmem:[%s12 + $0x5c] sm:$0xf]
    %v2721 = vld [vmem:[%s12 + $0x60] sm:$0xf]
    %v2722 = vld [vmem:[%s12 + $0x64] sm:$0xf]
    %v2723 = vld [vmem:[%s12 + $0x68] sm:$0xf]
    %v2724 = vld [vmem:[%s12 + $0x6c] sm:$0xf]
    %v2725 = vld [vmem:[%s12 + $0x70] sm:$0xf]
    %v2726 = vld [vmem:[%s12 + $0x74] sm:$0xf]
    %v2727 = vld [vmem:[%s12 + $0x78] sm:$0xf]
    %v2728 = vld [vmem:[%s12 + $0x7c] sm:$0xf]
    %v2729 = vld [vmem:[#allocation4] sm:$0x1]
    %v2731 = vlaneseq
    %v2732 = vshrl.u32 %v2731, 7
    %v2733 = vsub.s32 0, %v2732
    %v2734 = vrot.slane %v2729, %v2733
    %2735 = vset.pattern.permute.xlu0 0
    %2736 = vperm.xlu0 %2735, %v2734
    %v2737 = vpop.permute.xlu0 %2736
    %v2771 = vunpack.c.l.b16 %v2697
    %v2772 = vunpack.c.l.b16 %v2698
    %v2773 = vunpack.c.l.b16 %v2699
    %v2774 = vunpack.c.l.b16 %v2700
    %v2775 = vunpack.c.l.b16 %v2701
    %v2776 = vunpack.c.l.b16 %v2702
    %v2777 = vunpack.c.l.b16 %v2703
    %v2778 = vunpack.c.l.b16 %v2704
    %v2779 = vunpack.c.l.b16 %v2705
    %v2780 = vunpack.c.l.b16 %v2706
    %v2781 = vunpack.c.l.b16 %v2707
    %v2782 = vunpack.c.l.b16 %v2708
    %v2783 = vunpack.c.l.b16 %v2709
    %v2784 = vunpack.c.l.b16 %v2710
    %v2785 = vunpack.c.l.b16 %v2711
    %v2786 = vunpack.c.l.b16 %v2712
    %v2787 = vunpack.c.l.b16 %v2713
    %v2788 = vunpack.c.l.b16 %v2714
    %v2789 = vunpack.c.l.b16 %v2715
    %v2790 = vunpack.c.l.b16 %v2716
    %v2791 = vunpack.c.l.b16 %v2717
    %v2792 = vunpack.c.l.b16 %v2718
    %v2793 = vunpack.c.l.b16 %v2719
    %v2794 = vunpack.c.l.b16 %v2720
    %v2795 = vunpack.c.l.b16 %v2721
    %v2796 = vunpack.c.l.b16 %v2722
    %v2797 = vunpack.c.l.b16 %v2723
    %v2798 = vunpack.c.l.b16 %v2724
    %v2799 = vunpack.c.l.b16 %v2725
    %v2800 = vunpack.c.l.b16 %v2726
    %v2801 = vunpack.c.l.b16 %v2727
    %v2802 = vunpack.c.l.b16 %v2728
    %v2803 = vpack.c.b16 %v2772, %v2771
    %v2804 = vpack.c.b16 %v2774, %v2773
    %v2805 = vpack.c.b16 %v2776, %v2775
    %v2806 = vpack.c.b16 %v2778, %v2777
    %v2807 = vpack.c.b16 %v2780, %v2779
    %v2808 = vpack.c.b16 %v2782, %v2781
    %v2809 = vpack.c.b16 %v2784, %v2783
    %v2810 = vpack.c.b16 %v2786, %v2785
    %v2811 = vpack.c.b16 %v2788, %v2787
    %v2812 = vpack.c.b16 %v2790, %v2789
    %v2813 = vpack.c.b16 %v2792, %v2791
    %v2814 = vpack.c.b16 %v2794, %v2793
    %v2815 = vpack.c.b16 %v2796, %v2795
    %v2816 = vpack.c.b16 %v2798, %v2797
    %v2817 = vpack.c.b16 %v2800, %v2799
    %v2818 = vpack.c.b16 %v2802, %v2801
    %2835 = vmatprep.subr.bf16.mxu0 0
    %2836 = vmatpush1.bf16.msra.mxu0 %v2810
    %2837 = vmatprep.subr.bf16.mxu0 0
    %2838 = vmatpush1.bf16.msra.mxu0 %v2809
    %2839 = vmatprep.subr.bf16.mxu0 0
    %2840 = vmatpush1.bf16.msra.mxu0 %v2808
    %2841 = vmatprep.subr.bf16.mxu0 0
    %2842 = vmatpush1.bf16.msra.mxu0 %v2807
    %2843 = vmatprep.subr.bf16.mxu0 0
    %2844 = vmatpush1.bf16.msra.mxu0 %v2806
    %2845 = vmatprep.subr.bf16.mxu0 0
    %2846 = vmatpush1.bf16.msra.mxu0 %v2805
    %2847 = vmatprep.subr.bf16.mxu0 0
    %2848 = vmatpush1.bf16.msra.mxu0 %v2804
    %2849 = vmatprep.subr.bf16.mxu0 0
    %2850 = vmatpush1.bf16.msra.mxu0 %v2803
    %2851 = vmatprep.subr.bf16.mxu0 0
    %2852 = vmatpush2.bf16.msra.mxu0 %v2818
    %2853 = vmatprep.subr.bf16.mxu0 0
    %2854 = vmatpush2.bf16.msra.mxu0 %v2817
    %2855 = vmatprep.subr.bf16.mxu0 0
    %2856 = vmatpush2.bf16.msra.mxu0 %v2816
    %2857 = vmatprep.subr.bf16.mxu0 0
    %2858 = vmatpush2.bf16.msra.mxu0 %v2815
    %2859 = vmatprep.subr.bf16.mxu0 0
    %2860 = vmatpush2.bf16.msra.mxu0 %v2814
    %2861 = vmatprep.subr.bf16.mxu0 0
    %2862 = vmatpush2.bf16.msra.mxu0 %v2813
    %2863 = vmatprep.subr.bf16.mxu0 0
    %2864 = vmatpush2.bf16.msra.mxu0 %v2812
    %2865 = vmatprep.subr.bf16.mxu0 0
    %2866 = vmatpush2.bf16.msra.mxu0 %v2811
    %2867 = vmatprep.mubr.bf16.mxu0 %v2696
    %2868 = vmatmul.mubr.bf16.gmra.mxu0 %v2695
    %v2869 = vpop.f32.mrf.mxu0
    %v2870 = vadd.f32 %v2737, %v2869
    %v2871 = vpop.f32.mrf.mxu0
    %v2872 = vpop.f32.mrf.mxu0
    %v2873 = vpop.f32.mrf.mxu0
    %2874 = vdwg.mxu0
    %vm2875 = vcmask 58368
    %v2876 = vsel %vm2875, %v2870, -inf
    %2877 = vmax.xlane.f32.xlu0 %v2876
    %v2878 = vpop.xlane.xlu0 %2877
    %v2879 = vsub.f32 %v2870, %v2878
    %v2880 = vmul.f32 %v2879, 1.442695
    %v2881 = vpow.pop %v2880
    %v2882 = vsel %vm2875, %v2881, 0.0
    %2883 = vadd.xlane.f32.xlu0 %v2882
    %v2884 = vpop.xlane.xlu0 %2883
    %v2885 = vrcp.pop %v2884
    %v2886 = vmul.f32 %v2881, %v2885
    %2888 = vset.pattern.permute.xlu0 0
    %2889 = vperm.xlu0 %2888, %v2886
    %v2890 = vpop.permute.xlu0 %2889
    %v2892 = vmul.f32 %v2890, %v2434
    %v2893 = vadd.f32 %v2892, 0.0
    %2894 = vset.pattern.permute.xlu0 1
    %2895 = vperm.xlu0 %2894, %v2886
    %v2896 = vpop.permute.xlu0 %2895
    %2898 = vrot.lane.b32.xlu0 %v2442, 96
    %v2899 = vpop.permute.xlu0 %2898
    %v2901 = vmul.f32 %v2896, %v2899
    %v2902 = vadd.f32 %v2893, %v2901
    %2903 = vset.pattern.permute.xlu0 2
    %2904 = vperm.xlu0 %2903, %v2886
    %v2905 = vpop.permute.xlu0 %2904
    %2907 = vrot.lane.b32.xlu0 %v2442, 64
    %v2908 = vpop.permute.xlu0 %2907
    %v2910 = vmul.f32 %v2905, %v2908
    %v2911 = vadd.f32 %v2902, %v2910
    %2912 = vset.pattern.permute.xlu0 3
    %2913 = vperm.xlu0 %2912, %v2886
    %v2914 = vpop.permute.xlu0 %2913
    %2916 = vrot.lane.b32.xlu0 %v2442, 32
    %v2917 = vpop.permute.xlu0 %2916
    %v2919 = vmul.f32 %v2914, %v2917
    %v2920 = vadd.f32 %v2911, %v2919
    %2921 = vset.pattern.permute.xlu0 4
    %2922 = vperm.xlu0 %2921, %v2886
    %v2923 = vpop.permute.xlu0 %2922
    %v2925 = vmul.f32 %v2923, %v2443
    %v2926 = vadd.f32 %v2920, %v2925
    %2927 = vset.pattern.permute.xlu0 5
    %2928 = vperm.xlu0 %2927, %v2886
    %v2929 = vpop.permute.xlu0 %2928
    %2931 = vrot.lane.b32.xlu0 %v2443, 96
    %v2932 = vpop.permute.xlu0 %2931
    %v2934 = vmul.f32 %v2929, %v2932
    %v2935 = vadd.f32 %v2926, %v2934
    %2936 = vset.pattern.permute.xlu0 6
    %2937 = vperm.xlu0 %2936, %v2886
    %v2938 = vpop.permute.xlu0 %2937
    %2940 = vrot.lane.b32.xlu0 %v2443, 64
    %v2941 = vpop.permute.xlu0 %2940
    %v2943 = vmul.f32 %v2938, %v2941
    %v2944 = vadd.f32 %v2935, %v2943
    %2945 = vset.pattern.permute.xlu0 7
    %2946 = vperm.xlu0 %2945, %v2886
    %v2947 = vpop.permute.xlu0 %2946
    %2949 = vrot.lane.b32.xlu0 %v2443, 32
    %v2950 = vpop.permute.xlu0 %2949
    %v2952 = vmul.f32 %v2947, %v2950
    %v2953 = vadd.f32 %v2944, %v2952
    %v2954 = vpack.c.bf16 %v2953, %v2953
    %v2955 = vld [vmem:[%s14] sm:$0xf]
    %v2956 = vld [vmem:[%s14 + $0x4] sm:$0xf]
    %v2957 = vld [vmem:[%s14 + $0x8] sm:$0xf]
    %v2958 = vld [vmem:[%s14 + $0xc] sm:$0xf]
    %v2959 = vld [vmem:[%s15] sm:$0x1]
    %v2961 = vlaneseq
    %v2962 = vshrl.u32 %v2961, 7
    %v2963 = vsub.s32 0, %v2962
    %v2964 = vrot.slane %v2959, %v2963
    %v2970 = vunpack.c.l.b16 %v2955
    %v2971 = vunpack.c.l.b16 %v2956
    %v2972 = vunpack.c.l.b16 %v2957
    %v2973 = vunpack.c.l.b16 %v2958
    %v2974 = vpack.c.b16 %v2971, %v2970
    %v2975 = vpack.c.b16 %v2973, %v2972
    %v2979 = vsel %vm87, %v2954, 0
    %2981 = vmatprep.subr.bf16.mxu0 0
    %2982 = vmatpush1.bf16.msra.mxu0 0
    %2983 = vmatprep.subr.bf16.mxu0 0
    %2984 = vmatpush1.bf16.msra.mxu0 0
    %2985 = vmatprep.subr.bf16.mxu0 0
    %2986 = vmatpush1.bf16.msra.mxu0 0
    %2987 = vmatprep.subr.bf16.mxu0 0
    %2988 = vmatpush1.bf16.msra.mxu0 0
    %2989 = vmatprep.subr.bf16.mxu0 0
    %2990 = vmatpush1.bf16.msra.mxu0 0
    %2991 = vmatprep.subr.bf16.mxu0 0
    %2992 = vmatpush1.bf16.msra.mxu0 0
    %2993 = vmatprep.subr.bf16.mxu0 0
    %2994 = vmatpush1.bf16.msra.mxu0 %v2975
    %2995 = vmatprep.subr.bf16.mxu0 0
    %2996 = vmatpush1.bf16.msra.mxu0 %v2974
    %2997 = vmatprep.subr.bf16.mxu0 0
    %2998 = vmatpush2.bf16.msra.mxu0 0
    %2999 = vmatprep.subr.bf16.mxu0 0
    %3000 = vmatpush2.bf16.msra.mxu0 0
    %3001 = vmatprep.subr.bf16.mxu0 0
    %3002 = vmatpush2.bf16.msra.mxu0 0
    %3003 = vmatprep.subr.bf16.mxu0 0
    %3004 = vmatpush2.bf16.msra.mxu0 0
    %3005 = vmatprep.subr.bf16.mxu0 0
    %3006 = vmatpush2.bf16.msra.mxu0 0
    %3007 = vmatprep.subr.bf16.mxu0 0
    %3008 = vmatpush2.bf16.msra.mxu0 0
    %3009 = vmatprep.subr.bf16.mxu0 0
    %3010 = vmatpush2.bf16.msra.mxu0 0
    %3011 = vmatprep.subr.bf16.mxu0 0
    %3012 = vmatpush2.bf16.msra.mxu0 0
    %3013 = vmatprep.mubr.bf16.mxu0 0
    %3014 = vmatmul.mubr.bf16.gmra.mxu0 %v2979
    %v3015 = vpop.f32.mrf.mxu0
    %v3016 = vadd.f32 %v2964, %v3015
    %v3017 = vpop.f32.mrf.mxu0
    %v3018 = vpop.f32.mrf.mxu0
    %v3019 = vpop.f32.mrf.mxu0
    %3020 = vdwg.mxu0
    %vm3021 = vcmask 17408
    %3022 = vst.msk [vmem:[#allocation5] sm:$0x3] %vm3021, %v3016
    %3023 = vst.msk [vmem:[#allocation7] sm:$0x3] %vm2875, %v2886
    // Predicated region
    $region66: #{darnn_forward.1} parent=1 // pred_check
      _
    $region67: #{darnn_forward.1} parent=1 // pred_check_branch
      %3025 = sbr.rel (0) target = $region69
    $region68: #{darnn_forward.1} parent=1 // pred_region
      %s3027 = ssub.s32 32, 32
      %3028 = vsyncadd [#allocation6], %s3027
      %s3030 = sshll.u32 [#allocation5], 4
      %s3031 = int_to_ptr.vmem [resolvable:$true] %s3030
      %3033 = dma.vmem_to_hbm [thread:$0]  %s3031, 32, %s16, [#allocation6]
    $region69: #{darnn_forward.1} parent=1 // pred_fallthru
      _
    // Predicated region
    $region70: #{darnn_forward.1} parent=1 // pred_check
      _
    $region71: #{darnn_forward.1} parent=1 // pred_check_branch
      %3035 = sbr.rel (0) target = $region73
    $region72: #{darnn_forward.1} parent=1 // pred_region
      %s3037 = ssub.s32 32, 32
      %3038 = vsyncadd [#allocation8], %s3037
      %s3040 = sshll.u32 [#allocation7], 4
      %s3041 = int_to_ptr.vmem [resolvable:$true] %s3040
      %3043 = dma.vmem_to_hbm [thread:$0]  %s3041, 32, %s17, [#allocation8]
    $region73: #{darnn_forward.1} parent=1 // pred_fallthru
      _
    // Predicated region
    $region74: #{darnn_forward.1} parent=1 // pred_check
      _
    $region75: #{darnn_forward.1} parent=1 // pred_check_branch
      %3045 = sbr.rel (0) target = $region77
    $region76: #{darnn_forward.1} parent=1 // pred_region
      %3046 = dma.done [#allocation6], 32
    $region77: #{darnn_forward.1} parent=1 // pred_fallthru
      _
    // Predicated region
    $region78: #{darnn_forward.1} parent=1 // pred_check
      _
    $region79: #{darnn_forward.1} parent=1 // pred_check_branch
      %3048 = sbr.rel (0) target = $region81
    $region80: #{darnn_forward.1} parent=1 // pred_region
      %3049 = dma.done [#allocation8], 32
    $region81: #{darnn_forward.1} parent=1 // pred_fallthru
      _
    %3050 = vsyncpa [#allocation6], 1
    %3051 = vsyncpa [#allocation8], 1

</llo_original>
